<compile_context>
chip_gen: v7x
topology: tpu7x:2x2x1
jax: 0.10.0
libtpu: 0.0.40
codegen_flags: <defaults>
</compile_context>

<pallas_src>
import numpy as np
import jax
import jax.numpy as jnp
from jax.experimental import pallas as pl
from jax.experimental.pallas import tpu as pltpu


# ---------------------------------------------------------------------------
# Weight-independent DFT factors (numpy constants, a few KB total).
# ---------------------------------------------------------------------------
def _dft_factors(n_modes, size):
    """Truncated forward DFT F (n_modes, size) and normalized inverse DFT
    G (size, n_modes), split into real/imag float32 parts.

      F[p, s] = exp(-2*pi*i*p*s/size)
      G[s, p] = exp(+2*pi*i*p*s/size) / size
    """
    p = np.arange(n_modes)[:, None]
    s = np.arange(size)[None, :]
    ang = 2.0 * np.pi * p * s / size                      # (n_modes, size)
    f_re = np.cos(ang).astype(np.float32)
    f_im = (-np.sin(ang)).astype(np.float32)
    g_re = (np.cos(ang).T / size).astype(np.float32)      # (size, n_modes)
    g_im = (np.sin(ang).T / size).astype(np.float32)
    return f_re, f_im, g_re, g_im


# ---------------------------------------------------------------------------
# Pallas kernel: separable truncated-DFT chain on a (B, c_tile, H, W) block.
# ---------------------------------------------------------------------------
def _fourier_kernel(x_ref, w_ref, fhr_ref, fhi_ref, fwrt_ref, fwit_ref,
                    ghr_ref, ghi_ref, gwrt_ref, gwit_ref, o_ref):
    B, ct, H, W = x_ref.shape
    m1 = fhr_ref.shape[0]
    m2 = fwrt_ref.shape[1]
    N = B * ct
    f32 = jnp.float32

    x2 = x_ref[...].reshape(N * H, W)                       # (N*H, W)
    wb = jnp.broadcast_to(w_ref[...][None], (B, ct, m1, m2)).reshape(N, m1, m2)

    fwrt = fwrt_ref[...]; fwit = fwit_ref[...]              # (W, m2) = Fw^T
    gwrt = gwrt_ref[...]; gwit = gwit_ref[...]              # (m2, W) = Gw^T
    fhr = jnp.broadcast_to(fhr_ref[...][None], (N, m1, H))  # Fh
    fhi = jnp.broadcast_to(fhi_ref[...][None], (N, m1, H))
    ghr = jnp.broadcast_to(ghr_ref[...][None], (N, H, m1))  # Gh
    ghi = jnp.broadcast_to(ghi_ref[...][None], (N, H, m1))

    # Forward DFT along W (one right-matmul with M = N*H).
    ar = jnp.dot(x2, fwrt, preferred_element_type=f32).reshape(N, H, m2)
    ai = jnp.dot(x2, fwit, preferred_element_type=f32).reshape(N, H, m2)

    # Forward DFT along H, truncated to m1 modes (batched left-matmul).
    xr = (jnp.einsum('nph,nhq->npq', fhr, ar, preferred_element_type=f32)
          - jnp.einsum('nph,nhq->npq', fhi, ai, preferred_element_type=f32))
    xi = (jnp.einsum('nph,nhq->npq', fhr, ai, preferred_element_type=f32)
          + jnp.einsum('nph,nhq->npq', fhi, ar, preferred_element_type=f32))

    # Per-channel real spectral weights on the kept modes.
    yr = (wb * xr).reshape(N * m1, m2)
    yi = (wb * xi).reshape(N * m1, m2)

    # Inverse DFT along W (right-matmul).
    zr = (jnp.dot(yr, gwrt, preferred_element_type=f32)
          - jnp.dot(yi, gwit, preferred_element_type=f32)).reshape(N, m1, W)
    zi = (jnp.dot(yr, gwit, preferred_element_type=f32)
          + jnp.dot(yi, gwrt, preferred_element_type=f32)).reshape(N, m1, W)

    # Inverse DFT along H; keep only the real part (matches ifftn(...).real).
    out = (jnp.einsum('nhp,npw->nhw', ghr, zr, preferred_element_type=f32)
           - jnp.einsum('nhp,npw->nhw', ghi, zi, preferred_element_type=f32))

    o_ref[...] = out.reshape(B, ct, H, W).astype(o_ref.dtype)


# ---------------------------------------------------------------------------
# Tile-size heuristic: VMEM budget aware, keeps grid extent >= 2 when possible.
# ---------------------------------------------------------------------------
def _pick_c_tile(B, C, H, W, m1, m2, itemsize=4, vmem_budget_bytes=8 << 20):
    # Rough per-channel working set: double-buffered x/out blocks plus the
    # complex intermediates, with headroom.
    per_c = itemsize * B * (4 * H * W + 4 * H * m2 + 6 * m1 * m2 + 4 * m1 * W)
    cap = max(1, int(vmem_budget_bytes // max(per_c, 1)))
    divisors = [t for t in range(1, C + 1) if C % t == 0]
    two_step = [t for t in divisors if t <= cap and C // t >= 2]
    if two_step:            # prefer >=2 grid steps (v7x: use both TensorCores)
        return max(two_step)
    fits = [t for t in divisors if t <= cap]
    return max(fits) if fits else 1


# ---------------------------------------------------------------------------
# Public wrapper (matches the PyTorch forward).
# ---------------------------------------------------------------------------
def fourier_layer_2d(x, weights, *, c_tile=None):
    """x: (B, C, H, W) float32, weights: (1, C, m1, m2) float32 (real)."""
    B, C, H, W = x.shape
    _, C_w, m1, m2 = weights.shape
    assert C_w == C, "PyTorch broadcast requires in_channels == out_channels"

    # Weight-independent DFT factors (numpy, computed at trace time).
    fhr, fhi, ghr, ghi = _dft_factors(m1, H)            # (m1,H)x2, (H,m1)x2
    fwr, fwi, gwr, gwi = _dft_factors(m2, W)            # (m2,W)x2, (W,m2)x2
    fwrt = jnp.asarray(np.ascontiguousarray(fwr.T))     # (W, m2)  = Fw^T
    fwit = jnp.asarray(np.ascontiguousarray(fwi.T))
    gwrt = jnp.asarray(np.ascontiguousarray(gwr.T))     # (m2, W)  = Gw^T
    gwit = jnp.asarray(np.ascontiguousarray(gwi.T))
    fhr, fhi = jnp.asarray(fhr), jnp.asarray(fhi)
    ghr, ghi = jnp.asarray(ghr), jnp.asarray(ghi)

    w = weights.reshape(C, m1, m2).astype(jnp.float32)

    if c_tile is None:
        c_tile = _pick_c_tile(B, C, H, W, m1, m2)
    assert C % c_tile == 0
    grid = (C // c_tile,)

    flops = 2 * B * C * (2 * H * W * m2 + 4 * m1 * H * m2
                         + 4 * m1 * m2 * W + 2 * H * m1 * W)
    bytes_accessed = 4 * (2 * B * C * H * W + C * m1 * m2
                          + 2 * (m1 * H + W * m2 + H * m1 + m2 * W))
    cost = pl.CostEstimate(flops=flops, transcendentals=0,
                           bytes_accessed=bytes_accessed)

    def full2d(shape):
        return pl.BlockSpec(shape, lambda i: (0, 0))

    return pl.pallas_call(
        _fourier_kernel,
        out_shape=jax.ShapeDtypeStruct((B, C, H, W), x.dtype),
        grid_spec=pltpu.PrefetchScalarGridSpec(
            num_scalar_prefetch=0,
            grid=grid,
            in_specs=[
                pl.BlockSpec((B, c_tile, H, W), lambda i: (0, i, 0, 0)),  # x
                pl.BlockSpec((c_tile, m1, m2), lambda i: (i, 0, 0)),      # weights
                full2d((m1, H)), full2d((m1, H)),                          # Fh re/im
                full2d((W, m2)), full2d((W, m2)),                          # Fw^T re/im
                full2d((H, m1)), full2d((H, m1)),                          # Gh re/im
                full2d((m2, W)), full2d((m2, W)),                          # Gw^T re/im
            ],
            out_specs=pl.BlockSpec((B, c_tile, H, W), lambda i: (0, i, 0, 0)),
        ),
        compiler_params=pltpu.CompilerParams(
            dimension_semantics=("parallel",),
            vmem_limit_bytes=32 * 1024 * 1024,
        ),
        cost_estimate=cost,
    )(x, w, fhr, fhi, fwrt, fwit, ghr, ghi, gwrt, gwit)


# ---------------------------------------------------------------------------
# Reference (jnp.fft) and self-test.
# ---------------------------------------------------------------------------
def _reference(x, weights, m1, m2):
    x_ft = jnp.fft.fftn(x, axes=(-2, -1))
    out_ft = jnp.zeros_like(x_ft)
    out_ft = out_ft.at[:, :, :m1, :m2].set(
        x_ft[:, :, :m1, :m2] * weights.astype(x_ft.dtype))
    return jnp.real(jnp.fft.ifftn(out_ft, axes=(-2, -1))).astype(x.dtype)


if __name__ == "__main__":
    B, C, H, W = 2, 4, 16, 16
    modes1, modes2 = 8, 8

    key = jax.random.PRNGKey(0)
    kx, kw = jax.random.split(key)
    x = jax.random.normal(kx, (B, C, H, W), dtype=jnp.float32)
    # Module init: torch.randn(1, out_channels, modes1, modes2)
    weights = jax.random.normal(kw, (1, C, modes1, modes2), dtype=jnp.float32)

    fn = jax.jit(fourier_layer_2d)
    out = jax.block_until_ready(fn(x, weights))

    ref = _reference(x, weights, modes1, modes2)
    assert out.shape == (B, C, H, W)
    np.testing.assert_allclose(np.asarray(out), np.asarray(ref),
                               rtol=5e-4, atol=5e-4)
    print("KERNEL_OK")
</pallas_src>

<mosaic_0001>
module attributes {stable_mosaic.version = 11 : i64} {
  func.func @_fourier_kernel(%arg0: i32, %arg1: memref<2x2x16x16xf32, #tpu.memory_space<vmem>>, %arg2: memref<2x8x8xf32, #tpu.memory_space<vmem>>, %arg3: memref<8x16xf32, #tpu.memory_space<vmem>>, %arg4: memref<8x16xf32, #tpu.memory_space<vmem>>, %arg5: memref<16x8xf32, #tpu.memory_space<vmem>>, %arg6: memref<16x8xf32, #tpu.memory_space<vmem>>, %arg7: memref<16x8xf32, #tpu.memory_space<vmem>>, %arg8: memref<16x8xf32, #tpu.memory_space<vmem>>, %arg9: memref<8x16xf32, #tpu.memory_space<vmem>>, %arg10: memref<8x16xf32, #tpu.memory_space<vmem>>, %arg11: memref<2x2x16x16xf32, #tpu.memory_space<vmem>>) attributes {dimension_semantics = [#tpu.dimension_semantics<parallel>], iteration_bounds = array<i64: 2>, scalar_prefetch = 0 : i64, scratch_operands = 0 : i64, tpu.core_type = #tpu.core_type<tc>, window_params = [{transform_indices = @transform_0, window_bounds = array<i64: 2, 2, 16, 16>}, {transform_indices = @transform_1, window_bounds = array<i64: 2, 8, 8>}, {pipeline_mode = #tpu.pipeline_mode<synchronous>, transform_indices = @transform_2, window_bounds = array<i64: 8, 16>}, {pipeline_mode = #tpu.pipeline_mode<synchronous>, transform_indices = @transform_3, window_bounds = array<i64: 8, 16>}, {pipeline_mode = #tpu.pipeline_mode<synchronous>, transform_indices = @transform_4, window_bounds = array<i64: 16, 8>}, {pipeline_mode = #tpu.pipeline_mode<synchronous>, transform_indices = @transform_5, window_bounds = array<i64: 16, 8>}, {pipeline_mode = #tpu.pipeline_mode<synchronous>, transform_indices = @transform_6, window_bounds = array<i64: 16, 8>}, {pipeline_mode = #tpu.pipeline_mode<synchronous>, transform_indices = @transform_7, window_bounds = array<i64: 16, 8>}, {pipeline_mode = #tpu.pipeline_mode<synchronous>, transform_indices = @transform_8, window_bounds = array<i64: 8, 16>}, {pipeline_mode = #tpu.pipeline_mode<synchronous>, transform_indices = @transform_9, window_bounds = array<i64: 8, 16>}, {transform_indices = @transform_10, window_bounds = array<i64: 2, 2, 16, 16>}]} {
    %c0 = arith.constant 0 : index
    %c0_0 = arith.constant 0 : index
    %c0_1 = arith.constant 0 : index
    %c0_2 = arith.constant 0 : index
    %0 = vector.load %arg1[%c0, %c0_0, %c0_1, %c0_2] : memref<2x2x16x16xf32, #tpu.memory_space<vmem>>, vector<2x2x16x16xf32>
    %1 = vector.shape_cast %0 : vector<2x2x16x16xf32> to vector<64x16xf32>
    %c0_3 = arith.constant 0 : index
    %c0_4 = arith.constant 0 : index
    %c0_5 = arith.constant 0 : index
    %2 = vector.load %arg2[%c0_3, %c0_4, %c0_5] : memref<2x8x8xf32, #tpu.memory_space<vmem>>, vector<2x8x8xf32>
    %3 = vector.shape_cast %2 : vector<2x8x8xf32> to vector<1x2x8x8xf32>
    %4 = vector.shape_cast %3 : vector<1x2x8x8xf32> to vector<1x2x8x8xf32>
    %5 = vector.broadcast %4 : vector<1x2x8x8xf32> to vector<2x2x8x8xf32>
    %6 = vector.shape_cast %5 : vector<2x2x8x8xf32> to vector<4x8x8xf32>
    %c0_6 = arith.constant 0 : index
    %c0_7 = arith.constant 0 : index
    %7 = vector.load %arg5[%c0_6, %c0_7] : memref<16x8xf32, #tpu.memory_space<vmem>>, vector<16x8xf32>
    %c0_8 = arith.constant 0 : index
    %c0_9 = arith.constant 0 : index
    %8 = vector.load %arg6[%c0_8, %c0_9] : memref<16x8xf32, #tpu.memory_space<vmem>>, vector<16x8xf32>
    %c0_10 = arith.constant 0 : index
    %c0_11 = arith.constant 0 : index
    %9 = vector.load %arg9[%c0_10, %c0_11] : memref<8x16xf32, #tpu.memory_space<vmem>>, vector<8x16xf32>
    %c0_12 = arith.constant 0 : index
    %c0_13 = arith.constant 0 : index
    %10 = vector.load %arg10[%c0_12, %c0_13] : memref<8x16xf32, #tpu.memory_space<vmem>>, vector<8x16xf32>
    %c0_14 = arith.constant 0 : index
    %c0_15 = arith.constant 0 : index
    %11 = vector.load %arg3[%c0_14, %c0_15] : memref<8x16xf32, #tpu.memory_space<vmem>>, vector<8x16xf32>
    %12 = vector.shape_cast %11 : vector<8x16xf32> to vector<1x8x16xf32>
    %13 = vector.shape_cast %12 : vector<1x8x16xf32> to vector<1x8x16xf32>
    %14 = vector.broadcast %13 : vector<1x8x16xf32> to vector<4x8x16xf32>
    %c0_16 = arith.constant 0 : index
    %c0_17 = arith.constant 0 : index
    %15 = vector.load %arg4[%c0_16, %c0_17] : memref<8x16xf32, #tpu.memory_space<vmem>>, vector<8x16xf32>
    %16 = vector.shape_cast %15 : vector<8x16xf32> to vector<1x8x16xf32>
    %17 = vector.shape_cast %16 : vector<1x8x16xf32> to vector<1x8x16xf32>
    %18 = vector.broadcast %17 : vector<1x8x16xf32> to vector<4x8x16xf32>
    %c0_18 = arith.constant 0 : index
    %c0_19 = arith.constant 0 : index
    %19 = vector.load %arg7[%c0_18, %c0_19] : memref<16x8xf32, #tpu.memory_space<vmem>>, vector<16x8xf32>
    %20 = vector.shape_cast %19 : vector<16x8xf32> to vector<1x16x8xf32>
    %21 = vector.shape_cast %20 : vector<1x16x8xf32> to vector<1x16x8xf32>
    %22 = vector.broadcast %21 : vector<1x16x8xf32> to vector<4x16x8xf32>
    %c0_20 = arith.constant 0 : index
    %c0_21 = arith.constant 0 : index
    %23 = vector.load %arg8[%c0_20, %c0_21] : memref<16x8xf32, #tpu.memory_space<vmem>>, vector<16x8xf32>
    %24 = vector.shape_cast %23 : vector<16x8xf32> to vector<1x16x8xf32>
    %25 = vector.shape_cast %24 : vector<1x16x8xf32> to vector<1x16x8xf32>
    %26 = vector.broadcast %25 : vector<1x16x8xf32> to vector<4x16x8xf32>
    %cst = arith.constant dense<0.000000e+00> : vector<64x8xf32>
    %27 = tpu.matmul %1, %7, %cst {dimension_numbers = #tpu.dot_dimension_numbers<[1], [0], [0], [1], [0, 0, 1, 1], [], []>} : vector<64x16xf32>, vector<16x8xf32>, vector<64x8xf32> -> vector<64x8xf32>
    %28 = vector.shape_cast %27 : vector<64x8xf32> to vector<4x16x8xf32>
    %cst_22 = arith.constant dense<0.000000e+00> : vector<64x8xf32>
    %29 = tpu.matmul %1, %8, %cst_22 {dimension_numbers = #tpu.dot_dimension_numbers<[1], [0], [0], [1], [0, 0, 1, 1], [], []>} : vector<64x16xf32>, vector<16x8xf32>, vector<64x8xf32> -> vector<64x8xf32>
    %30 = vector.shape_cast %29 : vector<64x8xf32> to vector<4x16x8xf32>
    "tpu.trace_start"() <{level = 10 : i32, message = "nph,nhq->npq"}> : () -> ()
    %cst_23 = arith.constant dense<0.000000e+00> : vector<4x8x8xf32>
    %31 = tpu.matmul %14, %28, %cst_23 {dimension_numbers = #tpu.dot_dimension_numbers<[2], [1], [1], [2], [0, 0, 0, 1, 1, 2], [0], [0]>} : vector<4x8x16xf32>, vector<4x16x8xf32>, vector<4x8x8xf32> -> vector<4x8x8xf32>
    %cst_24 = arith.constant dense<0.000000e+00> : vector<4x8x8xf32>
    %32 = tpu.matmul %18, %30, %cst_24 {dimension_numbers = #tpu.dot_dimension_numbers<[2], [1], [1], [2], [0, 0, 0, 1, 1, 2], [0], [0]>} : vector<4x8x16xf32>, vector<4x16x8xf32>, vector<4x8x8xf32> -> vector<4x8x8xf32>
    "tpu.trace_stop"() : () -> ()
    %33 = arith.subf %31, %32 : vector<4x8x8xf32>
    "tpu.trace_start"() <{level = 10 : i32, message = "nph,nhq->npq"}> : () -> ()
    %cst_25 = arith.constant dense<0.000000e+00> : vector<4x8x8xf32>
    %34 = tpu.matmul %14, %30, %cst_25 {dimension_numbers = #tpu.dot_dimension_numbers<[2], [1], [1], [2], [0, 0, 0, 1, 1, 2], [0], [0]>} : vector<4x8x16xf32>, vector<4x16x8xf32>, vector<4x8x8xf32> -> vector<4x8x8xf32>
    %cst_26 = arith.constant dense<0.000000e+00> : vector<4x8x8xf32>
    %35 = tpu.matmul %18, %28, %cst_26 {dimension_numbers = #tpu.dot_dimension_numbers<[2], [1], [1], [2], [0, 0, 0, 1, 1, 2], [0], [0]>} : vector<4x8x16xf32>, vector<4x16x8xf32>, vector<4x8x8xf32> -> vector<4x8x8xf32>
    "tpu.trace_stop"() : () -> ()
    %36 = arith.addf %34, %35 : vector<4x8x8xf32>
    %37 = arith.mulf %6, %33 : vector<4x8x8xf32>
    %38 = vector.shape_cast %37 : vector<4x8x8xf32> to vector<32x8xf32>
    %39 = arith.mulf %6, %36 : vector<4x8x8xf32>
    %40 = vector.shape_cast %39 : vector<4x8x8xf32> to vector<32x8xf32>
    %cst_27 = arith.constant dense<0.000000e+00> : vector<32x16xf32>
    %41 = tpu.matmul %38, %9, %cst_27 {dimension_numbers = #tpu.dot_dimension_numbers<[1], [0], [0], [1], [0, 0, 1, 1], [], []>} : vector<32x8xf32>, vector<8x16xf32>, vector<32x16xf32> -> vector<32x16xf32>
    %cst_28 = arith.constant dense<0.000000e+00> : vector<32x16xf32>
    %42 = tpu.matmul %40, %10, %cst_28 {dimension_numbers = #tpu.dot_dimension_numbers<[1], [0], [0], [1], [0, 0, 1, 1], [], []>} : vector<32x8xf32>, vector<8x16xf32>, vector<32x16xf32> -> vector<32x16xf32>
    %43 = arith.subf %41, %42 : vector<32x16xf32>
    %44 = vector.shape_cast %43 : vector<32x16xf32> to vector<4x8x16xf32>
    %cst_29 = arith.constant dense<0.000000e+00> : vector<32x16xf32>
    %45 = tpu.matmul %38, %10, %cst_29 {dimension_numbers = #tpu.dot_dimension_numbers<[1], [0], [0], [1], [0, 0, 1, 1], [], []>} : vector<32x8xf32>, vector<8x16xf32>, vector<32x16xf32> -> vector<32x16xf32>
    %cst_30 = arith.constant dense<0.000000e+00> : vector<32x16xf32>
    %46 = tpu.matmul %40, %9, %cst_30 {dimension_numbers = #tpu.dot_dimension_numbers<[1], [0], [0], [1], [0, 0, 1, 1], [], []>} : vector<32x8xf32>, vector<8x16xf32>, vector<32x16xf32> -> vector<32x16xf32>
    %47 = arith.addf %45, %46 : vector<32x16xf32>
    %48 = vector.shape_cast %47 : vector<32x16xf32> to vector<4x8x16xf32>
    "tpu.trace_start"() <{level = 10 : i32, message = "nhp,npw->nhw"}> : () -> ()
    %cst_31 = arith.constant dense<0.000000e+00> : vector<4x16x16xf32>
    %49 = tpu.matmul %22, %44, %cst_31 {dimension_numbers = #tpu.dot_dimension_numbers<[2], [1], [1], [2], [0, 0, 0, 1, 1, 2], [0], [0]>} : vector<4x16x8xf32>, vector<4x8x16xf32>, vector<4x16x16xf32> -> vector<4x16x16xf32>
    %cst_32 = arith.constant dense<0.000000e+00> : vector<4x16x16xf32>
    %50 = tpu.matmul %26, %48, %cst_32 {dimension_numbers = #tpu.dot_dimension_numbers<[2], [1], [1], [2], [0, 0, 0, 1, 1, 2], [0], [0]>} : vector<4x16x8xf32>, vector<4x8x16xf32>, vector<4x16x16xf32> -> vector<4x16x16xf32>
    "tpu.trace_stop"() : () -> ()
    %51 = arith.subf %49, %50 : vector<4x16x16xf32>
    %52 = vector.shape_cast %51 : vector<4x16x16xf32> to vector<2x2x16x16xf32>
    %c0_33 = arith.constant 0 : index
    %c0_34 = arith.constant 0 : index
    %c0_35 = arith.constant 0 : index
    %c0_36 = arith.constant 0 : index
    %53 = vector.load %arg11[%c0_33, %c0_34, %c0_35, %c0_36] : memref<2x2x16x16xf32, #tpu.memory_space<vmem>>, vector<2x2x16x16xf32>
    tpu.vector_store %arg11[%c0_33, %c0_34, %c0_35, %c0_36], %52 {strides = array<i32>} : memref<2x2x16x16xf32, #tpu.memory_space<vmem>>, vector<2x2x16x16xf32>,
    return
  }
  func.func @transform_0(%arg0: i32) -> (i32, i32, i32, i32) {
    %c0_i32 = arith.constant 0 : i32
    %c0_i32_0 = arith.constant 0 : i32
    %c0_i32_1 = arith.constant 0 : i32
    %c0_i32_2 = arith.constant 0 : i32
    return %c0_i32, %arg0, %c0_i32_0, %c0_i32_1 : i32, i32, i32, i32
  }
  func.func @transform_1(%arg0: i32) -> (i32, i32, i32) {
    %c0_i32 = arith.constant 0 : i32
    %c0_i32_0 = arith.constant 0 : i32
    %c0_i32_1 = arith.constant 0 : i32
    return %arg0, %c0_i32, %c0_i32_0 : i32, i32, i32
  }
  func.func @transform_2(%arg0: i32) -> (i32, i32) {
    %c0_i32 = arith.constant 0 : i32
    %c0_i32_0 = arith.constant 0 : i32
    %c0_i32_1 = arith.constant 0 : i32
    return %c0_i32, %c0_i32_0 : i32, i32
  }
  func.func @transform_3(%arg0: i32) -> (i32, i32) {
    %c0_i32 = arith.constant 0 : i32
    %c0_i32_0 = arith.constant 0 : i32
    %c0_i32_1 = arith.constant 0 : i32
    return %c0_i32, %c0_i32_0 : i32, i32
  }
  func.func @transform_4(%arg0: i32) -> (i32, i32) {
    %c0_i32 = arith.constant 0 : i32
    %c0_i32_0 = arith.constant 0 : i32
    %c0_i32_1 = arith.constant 0 : i32
    return %c0_i32, %c0_i32_0 : i32, i32
  }
  func.func @transform_5(%arg0: i32) -> (i32, i32) {
    %c0_i32 = arith.constant 0 : i32
    %c0_i32_0 = arith.constant 0 : i32
    %c0_i32_1 = arith.constant 0 : i32
    return %c0_i32, %c0_i32_0 : i32, i32
  }
  func.func @transform_6(%arg0: i32) -> (i32, i32) {
    %c0_i32 = arith.constant 0 : i32
    %c0_i32_0 = arith.constant 0 : i32
    %c0_i32_1 = arith.constant 0 : i32
    return %c0_i32, %c0_i32_0 : i32, i32
  }
  func.func @transform_7(%arg0: i32) -> (i32, i32) {
    %c0_i32 = arith.constant 0 : i32
    %c0_i32_0 = arith.constant 0 : i32
    %c0_i32_1 = arith.constant 0 : i32
    return %c0_i32, %c0_i32_0 : i32, i32
  }
  func.func @transform_8(%arg0: i32) -> (i32, i32) {
    %c0_i32 = arith.constant 0 : i32
    %c0_i32_0 = arith.constant 0 : i32
    %c0_i32_1 = arith.constant 0 : i32
    return %c0_i32, %c0_i32_0 : i32, i32
  }
  func.func @transform_9(%arg0: i32) -> (i32, i32) {
    %c0_i32 = arith.constant 0 : i32
    %c0_i32_0 = arith.constant 0 : i32
    %c0_i32_1 = arith.constant 0 : i32
    return %c0_i32, %c0_i32_0 : i32, i32
  }
  func.func @transform_10(%arg0: i32) -> (i32, i32, i32, i32) {
    %c0_i32 = arith.constant 0 : i32
    %c0_i32_0 = arith.constant 0 : i32
    %c0_i32_1 = arith.constant 0 : i32
    %c0_i32_2 = arith.constant 0 : i32
    return %c0_i32, %arg0, %c0_i32_0, %c0_i32_1 : i32, i32, i32, i32
  }
}

</mosaic_0001>

<llo_original>
// kernel: fourier_layer_2d.1
$region0: #{fourier_layer_2d.1}
  #allocation0 [shape = 'u32[]', space=smem, size = 0x4, offset = 0x4, fixed_abs, tag = 'smem constant byte address 0x4 - core index']
  #allocation1 [shape = 'u32[144,128]{1,0:T(1,128)}', space=vmem, size = 0x12000, scoped, tag = 'internal scratch']
  #allocation17 [shape = 's32[]', space=sflag, size = 0x4, offset = 0, fixed_abs, tag = 'sflag constant byte address 0x0 - dummy sync flag']
  #allocation19 [shape = 's32[]', space=sflag, size = 0x4, offset = 0, fixed_abs, tag = 'sflag constant byte address 0x0 - dummy sync flag']
  %s0 = inlined_call_operand.hbm [shape: f32[2,4,16,16], index: 0, kind: input, shape index: {}]
  %s1 = inlined_call_operand.hbm [shape: f32[4,8,8], index: 1, kind: input, shape index: {}]
  %s2 = inlined_call_operand.hbm [shape: f32[8,16], index: 2, kind: input, shape index: {}]
  %s3 = inlined_call_operand.hbm [shape: f32[8,16], index: 3, kind: input, shape index: {}]
  %s4 = inlined_call_operand.hbm [shape: f32[16,8], index: 4, kind: input, shape index: {}]
  %s5 = inlined_call_operand.hbm [shape: f32[16,8], index: 5, kind: input, shape index: {}]
  %s6 = inlined_call_operand.vmem [shape: f32[16,8], index: 6, kind: input, shape index: {}]
  %s7 = inlined_call_operand.vmem [shape: f32[16,8], index: 7, kind: input, shape index: {}]
  %s8 = inlined_call_operand.hbm [shape: f32[8,16], index: 8, kind: input, shape index: {}]
  %s9 = inlined_call_operand.hbm [shape: f32[8,16], index: 9, kind: input, shape index: {}]
  %s10 = inlined_call_operand.hbm [shape: f32[2,4,16,16], index: 10, kind: output, shape index: {}]
  %s11 = sld [smem:[#allocation0]]
  $region105: #{fourier_layer_2d.1} parent=0
    _
  %s13 = ssub.s32 1, %s11
  %s14 = scalar_select 0, %s13, %s11
  $region1: #{fourier_layer_2d.1} parent=0
    #allocation2 [shape = 'u8[65536]{0}', space=vmem, size = 0x10000, scoped, tag = 'input window, operand 0']
    #allocation3 [shape = 's32[2]{0}', space=sflag, size = 0x8, scoped, tag = 'scoped memory for fourier_layer_2d.1']
    #allocation4 [shape = 's32[2]{0}', space=sflag, size = 0x8, scoped, tag = 'scoped memory for fourier_layer_2d.1']
    #allocation5 [shape = 'u8[16384]{0}', space=vmem, size = 0x4000, scoped, tag = 'input window, operand 1']
    #allocation6 [shape = 's32[2]{0}', space=sflag, size = 0x8, scoped, tag = 'scoped memory for fourier_layer_2d.1']
    #allocation7 [shape = 'u8[4096]{0}', space=vmem, size = 0x1000, scoped, tag = 'input window, operand 2, single buffered']
    #allocation8 [shape = 'u8[4096]{0}', space=vmem, size = 0x1000, scoped, tag = 'input window, operand 3, single buffered']
    #allocation9 [shape = 's32[1]{0}', space=sflag, size = 0x4, scoped, tag = 'scoped memory for fourier_layer_2d.1']
    #allocation10 [shape = 'u8[8192]{0}', space=vmem, size = 0x2000, scoped, tag = 'input window, operand 4, single buffered']
    #allocation11 [shape = 'u8[8192]{0}', space=vmem, size = 0x2000, scoped, tag = 'input window, operand 5, single buffered']
    #allocation12 [shape = 's32[1]{0}', space=sflag, size = 0x4, scoped, tag = 'scoped memory for fourier_layer_2d.1']
    #allocation13 [shape = 'u8[4096]{0}', space=vmem, size = 0x1000, scoped, tag = 'input window, operand 8, single buffered']
    #allocation14 [shape = 'u8[4096]{0}', space=vmem, size = 0x1000, scoped, tag = 'input window, operand 9, single buffered']
    #allocation15 [shape = 's32[1]{0}', space=sflag, size = 0x4, scoped, tag = 'scoped memory for fourier_layer_2d.1']
    #allocation16 [shape = 'u8[65536]{0}', space=vmem, size = 0x10000, scoped, tag = 'output window, operand 0']
    %15 = vsyncpa [#allocation3], 0
    %s16 = scalar_lea.sflag [#allocation3], 1
    %17 = vsyncpa %s16, 0
    %18 = vsyncpa [#allocation6], 0
    %s19 = scalar_lea.sflag [#allocation6], 1
    %20 = vsyncpa %s19, 0
    %21 = vsyncpa [#allocation9], 0
    %22 = vsyncpa [#allocation12], 0
    %23 = vsyncpa [#allocation15], 0
    %24 = vsyncpa [#allocation4], 0
    %s25 = scalar_lea.sflag [#allocation4], 1
    %26 = vsyncpa %s25, 0
    loop: start=0, step=1, limit=4
    $region2: #{fourier_layer_2d.1} parent=1 // loop_pre_header
      _
    $region3: #{fourier_layer_2d.1} parent=1 // loop_header
      %s28 = sphi 0, %s32
      %p29 = scmp.ge.s32.totalorder %s28, 4
      %s38 = sphi 0, %s40
      %s41 = sphi 0, %s38
      %s42 = sphi 0, %s41
      %s58 = sphi 0, %s42
      %s64 = sphi 0, %s66
      %s67 = sphi 0, %s64
      %s68 = sphi 0, %s67
      %s84 = sphi 0, %s68
      %s88 = sphi 0, %s88
      %s90 = sphi 0, %s88
      %s91 = sphi 0, %s90
      %s105 = sphi 0, %s91
      %s109 = sphi 0, %s109
      %s111 = sphi 0, %s109
      %s112 = sphi 0, %s111
      %s126 = sphi 0, %s112
      %s130 = sphi 0, %s130
      %s132 = sphi 0, %s130
      %s133 = sphi 0, %s132
      %s147 = sphi 0, %s133
      %s151 = sphi 0, %s151
      %s153 = sphi 0, %s151
      %s154 = sphi 0, %s153
      %s168 = sphi 0, %s154
      %s172 = sphi 0, %s172
      %s174 = sphi 0, %s172
      %s175 = sphi 0, %s174
      %s189 = sphi 0, %s175
      %s193 = sphi 0, %s193
      %s195 = sphi 0, %s193
      %s196 = sphi 0, %s195
      %s210 = sphi 0, %s196
      %s214 = sphi 0, %s214
      %s216 = sphi 0, %s214
      %s217 = sphi 0, %s216
      %s231 = sphi 0, %s217
      %s235 = sphi 0, %s235
      %s237 = sphi 0, %s235
      %s238 = sphi 0, %s237
      %s252 = sphi 0, %s238
      %s258 = sphi 0, %s260
      %s261 = sphi 0, %s258
      %s262 = sphi 0, %s261
      %s278 = sphi 0, %s262
    $region4: #{fourier_layer_2d.1} parent=1 // loop_header_branch
      %31 = sbr.rel (%p29) target = $region8
    $region5: #{fourier_layer_2d.1} parent=1 // loop_body
      %s33 = ssub.s32 %s28, 1
      %s34 = ssub.s32 %s28, 2
      %s35 = sadd.s32 %s28, 1
      %s36 = ssub.s32 %s28, %s35
      %p37 = scmp.eq.s32.totalorder %s36, 0
      %s39 = sadd.s32 %s38, 1
      %s40 = scalar_select %p37, %s38, %s39
      %p43 = pneg %p37
      %p44 = scmp.eq.s32.totalorder %s28, 1
      %p45 = por %p43, %p44
      %p46 = scmp.ne.s32.totalorder %s38, %s41
      %p47 = scmp.eq.s32.totalorder %s28, 0
      %p48 = por %p46, %p47
      %p49 = scmp.ne.s32.totalorder %s38, %s41
      %p50 = scmp.eq.s32.totalorder %s33, 1
      %p51 = por %p49, %p50
      %p52 = scmp.ne.s32.totalorder %s41, %s42
      %p53 = scmp.eq.s32.totalorder %s33, 0
      %p54 = por %p52, %p53
      %p55 = scmp.ne.s32.totalorder %s41, %s42
      %p56 = scmp.eq.s32.totalorder %s34, 1
      %p57 = por %p55, %p56
      %p59 = scmp.ne.s32.totalorder %s42, %s58
      %p60 = scmp.eq.s32.totalorder %s34, 0
      %p61 = por %p59, %p60
      %s62 = ssub.s32 %s28, %s35
      %p63 = scmp.eq.s32.totalorder %s62, 0
      %s65 = sadd.s32 %s64, 1
      %s66 = scalar_select %p63, %s64, %s65
      %p69 = pneg %p63
      %p70 = scmp.eq.s32.totalorder %s28, 1
      %p71 = por %p69, %p70
      %p72 = scmp.ne.s32.totalorder %s64, %s67
      %p73 = scmp.eq.s32.totalorder %s28, 0
      %p74 = por %p72, %p73
      %p75 = scmp.ne.s32.totalorder %s64, %s67
      %p76 = scmp.eq.s32.totalorder %s33, 1
      %p77 = por %p75, %p76
      %p78 = scmp.ne.s32.totalorder %s67, %s68
      %p79 = scmp.eq.s32.totalorder %s33, 0
      %p80 = por %p78, %p79
      %p81 = scmp.ne.s32.totalorder %s67, %s68
      %p82 = scmp.eq.s32.totalorder %s34, 1
      %p83 = por %p81, %p82
      %p85 = scmp.ne.s32.totalorder %s68, %s84
      %p86 = scmp.eq.s32.totalorder %s34, 0
      %p87 = por %p85, %p86
      %s89 = sadd.s32 %s88, 1
      %p92 = scmp.eq.s32.totalorder %s28, 1
      %p93 = scmp.ne.s32.totalorder %s88, %s90
      %p94 = scmp.eq.s32.totalorder %s28, 0
      %p95 = por %p93, %p94
      %p96 = scmp.ne.s32.totalorder %s88, %s90
      %p97 = scmp.eq.s32.totalorder %s33, 1
      %p98 = por %p96, %p97
      %p99 = scmp.ne.s32.totalorder %s90, %s91
      %p100 = scmp.eq.s32.totalorder %s33, 0
      %p101 = por %p99, %p100
      %p102 = scmp.ne.s32.totalorder %s90, %s91
      %p103 = scmp.eq.s32.totalorder %s34, 1
      %p104 = por %p102, %p103
      %p106 = scmp.ne.s32.totalorder %s91, %s105
      %p107 = scmp.eq.s32.totalorder %s34, 0
      %p108 = por %p106, %p107
      %s110 = sadd.s32 %s109, 1
      %p113 = scmp.eq.s32.totalorder %s28, 1
      %p114 = scmp.ne.s32.totalorder %s109, %s111
      %p115 = scmp.eq.s32.totalorder %s28, 0
      %p116 = por %p114, %p115
      %p117 = scmp.ne.s32.totalorder %s109, %s111
      %p118 = scmp.eq.s32.totalorder %s33, 1
      %p119 = por %p117, %p118
      %p120 = scmp.ne.s32.totalorder %s111, %s112
      %p121 = scmp.eq.s32.totalorder %s33, 0
      %p122 = por %p120, %p121
      %p123 = scmp.ne.s32.totalorder %s111, %s112
      %p124 = scmp.eq.s32.totalorder %s34, 1
      %p125 = por %p123, %p124
      %p127 = scmp.ne.s32.totalorder %s112, %s126
      %p128 = scmp.eq.s32.totalorder %s34, 0
      %p129 = por %p127, %p128
      %s131 = sadd.s32 %s130, 1
      %p134 = scmp.eq.s32.totalorder %s28, 1
      %p135 = scmp.ne.s32.totalorder %s130, %s132
      %p136 = scmp.eq.s32.totalorder %s28, 0
      %p137 = por %p135, %p136
      %p138 = scmp.ne.s32.totalorder %s130, %s132
      %p139 = scmp.eq.s32.totalorder %s33, 1
      %p140 = por %p138, %p139
      %p141 = scmp.ne.s32.totalorder %s132, %s133
      %p142 = scmp.eq.s32.totalorder %s33, 0
      %p143 = por %p141, %p142
      %p144 = scmp.ne.s32.totalorder %s132, %s133
      %p145 = scmp.eq.s32.totalorder %s34, 1
      %p146 = por %p144, %p145
      %p148 = scmp.ne.s32.totalorder %s133, %s147
      %p149 = scmp.eq.s32.totalorder %s34, 0
      %p150 = por %p148, %p149
      %s152 = sadd.s32 %s151, 1
      %p155 = scmp.eq.s32.totalorder %s28, 1
      %p156 = scmp.ne.s32.totalorder %s151, %s153
      %p157 = scmp.eq.s32.totalorder %s28, 0
      %p158 = por %p156, %p157
      %p159 = scmp.ne.s32.totalorder %s151, %s153
      %p160 = scmp.eq.s32.totalorder %s33, 1
      %p161 = por %p159, %p160
      %p162 = scmp.ne.s32.totalorder %s153, %s154
      %p163 = scmp.eq.s32.totalorder %s33, 0
      %p164 = por %p162, %p163
      %p165 = scmp.ne.s32.totalorder %s153, %s154
      %p166 = scmp.eq.s32.totalorder %s34, 1
      %p167 = por %p165, %p166
      %p169 = scmp.ne.s32.totalorder %s154, %s168
      %p170 = scmp.eq.s32.totalorder %s34, 0
      %p171 = por %p169, %p170
      %s173 = sadd.s32 %s172, 1
      %p176 = scmp.eq.s32.totalorder %s28, 1
      %p177 = scmp.ne.s32.totalorder %s172, %s174
      %p178 = scmp.eq.s32.totalorder %s28, 0
      %p179 = por %p177, %p178
      %p180 = scmp.ne.s32.totalorder %s172, %s174
      %p181 = scmp.eq.s32.totalorder %s33, 1
      %p182 = por %p180, %p181
      %p183 = scmp.ne.s32.totalorder %s174, %s175
      %p184 = scmp.eq.s32.totalorder %s33, 0
      %p185 = por %p183, %p184
      %p186 = scmp.ne.s32.totalorder %s174, %s175
      %p187 = scmp.eq.s32.totalorder %s34, 1
      %p188 = por %p186, %p187
      %p190 = scmp.ne.s32.totalorder %s175, %s189
      %p191 = scmp.eq.s32.totalorder %s34, 0
      %p192 = por %p190, %p191
      %s194 = sadd.s32 %s193, 1
      %p197 = scmp.eq.s32.totalorder %s28, 1
      %p198 = scmp.ne.s32.totalorder %s193, %s195
      %p199 = scmp.eq.s32.totalorder %s28, 0
      %p200 = por %p198, %p199
      %p201 = scmp.ne.s32.totalorder %s193, %s195
      %p202 = scmp.eq.s32.totalorder %s33, 1
      %p203 = por %p201, %p202
      %p204 = scmp.ne.s32.totalorder %s195, %s196
      %p205 = scmp.eq.s32.totalorder %s33, 0
      %p206 = por %p204, %p205
      %p207 = scmp.ne.s32.totalorder %s195, %s196
      %p208 = scmp.eq.s32.totalorder %s34, 1
      %p209 = por %p207, %p208
      %p211 = scmp.ne.s32.totalorder %s196, %s210
      %p212 = scmp.eq.s32.totalorder %s34, 0
      %p213 = por %p211, %p212
      %s215 = sadd.s32 %s214, 1
      %p218 = scmp.eq.s32.totalorder %s28, 1
      %p219 = scmp.ne.s32.totalorder %s214, %s216
      %p220 = scmp.eq.s32.totalorder %s28, 0
      %p221 = por %p219, %p220
      %p222 = scmp.ne.s32.totalorder %s214, %s216
      %p223 = scmp.eq.s32.totalorder %s33, 1
      %p224 = por %p222, %p223
      %p225 = scmp.ne.s32.totalorder %s216, %s217
      %p226 = scmp.eq.s32.totalorder %s33, 0
      %p227 = por %p225, %p226
      %p228 = scmp.ne.s32.totalorder %s216, %s217
      %p229 = scmp.eq.s32.totalorder %s34, 1
      %p230 = por %p228, %p229
      %p232 = scmp.ne.s32.totalorder %s217, %s231
      %p233 = scmp.eq.s32.totalorder %s34, 0
      %p234 = por %p232, %p233
      %s236 = sadd.s32 %s235, 1
      %p239 = scmp.eq.s32.totalorder %s28, 1
      %p240 = scmp.ne.s32.totalorder %s235, %s237
      %p241 = scmp.eq.s32.totalorder %s28, 0
      %p242 = por %p240, %p241
      %p243 = scmp.ne.s32.totalorder %s235, %s237
      %p244 = scmp.eq.s32.totalorder %s33, 1
      %p245 = por %p243, %p244
      %p246 = scmp.ne.s32.totalorder %s237, %s238
      %p247 = scmp.eq.s32.totalorder %s33, 0
      %p248 = por %p246, %p247
      %p249 = scmp.ne.s32.totalorder %s237, %s238
      %p250 = scmp.eq.s32.totalorder %s34, 1
      %p251 = por %p249, %p250
      %p253 = scmp.ne.s32.totalorder %s238, %s252
      %p254 = scmp.eq.s32.totalorder %s34, 0
      %p255 = por %p253, %p254
      %s256 = ssub.s32 %s28, %s35
      %p257 = scmp.eq.s32.totalorder %s256, 0
      %s259 = sadd.s32 %s258, 1
      %s260 = scalar_select %p257, %s258, %s259
      %p263 = pneg %p257
      %p264 = scmp.eq.s32.totalorder %s28, 1
      %p265 = por %p263, %p264
      %p266 = scmp.ne.s32.totalorder %s258, %s261
      %p267 = scmp.eq.s32.totalorder %s28, 0
      %p268 = por %p266, %p267
      %p269 = scmp.ne.s32.totalorder %s258, %s261
      %p270 = scmp.eq.s32.totalorder %s33, 1
      %p271 = por %p269, %p270
      %p272 = scmp.ne.s32.totalorder %s261, %s262
      %p273 = scmp.eq.s32.totalorder %s33, 0
      %p274 = por %p272, %p273
      %p275 = scmp.ne.s32.totalorder %s261, %s262
      %p276 = scmp.eq.s32.totalorder %s34, 1
      %p277 = por %p275, %p276
      %p279 = scmp.ne.s32.totalorder %s262, %s278
      %p280 = scmp.eq.s32.totalorder %s34, 0
      %p281 = por %p279, %p280
      %p282 = scmp.le.s32.totalorder 1, %s28
      %p283 = scmp.lt.s32.totalorder %s28, 3
      %p284 = pnand %p282, %p283
      %p285 = pneg %p284
      // Predicated region
      $region9: #{fourier_layer_2d.1} parent=5 // pred_check
        _
      $region10: #{fourier_layer_2d.1} parent=5 // pred_check_branch
        %287 = sbr.rel (%p284) target = $region12
      $region11: #{fourier_layer_2d.1} parent=5 // pred_region
        %s288 = ssub.s32 %s28, 1
        // Predicated region
        $region13: #{fourier_layer_2d.1} parent=11 // pred_check
          %p289 = pneg %p101
        $region14: #{fourier_layer_2d.1} parent=11 // pred_check_branch
          %291 = sbr.rel (%p289) target = $region16
        $region15: #{fourier_layer_2d.1} parent=11 // pred_region
          %s293 = ssub.s32 128, 128
          %294 = vsyncadd [#allocation6], %s293
          %s296 = sshll.u32 [#allocation7], 4
          %s297 = int_to_ptr.vmem [resolvable:$true] %s296
          %299 = dma.hbm_to_vmem [thread:$0]  %s2, 128, %s297, [#allocation6]
        $region16: #{fourier_layer_2d.1} parent=11 // pred_fallthru
          _
        // Predicated region
        $region17: #{fourier_layer_2d.1} parent=11 // pred_check
          %p300 = pneg %p122
        $region18: #{fourier_layer_2d.1} parent=11 // pred_check_branch
          %302 = sbr.rel (%p300) target = $region20
        $region19: #{fourier_layer_2d.1} parent=11 // pred_region
          %s304 = ssub.s32 128, 128
          %305 = vsyncadd [#allocation9], %s304
          %s307 = sshll.u32 [#allocation8], 4
          %s308 = int_to_ptr.vmem [resolvable:$true] %s307
          %310 = dma.hbm_to_vmem [thread:$0]  %s3, 128, %s308, [#allocation9]
        $region20: #{fourier_layer_2d.1} parent=11 // pred_fallthru
          _
        // Predicated region
        $region21: #{fourier_layer_2d.1} parent=11 // pred_check
          %p311 = pneg %p143
        $region22: #{fourier_layer_2d.1} parent=11 // pred_check_branch
          %313 = sbr.rel (%p311) target = $region24
        $region23: #{fourier_layer_2d.1} parent=11 // pred_region
          %s315 = ssub.s32 256, 256
          %316 = vsyncadd [#allocation9], %s315
          %s317 = sshll.u32 [#allocation10], 4
          %s318 = int_to_ptr.vmem [resolvable:$true] %s317
          %323 = dma.hbm_to_vmem [thread:$0]  %s4, 256, %s318, [#allocation9], 128, 128, 8
        $region24: #{fourier_layer_2d.1} parent=11 // pred_fallthru
          _
        // Predicated region
        $region25: #{fourier_layer_2d.1} parent=11 // pred_check
          %p324 = pneg %p164
        $region26: #{fourier_layer_2d.1} parent=11 // pred_check_branch
          %326 = sbr.rel (%p324) target = $region28
        $region27: #{fourier_layer_2d.1} parent=11 // pred_region
          %s328 = ssub.s32 256, 256
          %329 = vsyncadd [#allocation12], %s328
          %s330 = sshll.u32 [#allocation11], 4
          %s331 = int_to_ptr.vmem [resolvable:$true] %s330
          %336 = dma.hbm_to_vmem [thread:$0]  %s5, 256, %s331, [#allocation12], 128, 128, 8
        $region28: #{fourier_layer_2d.1} parent=11 // pred_fallthru
          _
        // Predicated region
        $region29: #{fourier_layer_2d.1} parent=11 // pred_check
          %p337 = pneg %p185
        $region30: #{fourier_layer_2d.1} parent=11 // pred_check_branch
          %339 = sbr.rel (%p337) target = $region32
        $region31: #{fourier_layer_2d.1} parent=11 // pred_region
          _
        $region32: #{fourier_layer_2d.1} parent=11 // pred_fallthru
          _
        // Predicated region
        $region33: #{fourier_layer_2d.1} parent=11 // pred_check
          %p340 = pneg %p206
        $region34: #{fourier_layer_2d.1} parent=11 // pred_check_branch
          %342 = sbr.rel (%p340) target = $region36
        $region35: #{fourier_layer_2d.1} parent=11 // pred_region
          _
        $region36: #{fourier_layer_2d.1} parent=11 // pred_fallthru
          _
        // Predicated region
        $region37: #{fourier_layer_2d.1} parent=11 // pred_check
          %p343 = pneg %p227
        $region38: #{fourier_layer_2d.1} parent=11 // pred_check_branch
          %345 = sbr.rel (%p343) target = $region40
        $region39: #{fourier_layer_2d.1} parent=11 // pred_region
          %s347 = ssub.s32 128, 128
          %348 = vsyncadd [#allocation12], %s347
          %s350 = sshll.u32 [#allocation13], 4
          %s351 = int_to_ptr.vmem [resolvable:$true] %s350
          %353 = dma.hbm_to_vmem [thread:$0]  %s8, 128, %s351, [#allocation12]
        $region40: #{fourier_layer_2d.1} parent=11 // pred_fallthru
          _
        // Predicated region
        $region41: #{fourier_layer_2d.1} parent=11 // pred_check
          %p354 = pneg %p248
        $region42: #{fourier_layer_2d.1} parent=11 // pred_check_branch
          %356 = sbr.rel (%p354) target = $region44
        $region43: #{fourier_layer_2d.1} parent=11 // pred_region
          %s358 = ssub.s32 128, 128
          %359 = vsyncadd [#allocation15], %s358
          %s361 = sshll.u32 [#allocation14], 4
          %s362 = int_to_ptr.vmem [resolvable:$true] %s361
          %364 = dma.hbm_to_vmem [thread:$0]  %s9, 128, %s362, [#allocation15]
        $region44: #{fourier_layer_2d.1} parent=11 // pred_fallthru
          _
      $region12: #{fourier_layer_2d.1} parent=5 // pred_fallthru
        _
      %p365 = scmp.lt.s32.totalorder %s28, 2
      // Predicated region
      $region45: #{fourier_layer_2d.1} parent=5 // pred_check
        %p366 = pneg %p365
      $region46: #{fourier_layer_2d.1} parent=5 // pred_check_branch
        %368 = sbr.rel (%p366) target = $region48
      $region47: #{fourier_layer_2d.1} parent=5 // pred_region
        // Predicated region
        $region49: #{fourier_layer_2d.1} parent=47 // pred_check
          %p369 = pneg %p48
        $region50: #{fourier_layer_2d.1} parent=47 // pred_check_branch
          %371 = sbr.rel (%p369) target = $region52
        $region51: #{fourier_layer_2d.1} parent=47 // pred_region
          #allocation18 [shape = 'u32[6]{0}', space=smem, size = 0x18, scoped, tag = 'DMA stride descriptor']
          %s372 = sand.u32 %s38, 1
          %s373 = scalar_lea.sflag [#allocation3], %s372
          %s374 = sand.u32 %s38, 1
          %s375 = smul.addr %s374, 64
          %s376 = scalar_lea.vmem [#allocation2], %s375
          %s377 = smul.u32 2, %s28
          %s379 = ssub.s32 1024, 1024
          %380 = vsyncadd %s373, %s379
          %s381 = smul.addr %s377, 2
          %s382 = smul.addr %s381, 128
          %s383 = scalar_lea.hbm %s0, %s382
          %s385 = sshll.u32 1, 14
          %s386 = sxor.u32 4294967295, %s385
          %s388 = sld [smem:[#allocation0]]
          %s389 = sadd.s32 2, %s388
          %s391 = sshll.u32 7, 26
          %s392 = sxor.u32 4294967295, %s391
          %s393 = sand.u32 0, %s392
          %s394 = sshll.u32 %s389, 26
          %s395 = sor.u32 %s393, %s394
          %s396 = sshll.u32 %s376, 4
          %s397 = int_to_ptr.vmem [resolvable:$true] %s396
          %403 = sst [smem:[#allocation18]] 1024
          %s404 = scalar_lea.smem [#allocation18], 1
          %405 = sst [smem:[%s404]] 512
          %s406 = scalar_lea.smem [#allocation18], 2
          %407 = sst [smem:[%s406]] 4
          %s408 = scalar_lea.smem [#allocation18], 3
          %409 = sst [smem:[%s408]] 128
          %s410 = scalar_lea.smem [#allocation18], 4
          %411 = sst [smem:[%s410]] 128
          %s412 = scalar_lea.smem [#allocation18], 5
          %413 = sst [smem:[%s412]] 8
          %415 = dma.general %s383, 1024, %s397, %s373, [#allocation17], [#allocation18], %s395, 0
        $region52: #{fourier_layer_2d.1} parent=47 // pred_fallthru
          _
        // Predicated region
        $region53: #{fourier_layer_2d.1} parent=47 // pred_check
          %p416 = pneg %p74
        $region54: #{fourier_layer_2d.1} parent=47 // pred_check_branch
          %418 = sbr.rel (%p416) target = $region56
        $region55: #{fourier_layer_2d.1} parent=47 // pred_region
          %s419 = sand.u32 %s28, 1
          %s420 = scalar_lea.sflag [#allocation6], %s419
          %s421 = sand.u32 %s64, 1
          %s422 = smul.addr %s421, 16
          %s423 = scalar_lea.vmem [#allocation5], %s422
          %s424 = smul.u32 2, %s28
          %s426 = ssub.s32 256, 256
          %427 = vsyncadd %s420, %s426
          %s428 = smul.addr %s424, 128
          %s429 = scalar_lea.hbm %s1, %s428
          %s430 = sshll.u32 %s423, 4
          %s431 = int_to_ptr.vmem [resolvable:$true] %s430
          %436 = dma.hbm_to_vmem [thread:$0]  %s429, 256, %s431, %s420, 128, 128, 8
        $region56: #{fourier_layer_2d.1} parent=47 // pred_fallthru
          _
      $region48: #{fourier_layer_2d.1} parent=5 // pred_fallthru
        _
      %p437 = scmp.le.s32.totalorder 1, %s28
      %p438 = scmp.lt.s32.totalorder %s28, 3
      %p439 = pnand %p437, %p438
      %p440 = pneg %p439
      // Predicated region
      $region57: #{fourier_layer_2d.1} parent=5 // pred_check
        _
      $region58: #{fourier_layer_2d.1} parent=5 // pred_check_branch
        %442 = sbr.rel (%p439) target = $region60
      $region59: #{fourier_layer_2d.1} parent=5 // pred_region
        %s443 = ssub.s32 %s28, 1
        %s444 = sand.u32 %s41, 1
        %s445 = scalar_lea.sflag [#allocation3], %s444
        %s446 = sand.u32 %s41, 1
        %s447 = smul.addr %s446, 64
        %s448 = scalar_lea.vmem [#allocation2], %s447
        // Predicated region
        $region61: #{fourier_layer_2d.1} parent=59 // pred_check
          %p449 = pneg %p54
        $region62: #{fourier_layer_2d.1} parent=59 // pred_check_branch
          %451 = sbr.rel (%p449) target = $region64
        $region63: #{fourier_layer_2d.1} parent=59 // pred_region
          %452 = dma.done %s445, 1024
        $region64: #{fourier_layer_2d.1} parent=59 // pred_fallthru
          _
        %s453 = sand.u32 %s33, 1
        %s454 = scalar_lea.sflag [#allocation6], %s453
        %s455 = sand.u32 %s67, 1
        %s456 = smul.addr %s455, 16
        %s457 = scalar_lea.vmem [#allocation5], %s456
        // Predicated region
        $region65: #{fourier_layer_2d.1} parent=59 // pred_check
          %p458 = pneg %p80
        $region66: #{fourier_layer_2d.1} parent=59 // pred_check_branch
          %460 = sbr.rel (%p458) target = $region68
        $region67: #{fourier_layer_2d.1} parent=59 // pred_region
          %461 = dma.done %s454, 256
        $region68: #{fourier_layer_2d.1} parent=59 // pred_fallthru
          _
        // Predicated region
        $region69: #{fourier_layer_2d.1} parent=59 // pred_check
          %p462 = pneg %p101
        $region70: #{fourier_layer_2d.1} parent=59 // pred_check_branch
          %464 = sbr.rel (%p462) target = $region72
        $region71: #{fourier_layer_2d.1} parent=59 // pred_region
          %465 = dma.done [#allocation6], 128
        $region72: #{fourier_layer_2d.1} parent=59 // pred_fallthru
          _
        // Predicated region
        $region73: #{fourier_layer_2d.1} parent=59 // pred_check
          %p466 = pneg %p122
        $region74: #{fourier_layer_2d.1} parent=59 // pred_check_branch
          %468 = sbr.rel (%p466) target = $region76
        $region75: #{fourier_layer_2d.1} parent=59 // pred_region
          %469 = dma.done [#allocation9], 128
        $region76: #{fourier_layer_2d.1} parent=59 // pred_fallthru
          _
        // Predicated region
        $region77: #{fourier_layer_2d.1} parent=59 // pred_check
          %p470 = pneg %p143
        $region78: #{fourier_layer_2d.1} parent=59 // pred_check_branch
          %472 = sbr.rel (%p470) target = $region80
        $region79: #{fourier_layer_2d.1} parent=59 // pred_region
          %473 = dma.done [#allocation9], 256
        $region80: #{fourier_layer_2d.1} parent=59 // pred_fallthru
          _
        // Predicated region
        $region81: #{fourier_layer_2d.1} parent=59 // pred_check
          %p474 = pneg %p164
        $region82: #{fourier_layer_2d.1} parent=59 // pred_check_branch
          %476 = sbr.rel (%p474) target = $region84
        $region83: #{fourier_layer_2d.1} parent=59 // pred_region
          %477 = dma.done [#allocation12], 256
        $region84: #{fourier_layer_2d.1} parent=59 // pred_fallthru
          _
        // Predicated region
        $region85: #{fourier_layer_2d.1} parent=59 // pred_check
          %p478 = pneg %p227
        $region86: #{fourier_layer_2d.1} parent=59 // pred_check_branch
          %480 = sbr.rel (%p478) target = $region88
        $region87: #{fourier_layer_2d.1} parent=59 // pred_region
          %481 = dma.done [#allocation12], 128
        $region88: #{fourier_layer_2d.1} parent=59 // pred_fallthru
          _
        // Predicated region
        $region89: #{fourier_layer_2d.1} parent=59 // pred_check
          %p482 = pneg %p248
        $region90: #{fourier_layer_2d.1} parent=59 // pred_check_branch
          %484 = sbr.rel (%p482) target = $region92
        $region91: #{fourier_layer_2d.1} parent=59 // pred_region
          %485 = dma.done [#allocation15], 128
        $region92: #{fourier_layer_2d.1} parent=59 // pred_fallthru
          _
        %s486 = sand.u32 %s41, 1
        %s487 = scalar_lea.sflag [#allocation3], %s486
        %s488 = sand.u32 %s41, 1
        %s489 = smul.addr %s488, 64
        %s490 = scalar_lea.vmem [#allocation2], %s489
        %p491 = pneg %p54
        %p492 = pneg %p51
        %s493 = sand.u32 %s33, 1
        %s494 = scalar_lea.sflag [#allocation6], %s493
        %s495 = sand.u32 %s67, 1
        %s496 = smul.addr %s495, 16
        %s497 = scalar_lea.vmem [#allocation5], %s496
        %p498 = pneg %p80
        %p499 = pneg %p77
        %p500 = pneg %p101
        %p501 = pneg %p98
        %p502 = pneg %p122
        %p503 = pneg %p119
        %p504 = pneg %p143
        %p505 = pneg %p140
        %p506 = pneg %p164
        %p507 = pneg %p161
        %p508 = pneg %p185
        %p509 = pneg %p182
        %p510 = pneg %p206
        %p511 = pneg %p203
        %p512 = pneg %p227
        %p513 = pneg %p224
        %p514 = pneg %p248
        %p515 = pneg %p245
        %p516 = pneg %p274
        %p517 = pneg %p271
        %s518 = sand.u32 %s261, 1
        %s519 = scalar_lea.sflag [#allocation4], %s518
        %s520 = sand.u32 %s261, 1
        %s521 = smul.addr %s520, 64
        %s522 = scalar_lea.vmem [#allocation16], %s521
        %s523 = smul.u32 2, %s33
        %s524 = smul.u32 2, %s33
        %s525 = smul.u32 2, %s33
        %v526 = vld [vmem:[%s448] sm:$0xff]
        %v527 = vld [vmem:[%s448 + $0x8] sm:$0xff]
        %v528 = vld [vmem:[%s448 + $0x10] sm:$0xff]
        %v529 = vld [vmem:[%s448 + $0x18] sm:$0xff]
        %v530 = vld [vmem:[%s448 + $0x20] sm:$0xff]
        %v531 = vld [vmem:[%s448 + $0x28] sm:$0xff]
        %v532 = vld [vmem:[%s448 + $0x30] sm:$0xff]
        %v533 = vld [vmem:[%s448 + $0x38] sm:$0xff]
        %v534 = vld [vmem:[%s457] sm:$0xff]
        %v535 = vld [vmem:[%s457 + $0x8] sm:$0xff]
        %v536 = vld [vmem:[#allocation10] sm:$0xff]
        %v537 = vld [vmem:[#allocation10 + $0x8] sm:$0xff]
        %v538 = vld [vmem:[#allocation11] sm:$0xff]
        %v539 = vld [vmem:[#allocation11 + $0x8] sm:$0xff]
        %v540 = vld [vmem:[#allocation13] sm:$0xff]
        %v541 = vld [vmem:[#allocation14] sm:$0xff]
        %v542 = vld [vmem:[#allocation7] sm:$0xff]
        %v543 = vld [vmem:[#allocation8] sm:$0xff]
        %v544 = vld [vmem:[%s6] sm:$0xff]
        %v545 = vld [vmem:[%s6 + $0x8] sm:$0xff]
        %v546 = vld [vmem:[%s7] sm:$0xff]
        %v547 = vld [vmem:[%s7 + $0x8] sm:$0xff]
        %vm548 = vcmask 130048
        %v550 = vsel %vm548, %v526, 0
        %v553 = vsel %vm548, %v527, 0
        %v556 = vsel %vm548, %v528, 0
        %v559 = vsel %vm548, %v529, 0
        %v562 = vsel %vm548, %v530, 0
        %v565 = vsel %vm548, %v531, 0
        %v568 = vsel %vm548, %v532, 0
        %v571 = vsel %vm548, %v533, 0
        %573 = vmatprep.subr.mxu0 0.0
        %574 = vmatpush1.msra.mxu0 %v536
        %575 = vmatprep.subr.mxu0 0.0
        %576 = vmatpush1.msra.mxu0 %v537
        %577 = vmatprep.subr.mxu0 0.0
        %578 = vmatpush1.msra.mxu0 0.0
        %579 = vmatprep.subr.mxu0 0.0
        %580 = vmatpush1.msra.mxu0 0.0
        %581 = vmatprep.subr.mxu0 0.0
        %582 = vmatpush1.msra.mxu0 0.0
        %583 = vmatprep.subr.mxu0 0.0
        %584 = vmatpush1.msra.mxu0 0.0
        %585 = vmatprep.subr.mxu0 0.0
        %586 = vmatpush1.msra.mxu0 0.0
        %587 = vmatprep.subr.mxu0 0.0
        %588 = vmatpush1.msra.mxu0 0.0
        %589 = vmatprep.subr.mxu0 0.0
        %590 = vmatpush1.msra.mxu0 0.0
        %591 = vmatprep.subr.mxu0 0.0
        %592 = vmatpush1.msra.mxu0 0.0
        %593 = vmatprep.subr.mxu0 0.0
        %594 = vmatpush1.msra.mxu0 0.0
        %595 = vmatprep.subr.mxu0 0.0
        %596 = vmatpush1.msra.mxu0 0.0
        %597 = vmatprep.subr.mxu0 0.0
        %598 = vmatpush1.msra.mxu0 0.0
        %599 = vmatprep.subr.mxu0 0.0
        %600 = vmatpush1.msra.mxu0 0.0
        %601 = vmatprep.subr.mxu0 0.0
        %602 = vmatpush1.msra.mxu0 0.0
        %603 = vmatprep.subr.mxu0 0.0
        %604 = vmatpush1.msra.mxu0 0.0
        %605 = vmatprep.subr.mxu0 0.0
        %606 = vmatpush1.msra.mxu0 0.0
        %607 = vmatprep.subr.mxu0 0.0
        %608 = vmatpush1.msra.mxu0 0.0
        %609 = vmatprep.subr.mxu0 0.0
        %610 = vmatpush1.msra.mxu0 0.0
        %611 = vmatprep.subr.mxu0 0.0
        %612 = vmatpush1.msra.mxu0 0.0
        %613 = vmatprep.subr.mxu0 0.0
        %614 = vmatpush1.msra.mxu0 0.0
        %615 = vmatprep.subr.mxu0 0.0
        %616 = vmatpush1.msra.mxu0 0.0
        %617 = vmatprep.subr.mxu0 0.0
        %618 = vmatpush1.msra.mxu0 0.0
        %619 = vmatprep.subr.mxu0 0.0
        %620 = vmatpush1.msra.mxu0 0.0
        %621 = vmatprep.subr.mxu0 0.0
        %622 = vmatpush1.msra.mxu0 0.0
        %623 = vmatprep.subr.mxu0 0.0
        %624 = vmatpush1.msra.mxu0 0.0
        %625 = vmatprep.subr.mxu0 0.0
        %626 = vmatpush1.msra.mxu0 0.0
        %627 = vmatprep.subr.mxu0 0.0
        %628 = vmatpush1.msra.mxu0 0.0
        %629 = vmatprep.subr.mxu0 0.0
        %630 = vmatpush1.msra.mxu0 0.0
        %631 = vmatprep.subr.mxu0 0.0
        %632 = vmatpush1.msra.mxu0 0.0
        %633 = vmatprep.subr.mxu0 0.0
        %634 = vmatpush1.msra.mxu0 0.0
        %635 = vmatprep.subr.mxu0 0.0
        %636 = vmatpush1.msra.mxu0 0.0
        %637 = vmatprep.mubr.f32.mxu0 0.0
        %638 = vmatmul.mubr.f32.gmra.mrb[0].mxu0 %v550
        %v639 = vpop.f32.mrb[0].mxu0
        %v640 = vadd.f32 0.0, %v639
        %v641 = vpop.f32.mrb[0].mxu0
        %642 = vmatprep.mubr.f32.mxu0 0.0
        %643 = vmatmul.mubr.f32.gmra.mrb[0].mxu0 %v553
        %v644 = vpop.f32.mrb[0].mxu0
        %v645 = vadd.f32 0.0, %v644
        %v646 = vpop.f32.mrb[0].mxu0
        %647 = vmatprep.mubr.f32.mxu0 0.0
        %648 = vmatmul.mubr.f32.gmra.mrb[0].mxu0 %v556
        %v649 = vpop.f32.mrb[0].mxu0
        %v650 = vadd.f32 0.0, %v649
        %v651 = vpop.f32.mrb[0].mxu0
        %652 = vmatprep.mubr.f32.mxu0 0.0
        %653 = vmatmul.mubr.f32.gmra.mrb[0].mxu0 %v559
        %v654 = vpop.f32.mrb[0].mxu0
        %v655 = vadd.f32 0.0, %v654
        %v656 = vpop.f32.mrb[0].mxu0
        %657 = vmatprep.mubr.f32.mxu0 0.0
        %658 = vmatmul.mubr.f32.gmra.mrb[0].mxu0 %v562
        %v659 = vpop.f32.mrb[0].mxu0
        %v660 = vadd.f32 0.0, %v659
        %v661 = vpop.f32.mrb[0].mxu0
        %662 = vmatprep.mubr.f32.mxu0 0.0
        %663 = vmatmul.mubr.f32.gmra.mrb[0].mxu0 %v565
        %v664 = vpop.f32.mrb[0].mxu0
        %v665 = vadd.f32 0.0, %v664
        %v666 = vpop.f32.mrb[0].mxu0
        %667 = vmatprep.mubr.f32.mxu0 0.0
        %668 = vmatmul.mubr.f32.gmra.mrb[0].mxu0 %v568
        %v669 = vpop.f32.mrb[0].mxu0
        %v670 = vadd.f32 0.0, %v669
        %v671 = vpop.f32.mrb[0].mxu0
        %672 = vmatprep.mubr.f32.mxu0 0.0
        %673 = vmatmul.mubr.f32.gmra.mrb[0].mxu0 %v571
        %v674 = vpop.f32.mrb[0].mxu0
        %v675 = vadd.f32 0.0, %v674
        %v676 = vpop.f32.mrb[0].mxu0
        %677 = vdwg.mxu0
        %678 = vmatprep.subr.mxu0 0.0
        %679 = vmatpush1.msra.mxu0 %v538
        %680 = vmatprep.subr.mxu0 0.0
        %681 = vmatpush1.msra.mxu0 %v539
        %682 = vmatprep.subr.mxu0 0.0
        %683 = vmatpush1.msra.mxu0 0.0
        %684 = vmatprep.subr.mxu0 0.0
        %685 = vmatpush1.msra.mxu0 0.0
        %686 = vmatprep.subr.mxu0 0.0
        %687 = vmatpush1.msra.mxu0 0.0
        %688 = vmatprep.subr.mxu0 0.0
        %689 = vmatpush1.msra.mxu0 0.0
        %690 = vmatprep.subr.mxu0 0.0
        %691 = vmatpush1.msra.mxu0 0.0
        %692 = vmatprep.subr.mxu0 0.0
        %693 = vmatpush1.msra.mxu0 0.0
        %694 = vmatprep.subr.mxu0 0.0
        %695 = vmatpush1.msra.mxu0 0.0
        %696 = vmatprep.subr.mxu0 0.0
        %697 = vmatpush1.msra.mxu0 0.0
        %698 = vmatprep.subr.mxu0 0.0
        %699 = vmatpush1.msra.mxu0 0.0
        %700 = vmatprep.subr.mxu0 0.0
        %701 = vmatpush1.msra.mxu0 0.0
        %702 = vmatprep.subr.mxu0 0.0
        %703 = vmatpush1.msra.mxu0 0.0
        %704 = vmatprep.subr.mxu0 0.0
        %705 = vmatpush1.msra.mxu0 0.0
        %706 = vmatprep.subr.mxu0 0.0
        %707 = vmatpush1.msra.mxu0 0.0
        %708 = vmatprep.subr.mxu0 0.0
        %709 = vmatpush1.msra.mxu0 0.0
        %710 = vmatprep.subr.mxu0 0.0
        %711 = vmatpush1.msra.mxu0 0.0
        %712 = vmatprep.subr.mxu0 0.0
        %713 = vmatpush1.msra.mxu0 0.0
        %714 = vmatprep.subr.mxu0 0.0
        %715 = vmatpush1.msra.mxu0 0.0
        %716 = vmatprep.subr.mxu0 0.0
        %717 = vmatpush1.msra.mxu0 0.0
        %718 = vmatprep.subr.mxu0 0.0
        %719 = vmatpush1.msra.mxu0 0.0
        %720 = vmatprep.subr.mxu0 0.0
        %721 = vmatpush1.msra.mxu0 0.0
        %722 = vmatprep.subr.mxu0 0.0
        %723 = vmatpush1.msra.mxu0 0.0
        %724 = vmatprep.subr.mxu0 0.0
        %725 = vmatpush1.msra.mxu0 0.0
        %726 = vmatprep.subr.mxu0 0.0
        %727 = vmatpush1.msra.mxu0 0.0
        %728 = vmatprep.subr.mxu0 0.0
        %729 = vmatpush1.msra.mxu0 0.0
        %730 = vmatprep.subr.mxu0 0.0
        %731 = vmatpush1.msra.mxu0 0.0
        %732 = vmatprep.subr.mxu0 0.0
        %733 = vmatpush1.msra.mxu0 0.0
        %734 = vmatprep.subr.mxu0 0.0
        %735 = vmatpush1.msra.mxu0 0.0
        %736 = vmatprep.subr.mxu0 0.0
        %737 = vmatpush1.msra.mxu0 0.0
        %738 = vmatprep.subr.mxu0 0.0
        %739 = vmatpush1.msra.mxu0 0.0
        %740 = vmatprep.subr.mxu0 0.0
        %741 = vmatpush1.msra.mxu0 0.0
        %742 = vmatprep.mubr.f32.mxu0 0.0
        %743 = vmatmul.mubr.f32.gmra.mrb[0].mxu0 %v550
        %v744 = vpop.f32.mrb[0].mxu0
        %v745 = vadd.f32 0.0, %v744
        %v746 = vpop.f32.mrb[0].mxu0
        %747 = vmatprep.mubr.f32.mxu0 0.0
        %748 = vmatmul.mubr.f32.gmra.mrb[0].mxu0 %v553
        %v749 = vpop.f32.mrb[0].mxu0
        %v750 = vadd.f32 0.0, %v749
        %v751 = vpop.f32.mrb[0].mxu0
        %752 = vmatprep.mubr.f32.mxu0 0.0
        %753 = vmatmul.mubr.f32.gmra.mrb[0].mxu0 %v556
        %v754 = vpop.f32.mrb[0].mxu0
        %v755 = vadd.f32 0.0, %v754
        %v756 = vpop.f32.mrb[0].mxu0
        %757 = vmatprep.mubr.f32.mxu0 0.0
        %758 = vmatmul.mubr.f32.gmra.mrb[0].mxu0 %v559
        %v759 = vpop.f32.mrb[0].mxu0
        %v760 = vadd.f32 0.0, %v759
        %v761 = vpop.f32.mrb[0].mxu0
        %762 = vmatprep.mubr.f32.mxu0 0.0
        %763 = vmatmul.mubr.f32.gmra.mrb[0].mxu0 %v562
        %v764 = vpop.f32.mrb[0].mxu0
        %v765 = vadd.f32 0.0, %v764
        %v766 = vpop.f32.mrb[0].mxu0
        %767 = vmatprep.mubr.f32.mxu0 0.0
        %768 = vmatmul.mubr.f32.gmra.mrb[0].mxu0 %v565
        %v769 = vpop.f32.mrb[0].mxu0
        %v770 = vadd.f32 0.0, %v769
        %v771 = vpop.f32.mrb[0].mxu0
        %772 = vmatprep.mubr.f32.mxu0 0.0
        %773 = vmatmul.mubr.f32.gmra.mrb[0].mxu0 %v568
        %v774 = vpop.f32.mrb[0].mxu0
        %v775 = vadd.f32 0.0, %v774
        %v776 = vpop.f32.mrb[0].mxu0
        %777 = vmatprep.mubr.f32.mxu0 0.0
        %778 = vmatmul.mubr.f32.gmra.mrb[0].mxu0 %v571
        %v779 = vpop.f32.mrb[0].mxu0
        %v780 = vadd.f32 0.0, %v779
        %v781 = vpop.f32.mrb[0].mxu0
        %782 = vdwg.mxu0
        %v784 = vsel %vm548, %v542, 0
        %786 = vmatprep.subr.mxu0 0.0
        %787 = vmatpush1.msra.mxu0 %v640
        %788 = vmatprep.subr.mxu0 0.0
        %789 = vmatpush1.msra.mxu0 %v645
        %790 = vmatprep.subr.mxu0 0.0
        %791 = vmatpush1.msra.mxu0 0.0
        %792 = vmatprep.subr.mxu0 0.0
        %793 = vmatpush1.msra.mxu0 0.0
        %794 = vmatprep.subr.mxu0 0.0
        %795 = vmatpush1.msra.mxu0 0.0
        %796 = vmatprep.subr.mxu0 0.0
        %797 = vmatpush1.msra.mxu0 0.0
        %798 = vmatprep.subr.mxu0 0.0
        %799 = vmatpush1.msra.mxu0 0.0
        %800 = vmatprep.subr.mxu0 0.0
        %801 = vmatpush1.msra.mxu0 0.0
        %802 = vmatprep.subr.mxu0 0.0
        %803 = vmatpush1.msra.mxu0 0.0
        %804 = vmatprep.subr.mxu0 0.0
        %805 = vmatpush1.msra.mxu0 0.0
        %806 = vmatprep.subr.mxu0 0.0
        %807 = vmatpush1.msra.mxu0 0.0
        %808 = vmatprep.subr.mxu0 0.0
        %809 = vmatpush1.msra.mxu0 0.0
        %810 = vmatprep.subr.mxu0 0.0
        %811 = vmatpush1.msra.mxu0 0.0
        %812 = vmatprep.subr.mxu0 0.0
        %813 = vmatpush1.msra.mxu0 0.0
        %814 = vmatprep.subr.mxu0 0.0
        %815 = vmatpush1.msra.mxu0 0.0
        %816 = vmatprep.subr.mxu0 0.0
        %817 = vmatpush1.msra.mxu0 0.0
        %818 = vmatprep.subr.mxu0 0.0
        %819 = vmatpush1.msra.mxu0 0.0
        %820 = vmatprep.subr.mxu0 0.0
        %821 = vmatpush1.msra.mxu0 0.0
        %822 = vmatprep.subr.mxu0 0.0
        %823 = vmatpush1.msra.mxu0 0.0
        %824 = vmatprep.subr.mxu0 0.0
        %825 = vmatpush1.msra.mxu0 0.0
        %826 = vmatprep.subr.mxu0 0.0
        %827 = vmatpush1.msra.mxu0 0.0
        %828 = vmatprep.subr.mxu0 0.0
        %829 = vmatpush1.msra.mxu0 0.0
        %830 = vmatprep.subr.mxu0 0.0
        %831 = vmatpush1.msra.mxu0 0.0
        %832 = vmatprep.subr.mxu0 0.0
        %833 = vmatpush1.msra.mxu0 0.0
        %834 = vmatprep.subr.mxu0 0.0
        %835 = vmatpush1.msra.mxu0 0.0
        %836 = vmatprep.subr.mxu0 0.0
        %837 = vmatpush1.msra.mxu0 0.0
        %838 = vmatprep.subr.mxu0 0.0
        %839 = vmatpush1.msra.mxu0 0.0
        %840 = vmatprep.subr.mxu0 0.0
        %841 = vmatpush1.msra.mxu0 0.0
        %842 = vmatprep.subr.mxu0 0.0
        %843 = vmatpush1.msra.mxu0 0.0
        %844 = vmatprep.subr.mxu0 0.0
        %845 = vmatpush1.msra.mxu0 0.0
        %846 = vmatprep.subr.mxu0 0.0
        %847 = vmatpush1.msra.mxu0 0.0
        %848 = vmatprep.subr.mxu0 0.0
        %849 = vmatpush1.msra.mxu0 0.0
        %850 = vmatprep.mubr.f32.mxu0 0.0
        %851 = vmatmul.mubr.f32.gmra.mrb[0].mxu0 %v784
        %v852 = vpop.f32.mrb[0].mxu0
        %v853 = vadd.f32 0.0, %v852
        %v854 = vpop.f32.mrb[0].mxu0
        %855 = vdwg.mxu0
        %856 = vmatprep.subr.mxu0 0.0
        %857 = vmatpush1.msra.mxu0 %v650
        %858 = vmatprep.subr.mxu0 0.0
        %859 = vmatpush1.msra.mxu0 %v655
        %860 = vmatprep.subr.mxu0 0.0
        %861 = vmatpush1.msra.mxu0 0.0
        %862 = vmatprep.subr.mxu0 0.0
        %863 = vmatpush1.msra.mxu0 0.0
        %864 = vmatprep.subr.mxu0 0.0
        %865 = vmatpush1.msra.mxu0 0.0
        %866 = vmatprep.subr.mxu0 0.0
        %867 = vmatpush1.msra.mxu0 0.0
        %868 = vmatprep.subr.mxu0 0.0
        %869 = vmatpush1.msra.mxu0 0.0
        %870 = vmatprep.subr.mxu0 0.0
        %871 = vmatpush1.msra.mxu0 0.0
        %872 = vmatprep.subr.mxu0 0.0
        %873 = vmatpush1.msra.mxu0 0.0
        %874 = vmatprep.subr.mxu0 0.0
        %875 = vmatpush1.msra.mxu0 0.0
        %876 = vmatprep.subr.mxu0 0.0
        %877 = vmatpush1.msra.mxu0 0.0
        %878 = vmatprep.subr.mxu0 0.0
        %879 = vmatpush1.msra.mxu0 0.0
        %880 = vmatprep.subr.mxu0 0.0
        %881 = vmatpush1.msra.mxu0 0.0
        %882 = vmatprep.subr.mxu0 0.0
        %883 = vmatpush1.msra.mxu0 0.0
        %884 = vmatprep.subr.mxu0 0.0
        %885 = vmatpush1.msra.mxu0 0.0
        %886 = vmatprep.subr.mxu0 0.0
        %887 = vmatpush1.msra.mxu0 0.0
        %888 = vmatprep.subr.mxu0 0.0
        %889 = vmatpush1.msra.mxu0 0.0
        %890 = vmatprep.subr.mxu0 0.0
        %891 = vmatpush1.msra.mxu0 0.0
        %892 = vmatprep.subr.mxu0 0.0
        %893 = vmatpush1.msra.mxu0 0.0
        %894 = vmatprep.subr.mxu0 0.0
        %895 = vmatpush1.msra.mxu0 0.0
        %896 = vmatprep.subr.mxu0 0.0
        %897 = vmatpush1.msra.mxu0 0.0
        %898 = vmatprep.subr.mxu0 0.0
        %899 = vmatpush1.msra.mxu0 0.0
        %900 = vmatprep.subr.mxu0 0.0
        %901 = vmatpush1.msra.mxu0 0.0
        %902 = vmatprep.subr.mxu0 0.0
        %903 = vmatpush1.msra.mxu0 0.0
        %904 = vmatprep.subr.mxu0 0.0
        %905 = vmatpush1.msra.mxu0 0.0
        %906 = vmatprep.subr.mxu0 0.0
        %907 = vmatpush1.msra.mxu0 0.0
        %908 = vmatprep.subr.mxu0 0.0
        %909 = vmatpush1.msra.mxu0 0.0
        %910 = vmatprep.subr.mxu0 0.0
        %911 = vmatpush1.msra.mxu0 0.0
        %912 = vmatprep.subr.mxu0 0.0
        %913 = vmatpush1.msra.mxu0 0.0
        %914 = vmatprep.subr.mxu0 0.0
        %915 = vmatpush1.msra.mxu0 0.0
        %916 = vmatprep.subr.mxu0 0.0
        %917 = vmatpush1.msra.mxu0 0.0
        %918 = vmatprep.subr.mxu0 0.0
        %919 = vmatpush1.msra.mxu0 0.0
        %920 = vmatprep.mubr.f32.mxu0 0.0
        %921 = vmatmul.mubr.f32.gmra.mrb[0].mxu0 %v784
        %v922 = vpop.f32.mrb[0].mxu0
        %v923 = vadd.f32 0.0, %v922
        %v924 = vpop.f32.mrb[0].mxu0
        %925 = vdwg.mxu0
        %926 = vmatprep.subr.mxu0 0.0
        %927 = vmatpush1.msra.mxu0 %v660
        %928 = vmatprep.subr.mxu0 0.0
        %929 = vmatpush1.msra.mxu0 %v665
        %930 = vmatprep.subr.mxu0 0.0
        %931 = vmatpush1.msra.mxu0 0.0
        %932 = vmatprep.subr.mxu0 0.0
        %933 = vmatpush1.msra.mxu0 0.0
        %934 = vmatprep.subr.mxu0 0.0
        %935 = vmatpush1.msra.mxu0 0.0
        %936 = vmatprep.subr.mxu0 0.0
        %937 = vmatpush1.msra.mxu0 0.0
        %938 = vmatprep.subr.mxu0 0.0
        %939 = vmatpush1.msra.mxu0 0.0
        %940 = vmatprep.subr.mxu0 0.0
        %941 = vmatpush1.msra.mxu0 0.0
        %942 = vmatprep.subr.mxu0 0.0
        %943 = vmatpush1.msra.mxu0 0.0
        %944 = vmatprep.subr.mxu0 0.0
        %945 = vmatpush1.msra.mxu0 0.0
        %946 = vmatprep.subr.mxu0 0.0
        %947 = vmatpush1.msra.mxu0 0.0
        %948 = vmatprep.subr.mxu0 0.0
        %949 = vmatpush1.msra.mxu0 0.0
        %950 = vmatprep.subr.mxu0 0.0
        %951 = vmatpush1.msra.mxu0 0.0
        %952 = vmatprep.subr.mxu0 0.0
        %953 = vmatpush1.msra.mxu0 0.0
        %954 = vmatprep.subr.mxu0 0.0
        %955 = vmatpush1.msra.mxu0 0.0
        %956 = vmatprep.subr.mxu0 0.0
        %957 = vmatpush1.msra.mxu0 0.0
        %958 = vmatprep.subr.mxu0 0.0
        %959 = vmatpush1.msra.mxu0 0.0
        %960 = vmatprep.subr.mxu0 0.0
        %961 = vmatpush1.msra.mxu0 0.0
        %962 = vmatprep.subr.mxu0 0.0
        %963 = vmatpush1.msra.mxu0 0.0
        %964 = vmatprep.subr.mxu0 0.0
        %965 = vmatpush1.msra.mxu0 0.0
        %966 = vmatprep.subr.mxu0 0.0
        %967 = vmatpush1.msra.mxu0 0.0
        %968 = vmatprep.subr.mxu0 0.0
        %969 = vmatpush1.msra.mxu0 0.0
        %970 = vmatprep.subr.mxu0 0.0
        %971 = vmatpush1.msra.mxu0 0.0
        %972 = vmatprep.subr.mxu0 0.0
        %973 = vmatpush1.msra.mxu0 0.0
        %974 = vmatprep.subr.mxu0 0.0
        %975 = vmatpush1.msra.mxu0 0.0
        %976 = vmatprep.subr.mxu0 0.0
        %977 = vmatpush1.msra.mxu0 0.0
        %978 = vmatprep.subr.mxu0 0.0
        %979 = vmatpush1.msra.mxu0 0.0
        %980 = vmatprep.subr.mxu0 0.0
        %981 = vmatpush1.msra.mxu0 0.0
        %982 = vmatprep.subr.mxu0 0.0
        %983 = vmatpush1.msra.mxu0 0.0
        %984 = vmatprep.subr.mxu0 0.0
        %985 = vmatpush1.msra.mxu0 0.0
        %986 = vmatprep.subr.mxu0 0.0
        %987 = vmatpush1.msra.mxu0 0.0
        %988 = vmatprep.subr.mxu0 0.0
        %989 = vmatpush1.msra.mxu0 0.0
        %990 = vmatprep.mubr.f32.mxu0 0.0
        %991 = vmatmul.mubr.f32.gmra.mrb[0].mxu0 %v784
        %v992 = vpop.f32.mrb[0].mxu0
        %v993 = vadd.f32 0.0, %v992
        %v994 = vpop.f32.mrb[0].mxu0
        %995 = vdwg.mxu0
        %996 = vmatprep.subr.mxu0 0.0
        %997 = vmatpush1.msra.mxu0 %v670
        %998 = vmatprep.subr.mxu0 0.0
        %999 = vmatpush1.msra.mxu0 %v675
        %1000 = vmatprep.subr.mxu0 0.0
        %1001 = vmatpush1.msra.mxu0 0.0
        %1002 = vmatprep.subr.mxu0 0.0
        %1003 = vmatpush1.msra.mxu0 0.0
        %1004 = vmatprep.subr.mxu0 0.0
        %1005 = vmatpush1.msra.mxu0 0.0
        %1006 = vmatprep.subr.mxu0 0.0
        %1007 = vmatpush1.msra.mxu0 0.0
        %1008 = vmatprep.subr.mxu0 0.0
        %1009 = vmatpush1.msra.mxu0 0.0
        %1010 = vmatprep.subr.mxu0 0.0
        %1011 = vmatpush1.msra.mxu0 0.0
        %1012 = vmatprep.subr.mxu0 0.0
        %1013 = vmatpush1.msra.mxu0 0.0
        %1014 = vmatprep.subr.mxu0 0.0
        %1015 = vmatpush1.msra.mxu0 0.0
        %1016 = vmatprep.subr.mxu0 0.0
        %1017 = vmatpush1.msra.mxu0 0.0
        %1018 = vmatprep.subr.mxu0 0.0
        %1019 = vmatpush1.msra.mxu0 0.0
        %1020 = vmatprep.subr.mxu0 0.0
        %1021 = vmatpush1.msra.mxu0 0.0
        %1022 = vmatprep.subr.mxu0 0.0
        %1023 = vmatpush1.msra.mxu0 0.0
        %1024 = vmatprep.subr.mxu0 0.0
        %1025 = vmatpush1.msra.mxu0 0.0
        %1026 = vmatprep.subr.mxu0 0.0
        %1027 = vmatpush1.msra.mxu0 0.0
        %1028 = vmatprep.subr.mxu0 0.0
        %1029 = vmatpush1.msra.mxu0 0.0
        %1030 = vmatprep.subr.mxu0 0.0
        %1031 = vmatpush1.msra.mxu0 0.0
        %1032 = vmatprep.subr.mxu0 0.0
        %1033 = vmatpush1.msra.mxu0 0.0
        %1034 = vmatprep.subr.mxu0 0.0
        %1035 = vmatpush1.msra.mxu0 0.0
        %1036 = vmatprep.subr.mxu0 0.0
        %1037 = vmatpush1.msra.mxu0 0.0
        %1038 = vmatprep.subr.mxu0 0.0
        %1039 = vmatpush1.msra.mxu0 0.0
        %1040 = vmatprep.subr.mxu0 0.0
        %1041 = vmatpush1.msra.mxu0 0.0
        %1042 = vmatprep.subr.mxu0 0.0
        %1043 = vmatpush1.msra.mxu0 0.0
        %1044 = vmatprep.subr.mxu0 0.0
        %1045 = vmatpush1.msra.mxu0 0.0
        %1046 = vmatprep.subr.mxu0 0.0
        %1047 = vmatpush1.msra.mxu0 0.0
        %1048 = vmatprep.subr.mxu0 0.0
        %1049 = vmatpush1.msra.mxu0 0.0
        %1050 = vmatprep.subr.mxu0 0.0
        %1051 = vmatpush1.msra.mxu0 0.0
        %1052 = vmatprep.subr.mxu0 0.0
        %1053 = vmatpush1.msra.mxu0 0.0
        %1054 = vmatprep.subr.mxu0 0.0
        %1055 = vmatpush1.msra.mxu0 0.0
        %1056 = vmatprep.subr.mxu0 0.0
        %1057 = vmatpush1.msra.mxu0 0.0
        %1058 = vmatprep.subr.mxu0 0.0
        %1059 = vmatpush1.msra.mxu0 0.0
        %1060 = vmatprep.mubr.f32.mxu0 0.0
        %1061 = vmatmul.mubr.f32.gmra.mrb[0].mxu0 %v784
        %v1062 = vpop.f32.mrb[0].mxu0
        %v1063 = vadd.f32 0.0, %v1062
        %v1064 = vpop.f32.mrb[0].mxu0
        %1065 = vdwg.mxu0
        %v1067 = vsel %vm548, %v543, 0
        %1069 = vmatprep.subr.mxu0 0.0
        %1070 = vmatpush1.msra.mxu0 %v745
        %1071 = vmatprep.subr.mxu0 0.0
        %1072 = vmatpush1.msra.mxu0 %v750
        %1073 = vmatprep.subr.mxu0 0.0
        %1074 = vmatpush1.msra.mxu0 0.0
        %1075 = vmatprep.subr.mxu0 0.0
        %1076 = vmatpush1.msra.mxu0 0.0
        %1077 = vmatprep.subr.mxu0 0.0
        %1078 = vmatpush1.msra.mxu0 0.0
        %1079 = vmatprep.subr.mxu0 0.0
        %1080 = vmatpush1.msra.mxu0 0.0
        %1081 = vmatprep.subr.mxu0 0.0
        %1082 = vmatpush1.msra.mxu0 0.0
        %1083 = vmatprep.subr.mxu0 0.0
        %1084 = vmatpush1.msra.mxu0 0.0
        %1085 = vmatprep.subr.mxu0 0.0
        %1086 = vmatpush1.msra.mxu0 0.0
        %1087 = vmatprep.subr.mxu0 0.0
        %1088 = vmatpush1.msra.mxu0 0.0
        %1089 = vmatprep.subr.mxu0 0.0
        %1090 = vmatpush1.msra.mxu0 0.0
        %1091 = vmatprep.subr.mxu0 0.0
        %1092 = vmatpush1.msra.mxu0 0.0
        %1093 = vmatprep.subr.mxu0 0.0
        %1094 = vmatpush1.msra.mxu0 0.0
        %1095 = vmatprep.subr.mxu0 0.0
        %1096 = vmatpush1.msra.mxu0 0.0
        %1097 = vmatprep.subr.mxu0 0.0
        %1098 = vmatpush1.msra.mxu0 0.0
        %1099 = vmatprep.subr.mxu0 0.0
        %1100 = vmatpush1.msra.mxu0 0.0
        %1101 = vmatprep.subr.mxu0 0.0
        %1102 = vmatpush1.msra.mxu0 0.0
        %1103 = vmatprep.subr.mxu0 0.0
        %1104 = vmatpush1.msra.mxu0 0.0
        %1105 = vmatprep.subr.mxu0 0.0
        %1106 = vmatpush1.msra.mxu0 0.0
        %1107 = vmatprep.subr.mxu0 0.0
        %1108 = vmatpush1.msra.mxu0 0.0
        %1109 = vmatprep.subr.mxu0 0.0
        %1110 = vmatpush1.msra.mxu0 0.0
        %1111 = vmatprep.subr.mxu0 0.0
        %1112 = vmatpush1.msra.mxu0 0.0
        %1113 = vmatprep.subr.mxu0 0.0
        %1114 = vmatpush1.msra.mxu0 0.0
        %1115 = vmatprep.subr.mxu0 0.0
        %1116 = vmatpush1.msra.mxu0 0.0
        %1117 = vmatprep.subr.mxu0 0.0
        %1118 = vmatpush1.msra.mxu0 0.0
        %1119 = vmatprep.subr.mxu0 0.0
        %1120 = vmatpush1.msra.mxu0 0.0
        %1121 = vmatprep.subr.mxu0 0.0
        %1122 = vmatpush1.msra.mxu0 0.0
        %1123 = vmatprep.subr.mxu0 0.0
        %1124 = vmatpush1.msra.mxu0 0.0
        %1125 = vmatprep.subr.mxu0 0.0
        %1126 = vmatpush1.msra.mxu0 0.0
        %1127 = vmatprep.subr.mxu0 0.0
        %1128 = vmatpush1.msra.mxu0 0.0
        %1129 = vmatprep.subr.mxu0 0.0
        %1130 = vmatpush1.msra.mxu0 0.0
        %1131 = vmatprep.subr.mxu0 0.0
        %1132 = vmatpush1.msra.mxu0 0.0
        %1133 = vmatprep.mubr.f32.mxu0 0.0
        %1134 = vmatmul.mubr.f32.gmra.mrb[0].mxu0 %v1067
        %v1135 = vpop.f32.mrb[0].mxu0
        %v1136 = vadd.f32 0.0, %v1135
        %v1137 = vpop.f32.mrb[0].mxu0
        %1138 = vdwg.mxu0
        %1139 = vmatprep.subr.mxu0 0.0
        %1140 = vmatpush1.msra.mxu0 %v755
        %1141 = vmatprep.subr.mxu0 0.0
        %1142 = vmatpush1.msra.mxu0 %v760
        %1143 = vmatprep.subr.mxu0 0.0
        %1144 = vmatpush1.msra.mxu0 0.0
        %1145 = vmatprep.subr.mxu0 0.0
        %1146 = vmatpush1.msra.mxu0 0.0
        %1147 = vmatprep.subr.mxu0 0.0
        %1148 = vmatpush1.msra.mxu0 0.0
        %1149 = vmatprep.subr.mxu0 0.0
        %1150 = vmatpush1.msra.mxu0 0.0
        %1151 = vmatprep.subr.mxu0 0.0
        %1152 = vmatpush1.msra.mxu0 0.0
        %1153 = vmatprep.subr.mxu0 0.0
        %1154 = vmatpush1.msra.mxu0 0.0
        %1155 = vmatprep.subr.mxu0 0.0
        %1156 = vmatpush1.msra.mxu0 0.0
        %1157 = vmatprep.subr.mxu0 0.0
        %1158 = vmatpush1.msra.mxu0 0.0
        %1159 = vmatprep.subr.mxu0 0.0
        %1160 = vmatpush1.msra.mxu0 0.0
        %1161 = vmatprep.subr.mxu0 0.0
        %1162 = vmatpush1.msra.mxu0 0.0
        %1163 = vmatprep.subr.mxu0 0.0
        %1164 = vmatpush1.msra.mxu0 0.0
        %1165 = vmatprep.subr.mxu0 0.0
        %1166 = vmatpush1.msra.mxu0 0.0
        %1167 = vmatprep.subr.mxu0 0.0
        %1168 = vmatpush1.msra.mxu0 0.0
        %1169 = vmatprep.subr.mxu0 0.0
        %1170 = vmatpush1.msra.mxu0 0.0
        %1171 = vmatprep.subr.mxu0 0.0
        %1172 = vmatpush1.msra.mxu0 0.0
        %1173 = vmatprep.subr.mxu0 0.0
        %1174 = vmatpush1.msra.mxu0 0.0
        %1175 = vmatprep.subr.mxu0 0.0
        %1176 = vmatpush1.msra.mxu0 0.0
        %1177 = vmatprep.subr.mxu0 0.0
        %1178 = vmatpush1.msra.mxu0 0.0
        %1179 = vmatprep.subr.mxu0 0.0
        %1180 = vmatpush1.msra.mxu0 0.0
        %1181 = vmatprep.subr.mxu0 0.0
        %1182 = vmatpush1.msra.mxu0 0.0
        %1183 = vmatprep.subr.mxu0 0.0
        %1184 = vmatpush1.msra.mxu0 0.0
        %1185 = vmatprep.subr.mxu0 0.0
        %1186 = vmatpush1.msra.mxu0 0.0
        %1187 = vmatprep.subr.mxu0 0.0
        %1188 = vmatpush1.msra.mxu0 0.0
        %1189 = vmatprep.subr.mxu0 0.0
        %1190 = vmatpush1.msra.mxu0 0.0
        %1191 = vmatprep.subr.mxu0 0.0
        %1192 = vmatpush1.msra.mxu0 0.0
        %1193 = vmatprep.subr.mxu0 0.0
        %1194 = vmatpush1.msra.mxu0 0.0
        %1195 = vmatprep.subr.mxu0 0.0
        %1196 = vmatpush1.msra.mxu0 0.0
        %1197 = vmatprep.subr.mxu0 0.0
        %1198 = vmatpush1.msra.mxu0 0.0
        %1199 = vmatprep.subr.mxu0 0.0
        %1200 = vmatpush1.msra.mxu0 0.0
        %1201 = vmatprep.subr.mxu0 0.0
        %1202 = vmatpush1.msra.mxu0 0.0
        %1203 = vmatprep.mubr.f32.mxu0 0.0
        %1204 = vmatmul.mubr.f32.gmra.mrb[0].mxu0 %v1067
        %v1205 = vpop.f32.mrb[0].mxu0
        %v1206 = vadd.f32 0.0, %v1205
        %v1207 = vpop.f32.mrb[0].mxu0
        %1208 = vdwg.mxu0
        %1209 = vmatprep.subr.mxu0 0.0
        %1210 = vmatpush1.msra.mxu0 %v765
        %1211 = vmatprep.subr.mxu0 0.0
        %1212 = vmatpush1.msra.mxu0 %v770
        %1213 = vmatprep.subr.mxu0 0.0
        %1214 = vmatpush1.msra.mxu0 0.0
        %1215 = vmatprep.subr.mxu0 0.0
        %1216 = vmatpush1.msra.mxu0 0.0
        %1217 = vmatprep.subr.mxu0 0.0
        %1218 = vmatpush1.msra.mxu0 0.0
        %1219 = vmatprep.subr.mxu0 0.0
        %1220 = vmatpush1.msra.mxu0 0.0
        %1221 = vmatprep.subr.mxu0 0.0
        %1222 = vmatpush1.msra.mxu0 0.0
        %1223 = vmatprep.subr.mxu0 0.0
        %1224 = vmatpush1.msra.mxu0 0.0
        %1225 = vmatprep.subr.mxu0 0.0
        %1226 = vmatpush1.msra.mxu0 0.0
        %1227 = vmatprep.subr.mxu0 0.0
        %1228 = vmatpush1.msra.mxu0 0.0
        %1229 = vmatprep.subr.mxu0 0.0
        %1230 = vmatpush1.msra.mxu0 0.0
        %1231 = vmatprep.subr.mxu0 0.0
        %1232 = vmatpush1.msra.mxu0 0.0
        %1233 = vmatprep.subr.mxu0 0.0
        %1234 = vmatpush1.msra.mxu0 0.0
        %1235 = vmatprep.subr.mxu0 0.0
        %1236 = vmatpush1.msra.mxu0 0.0
        %1237 = vmatprep.subr.mxu0 0.0
        %1238 = vmatpush1.msra.mxu0 0.0
        %1239 = vmatprep.subr.mxu0 0.0
        %1240 = vmatpush1.msra.mxu0 0.0
        %1241 = vmatprep.subr.mxu0 0.0
        %1242 = vmatpush1.msra.mxu0 0.0
        %1243 = vmatprep.subr.mxu0 0.0
        %1244 = vmatpush1.msra.mxu0 0.0
        %1245 = vmatprep.subr.mxu0 0.0
        %1246 = vmatpush1.msra.mxu0 0.0
        %1247 = vmatprep.subr.mxu0 0.0
        %1248 = vmatpush1.msra.mxu0 0.0
        %1249 = vmatprep.subr.mxu0 0.0
        %1250 = vmatpush1.msra.mxu0 0.0
        %1251 = vmatprep.subr.mxu0 0.0
        %1252 = vmatpush1.msra.mxu0 0.0
        %1253 = vmatprep.subr.mxu0 0.0
        %1254 = vmatpush1.msra.mxu0 0.0
        %1255 = vmatprep.subr.mxu0 0.0
        %1256 = vmatpush1.msra.mxu0 0.0
        %1257 = vmatprep.subr.mxu0 0.0
        %1258 = vmatpush1.msra.mxu0 0.0
        %1259 = vmatprep.subr.mxu0 0.0
        %1260 = vmatpush1.msra.mxu0 0.0
        %1261 = vmatprep.subr.mxu0 0.0
        %1262 = vmatpush1.msra.mxu0 0.0
        %1263 = vmatprep.subr.mxu0 0.0
        %1264 = vmatpush1.msra.mxu0 0.0
        %1265 = vmatprep.subr.mxu0 0.0
        %1266 = vmatpush1.msra.mxu0 0.0
        %1267 = vmatprep.subr.mxu0 0.0
        %1268 = vmatpush1.msra.mxu0 0.0
        %1269 = vmatprep.subr.mxu0 0.0
        %1270 = vmatpush1.msra.mxu0 0.0
        %1271 = vmatprep.subr.mxu0 0.0
        %1272 = vmatpush1.msra.mxu0 0.0
        %1273 = vmatprep.mubr.f32.mxu0 0.0
        %1274 = vmatmul.mubr.f32.gmra.mrb[0].mxu0 %v1067
        %v1275 = vpop.f32.mrb[0].mxu0
        %v1276 = vadd.f32 0.0, %v1275
        %v1277 = vpop.f32.mrb[0].mxu0
        %1278 = vdwg.mxu0
        %1279 = vmatprep.subr.mxu0 0.0
        %1280 = vmatpush1.msra.mxu0 %v775
        %1281 = vmatprep.subr.mxu0 0.0
        %1282 = vmatpush1.msra.mxu0 %v780
        %1283 = vmatprep.subr.mxu0 0.0
        %1284 = vmatpush1.msra.mxu0 0.0
        %1285 = vmatprep.subr.mxu0 0.0
        %1286 = vmatpush1.msra.mxu0 0.0
        %1287 = vmatprep.subr.mxu0 0.0
        %1288 = vmatpush1.msra.mxu0 0.0
        %1289 = vmatprep.subr.mxu0 0.0
        %1290 = vmatpush1.msra.mxu0 0.0
        %1291 = vmatprep.subr.mxu0 0.0
        %1292 = vmatpush1.msra.mxu0 0.0
        %1293 = vmatprep.subr.mxu0 0.0
        %1294 = vmatpush1.msra.mxu0 0.0
        %1295 = vmatprep.subr.mxu0 0.0
        %1296 = vmatpush1.msra.mxu0 0.0
        %1297 = vmatprep.subr.mxu0 0.0
        %1298 = vmatpush1.msra.mxu0 0.0
        %1299 = vmatprep.subr.mxu0 0.0
        %1300 = vmatpush1.msra.mxu0 0.0
        %1301 = vmatprep.subr.mxu0 0.0
        %1302 = vmatpush1.msra.mxu0 0.0
        %1303 = vmatprep.subr.mxu0 0.0
        %1304 = vmatpush1.msra.mxu0 0.0
        %1305 = vmatprep.subr.mxu0 0.0
        %1306 = vmatpush1.msra.mxu0 0.0
        %1307 = vmatprep.subr.mxu0 0.0
        %1308 = vmatpush1.msra.mxu0 0.0
        %1309 = vmatprep.subr.mxu0 0.0
        %1310 = vmatpush1.msra.mxu0 0.0
        %1311 = vmatprep.subr.mxu0 0.0
        %1312 = vmatpush1.msra.mxu0 0.0
        %1313 = vmatprep.subr.mxu0 0.0
        %1314 = vmatpush1.msra.mxu0 0.0
        %1315 = vmatprep.subr.mxu0 0.0
        %1316 = vmatpush1.msra.mxu0 0.0
        %1317 = vmatprep.subr.mxu0 0.0
        %1318 = vmatpush1.msra.mxu0 0.0
        %1319 = vmatprep.subr.mxu0 0.0
        %1320 = vmatpush1.msra.mxu0 0.0
        %1321 = vmatprep.subr.mxu0 0.0
        %1322 = vmatpush1.msra.mxu0 0.0
        %1323 = vmatprep.subr.mxu0 0.0
        %1324 = vmatpush1.msra.mxu0 0.0
        %1325 = vmatprep.subr.mxu0 0.0
        %1326 = vmatpush1.msra.mxu0 0.0
        %1327 = vmatprep.subr.mxu0 0.0
        %1328 = vmatpush1.msra.mxu0 0.0
        %1329 = vmatprep.subr.mxu0 0.0
        %1330 = vmatpush1.msra.mxu0 0.0
        %1331 = vmatprep.subr.mxu0 0.0
        %1332 = vmatpush1.msra.mxu0 0.0
        %1333 = vmatprep.subr.mxu0 0.0
        %1334 = vmatpush1.msra.mxu0 0.0
        %1335 = vmatprep.subr.mxu0 0.0
        %1336 = vmatpush1.msra.mxu0 0.0
        %1337 = vmatprep.subr.mxu0 0.0
        %1338 = vmatpush1.msra.mxu0 0.0
        %1339 = vmatprep.subr.mxu0 0.0
        %1340 = vmatpush1.msra.mxu0 0.0
        %1341 = vmatprep.subr.mxu0 0.0
        %1342 = vmatpush1.msra.mxu0 0.0
        %1343 = vmatprep.mubr.f32.mxu0 0.0
        %1344 = vmatmul.mubr.f32.gmra.mrb[0].mxu0 %v1067
        %v1345 = vpop.f32.mrb[0].mxu0
        %v1346 = vadd.f32 0.0, %v1345
        %v1347 = vpop.f32.mrb[0].mxu0
        %1348 = vdwg.mxu0
        %v1349 = vsub.f32 %v853, %v1136
        %v1350 = vsub.f32 %v923, %v1206
        %v1351 = vsub.f32 %v993, %v1276
        %v1352 = vsub.f32 %v1063, %v1346
        %1353 = vmatprep.subr.mxu0 0.0
        %1354 = vmatpush1.msra.mxu0 %v640
        %1355 = vmatprep.subr.mxu0 0.0
        %1356 = vmatpush1.msra.mxu0 %v645
        %1357 = vmatprep.subr.mxu0 0.0
        %1358 = vmatpush1.msra.mxu0 0.0
        %1359 = vmatprep.subr.mxu0 0.0
        %1360 = vmatpush1.msra.mxu0 0.0
        %1361 = vmatprep.subr.mxu0 0.0
        %1362 = vmatpush1.msra.mxu0 0.0
        %1363 = vmatprep.subr.mxu0 0.0
        %1364 = vmatpush1.msra.mxu0 0.0
        %1365 = vmatprep.subr.mxu0 0.0
        %1366 = vmatpush1.msra.mxu0 0.0
        %1367 = vmatprep.subr.mxu0 0.0
        %1368 = vmatpush1.msra.mxu0 0.0
        %1369 = vmatprep.subr.mxu0 0.0
        %1370 = vmatpush1.msra.mxu0 0.0
        %1371 = vmatprep.subr.mxu0 0.0
        %1372 = vmatpush1.msra.mxu0 0.0
        %1373 = vmatprep.subr.mxu0 0.0
        %1374 = vmatpush1.msra.mxu0 0.0
        %1375 = vmatprep.subr.mxu0 0.0
        %1376 = vmatpush1.msra.mxu0 0.0
        %1377 = vmatprep.subr.mxu0 0.0
        %1378 = vmatpush1.msra.mxu0 0.0
        %1379 = vmatprep.subr.mxu0 0.0
        %1380 = vmatpush1.msra.mxu0 0.0
        %1381 = vmatprep.subr.mxu0 0.0
        %1382 = vmatpush1.msra.mxu0 0.0
        %1383 = vmatprep.subr.mxu0 0.0
        %1384 = vmatpush1.msra.mxu0 0.0
        %1385 = vmatprep.subr.mxu0 0.0
        %1386 = vmatpush1.msra.mxu0 0.0
        %1387 = vmatprep.subr.mxu0 0.0
        %1388 = vmatpush1.msra.mxu0 0.0
        %1389 = vmatprep.subr.mxu0 0.0
        %1390 = vmatpush1.msra.mxu0 0.0
        %1391 = vmatprep.subr.mxu0 0.0
        %1392 = vmatpush1.msra.mxu0 0.0
        %1393 = vmatprep.subr.mxu0 0.0
        %1394 = vmatpush1.msra.mxu0 0.0
        %1395 = vmatprep.subr.mxu0 0.0
        %1396 = vmatpush1.msra.mxu0 0.0
        %1397 = vmatprep.subr.mxu0 0.0
        %1398 = vmatpush1.msra.mxu0 0.0
        %1399 = vmatprep.subr.mxu0 0.0
        %1400 = vmatpush1.msra.mxu0 0.0
        %1401 = vmatprep.subr.mxu0 0.0
        %1402 = vmatpush1.msra.mxu0 0.0
        %1403 = vmatprep.subr.mxu0 0.0
        %1404 = vmatpush1.msra.mxu0 0.0
        %1405 = vmatprep.subr.mxu0 0.0
        %1406 = vmatpush1.msra.mxu0 0.0
        %1407 = vmatprep.subr.mxu0 0.0
        %1408 = vmatpush1.msra.mxu0 0.0
        %1409 = vmatprep.subr.mxu0 0.0
        %1410 = vmatpush1.msra.mxu0 0.0
        %1411 = vmatprep.subr.mxu0 0.0
        %1412 = vmatpush1.msra.mxu0 0.0
        %1413 = vmatprep.subr.mxu0 0.0
        %1414 = vmatpush1.msra.mxu0 0.0
        %1415 = vmatprep.subr.mxu0 0.0
        %1416 = vmatpush1.msra.mxu0 0.0
        %1417 = vmatprep.mubr.f32.mxu0 0.0
        %1418 = vmatmul.mubr.f32.gmra.mrb[0].mxu0 %v1067
        %v1419 = vpop.f32.mrb[0].mxu0
        %v1420 = vadd.f32 0.0, %v1419
        %v1421 = vpop.f32.mrb[0].mxu0
        %1422 = vdwg.mxu0
        %1423 = vmatprep.subr.mxu0 0.0
        %1424 = vmatpush1.msra.mxu0 %v650
        %1425 = vmatprep.subr.mxu0 0.0
        %1426 = vmatpush1.msra.mxu0 %v655
        %1427 = vmatprep.subr.mxu0 0.0
        %1428 = vmatpush1.msra.mxu0 0.0
        %1429 = vmatprep.subr.mxu0 0.0
        %1430 = vmatpush1.msra.mxu0 0.0
        %1431 = vmatprep.subr.mxu0 0.0
        %1432 = vmatpush1.msra.mxu0 0.0
        %1433 = vmatprep.subr.mxu0 0.0
        %1434 = vmatpush1.msra.mxu0 0.0
        %1435 = vmatprep.subr.mxu0 0.0
        %1436 = vmatpush1.msra.mxu0 0.0
        %1437 = vmatprep.subr.mxu0 0.0
        %1438 = vmatpush1.msra.mxu0 0.0
        %1439 = vmatprep.subr.mxu0 0.0
        %1440 = vmatpush1.msra.mxu0 0.0
        %1441 = vmatprep.subr.mxu0 0.0
        %1442 = vmatpush1.msra.mxu0 0.0
        %1443 = vmatprep.subr.mxu0 0.0
        %1444 = vmatpush1.msra.mxu0 0.0
        %1445 = vmatprep.subr.mxu0 0.0
        %1446 = vmatpush1.msra.mxu0 0.0
        %1447 = vmatprep.subr.mxu0 0.0
        %1448 = vmatpush1.msra.mxu0 0.0
        %1449 = vmatprep.subr.mxu0 0.0
        %1450 = vmatpush1.msra.mxu0 0.0
        %1451 = vmatprep.subr.mxu0 0.0
        %1452 = vmatpush1.msra.mxu0 0.0
        %1453 = vmatprep.subr.mxu0 0.0
        %1454 = vmatpush1.msra.mxu0 0.0
        %1455 = vmatprep.subr.mxu0 0.0
        %1456 = vmatpush1.msra.mxu0 0.0
        %1457 = vmatprep.subr.mxu0 0.0
        %1458 = vmatpush1.msra.mxu0 0.0
        %1459 = vmatprep.subr.mxu0 0.0
        %1460 = vmatpush1.msra.mxu0 0.0
        %1461 = vmatprep.subr.mxu0 0.0
        %1462 = vmatpush1.msra.mxu0 0.0
        %1463 = vmatprep.subr.mxu0 0.0
        %1464 = vmatpush1.msra.mxu0 0.0
        %1465 = vmatprep.subr.mxu0 0.0
        %1466 = vmatpush1.msra.mxu0 0.0
        %1467 = vmatprep.subr.mxu0 0.0
        %1468 = vmatpush1.msra.mxu0 0.0
        %1469 = vmatprep.subr.mxu0 0.0
        %1470 = vmatpush1.msra.mxu0 0.0
        %1471 = vmatprep.subr.mxu0 0.0
        %1472 = vmatpush1.msra.mxu0 0.0
        %1473 = vmatprep.subr.mxu0 0.0
        %1474 = vmatpush1.msra.mxu0 0.0
        %1475 = vmatprep.subr.mxu0 0.0
        %1476 = vmatpush1.msra.mxu0 0.0
        %1477 = vmatprep.subr.mxu0 0.0
        %1478 = vmatpush1.msra.mxu0 0.0
        %1479 = vmatprep.subr.mxu0 0.0
        %1480 = vmatpush1.msra.mxu0 0.0
        %1481 = vmatprep.subr.mxu0 0.0
        %1482 = vmatpush1.msra.mxu0 0.0
        %1483 = vmatprep.subr.mxu0 0.0
        %1484 = vmatpush1.msra.mxu0 0.0
        %1485 = vmatprep.subr.mxu0 0.0
        %1486 = vmatpush1.msra.mxu0 0.0
        %1487 = vmatprep.mubr.f32.mxu0 0.0
        %1488 = vmatmul.mubr.f32.gmra.mrb[0].mxu0 %v1067
        %v1489 = vpop.f32.mrb[0].mxu0
        %v1490 = vadd.f32 0.0, %v1489
        %v1491 = vpop.f32.mrb[0].mxu0
        %1492 = vdwg.mxu0
        %1493 = vmatprep.subr.mxu0 0.0
        %1494 = vmatpush1.msra.mxu0 %v660
        %1495 = vmatprep.subr.mxu0 0.0
        %1496 = vmatpush1.msra.mxu0 %v665
        %1497 = vmatprep.subr.mxu0 0.0
        %1498 = vmatpush1.msra.mxu0 0.0
        %1499 = vmatprep.subr.mxu0 0.0
        %1500 = vmatpush1.msra.mxu0 0.0
        %1501 = vmatprep.subr.mxu0 0.0
        %1502 = vmatpush1.msra.mxu0 0.0
        %1503 = vmatprep.subr.mxu0 0.0
        %1504 = vmatpush1.msra.mxu0 0.0
        %1505 = vmatprep.subr.mxu0 0.0
        %1506 = vmatpush1.msra.mxu0 0.0
        %1507 = vmatprep.subr.mxu0 0.0
        %1508 = vmatpush1.msra.mxu0 0.0
        %1509 = vmatprep.subr.mxu0 0.0
        %1510 = vmatpush1.msra.mxu0 0.0
        %1511 = vmatprep.subr.mxu0 0.0
        %1512 = vmatpush1.msra.mxu0 0.0
        %1513 = vmatprep.subr.mxu0 0.0
        %1514 = vmatpush1.msra.mxu0 0.0
        %1515 = vmatprep.subr.mxu0 0.0
        %1516 = vmatpush1.msra.mxu0 0.0
        %1517 = vmatprep.subr.mxu0 0.0
        %1518 = vmatpush1.msra.mxu0 0.0
        %1519 = vmatprep.subr.mxu0 0.0
        %1520 = vmatpush1.msra.mxu0 0.0
        %1521 = vmatprep.subr.mxu0 0.0
        %1522 = vmatpush1.msra.mxu0 0.0
        %1523 = vmatprep.subr.mxu0 0.0
        %1524 = vmatpush1.msra.mxu0 0.0
        %1525 = vmatprep.subr.mxu0 0.0
        %1526 = vmatpush1.msra.mxu0 0.0
        %1527 = vmatprep.subr.mxu0 0.0
        %1528 = vmatpush1.msra.mxu0 0.0
        %1529 = vmatprep.subr.mxu0 0.0
        %1530 = vmatpush1.msra.mxu0 0.0
        %1531 = vmatprep.subr.mxu0 0.0
        %1532 = vmatpush1.msra.mxu0 0.0
        %1533 = vmatprep.subr.mxu0 0.0
        %1534 = vmatpush1.msra.mxu0 0.0
        %1535 = vmatprep.subr.mxu0 0.0
        %1536 = vmatpush1.msra.mxu0 0.0
        %1537 = vmatprep.subr.mxu0 0.0
        %1538 = vmatpush1.msra.mxu0 0.0
        %1539 = vmatprep.subr.mxu0 0.0
        %1540 = vmatpush1.msra.mxu0 0.0
        %1541 = vmatprep.subr.mxu0 0.0
        %1542 = vmatpush1.msra.mxu0 0.0
        %1543 = vmatprep.subr.mxu0 0.0
        %1544 = vmatpush1.msra.mxu0 0.0
        %1545 = vmatprep.subr.mxu0 0.0
        %1546 = vmatpush1.msra.mxu0 0.0
        %1547 = vmatprep.subr.mxu0 0.0
        %1548 = vmatpush1.msra.mxu0 0.0
        %1549 = vmatprep.subr.mxu0 0.0
        %1550 = vmatpush1.msra.mxu0 0.0
        %1551 = vmatprep.subr.mxu0 0.0
        %1552 = vmatpush1.msra.mxu0 0.0
        %1553 = vmatprep.subr.mxu0 0.0
        %1554 = vmatpush1.msra.mxu0 0.0
        %1555 = vmatprep.subr.mxu0 0.0
        %1556 = vmatpush1.msra.mxu0 0.0
        %1557 = vmatprep.mubr.f32.mxu0 0.0
        %1558 = vmatmul.mubr.f32.gmra.mrb[0].mxu0 %v1067
        %v1559 = vpop.f32.mrb[0].mxu0
        %v1560 = vadd.f32 0.0, %v1559
        %v1561 = vpop.f32.mrb[0].mxu0
        %1562 = vdwg.mxu0
        %1563 = vmatprep.subr.mxu0 0.0
        %1564 = vmatpush1.msra.mxu0 %v670
        %1565 = vmatprep.subr.mxu0 0.0
        %1566 = vmatpush1.msra.mxu0 %v675
        %1567 = vmatprep.subr.mxu0 0.0
        %1568 = vmatpush1.msra.mxu0 0.0
        %1569 = vmatprep.subr.mxu0 0.0
        %1570 = vmatpush1.msra.mxu0 0.0
        %1571 = vmatprep.subr.mxu0 0.0
        %1572 = vmatpush1.msra.mxu0 0.0
        %1573 = vmatprep.subr.mxu0 0.0
        %1574 = vmatpush1.msra.mxu0 0.0
        %1575 = vmatprep.subr.mxu0 0.0
        %1576 = vmatpush1.msra.mxu0 0.0
        %1577 = vmatprep.subr.mxu0 0.0
        %1578 = vmatpush1.msra.mxu0 0.0
        %1579 = vmatprep.subr.mxu0 0.0
        %1580 = vmatpush1.msra.mxu0 0.0
        %1581 = vmatprep.subr.mxu0 0.0
        %1582 = vmatpush1.msra.mxu0 0.0
        %1583 = vmatprep.subr.mxu0 0.0
        %1584 = vmatpush1.msra.mxu0 0.0
        %1585 = vmatprep.subr.mxu0 0.0
        %1586 = vmatpush1.msra.mxu0 0.0
        %1587 = vmatprep.subr.mxu0 0.0
        %1588 = vmatpush1.msra.mxu0 0.0
        %1589 = vmatprep.subr.mxu0 0.0
        %1590 = vmatpush1.msra.mxu0 0.0
        %1591 = vmatprep.subr.mxu0 0.0
        %1592 = vmatpush1.msra.mxu0 0.0
        %1593 = vmatprep.subr.mxu0 0.0
        %1594 = vmatpush1.msra.mxu0 0.0
        %1595 = vmatprep.subr.mxu0 0.0
        %1596 = vmatpush1.msra.mxu0 0.0
        %1597 = vmatprep.subr.mxu0 0.0
        %1598 = vmatpush1.msra.mxu0 0.0
        %1599 = vmatprep.subr.mxu0 0.0
        %1600 = vmatpush1.msra.mxu0 0.0
        %1601 = vmatprep.subr.mxu0 0.0
        %1602 = vmatpush1.msra.mxu0 0.0
        %1603 = vmatprep.subr.mxu0 0.0
        %1604 = vmatpush1.msra.mxu0 0.0
        %1605 = vmatprep.subr.mxu0 0.0
        %1606 = vmatpush1.msra.mxu0 0.0
        %1607 = vmatprep.subr.mxu0 0.0
        %1608 = vmatpush1.msra.mxu0 0.0
        %1609 = vmatprep.subr.mxu0 0.0
        %1610 = vmatpush1.msra.mxu0 0.0
        %1611 = vmatprep.subr.mxu0 0.0
        %1612 = vmatpush1.msra.mxu0 0.0
        %1613 = vmatprep.subr.mxu0 0.0
        %1614 = vmatpush1.msra.mxu0 0.0
        %1615 = vmatprep.subr.mxu0 0.0
        %1616 = vmatpush1.msra.mxu0 0.0
        %1617 = vmatprep.subr.mxu0 0.0
        %1618 = vmatpush1.msra.mxu0 0.0
        %1619 = vmatprep.subr.mxu0 0.0
        %1620 = vmatpush1.msra.mxu0 0.0
        %1621 = vmatprep.subr.mxu0 0.0
        %1622 = vmatpush1.msra.mxu0 0.0
        %1623 = vmatprep.subr.mxu0 0.0
        %1624 = vmatpush1.msra.mxu0 0.0
        %1625 = vmatprep.subr.mxu0 0.0
        %1626 = vmatpush1.msra.mxu0 0.0
        %1627 = vmatprep.mubr.f32.mxu0 0.0
        %1628 = vmatmul.mubr.f32.gmra.mrb[0].mxu0 %v1067
        %v1629 = vpop.f32.mrb[0].mxu0
        %v1630 = vadd.f32 0.0, %v1629
        %v1631 = vpop.f32.mrb[0].mxu0
        %1632 = vdwg.mxu0
        %1633 = vmatprep.subr.mxu0 0.0
        %1634 = vmatpush1.msra.mxu0 %v745
        %1635 = vmatprep.subr.mxu0 0.0
        %1636 = vmatpush1.msra.mxu0 %v750
        %1637 = vmatprep.subr.mxu0 0.0
        %1638 = vmatpush1.msra.mxu0 0.0
        %1639 = vmatprep.subr.mxu0 0.0
        %1640 = vmatpush1.msra.mxu0 0.0
        %1641 = vmatprep.subr.mxu0 0.0
        %1642 = vmatpush1.msra.mxu0 0.0
        %1643 = vmatprep.subr.mxu0 0.0
        %1644 = vmatpush1.msra.mxu0 0.0
        %1645 = vmatprep.subr.mxu0 0.0
        %1646 = vmatpush1.msra.mxu0 0.0
        %1647 = vmatprep.subr.mxu0 0.0
        %1648 = vmatpush1.msra.mxu0 0.0
        %1649 = vmatprep.subr.mxu0 0.0
        %1650 = vmatpush1.msra.mxu0 0.0
        %1651 = vmatprep.subr.mxu0 0.0
        %1652 = vmatpush1.msra.mxu0 0.0
        %1653 = vmatprep.subr.mxu0 0.0
        %1654 = vmatpush1.msra.mxu0 0.0
        %1655 = vmatprep.subr.mxu0 0.0
        %1656 = vmatpush1.msra.mxu0 0.0
        %1657 = vmatprep.subr.mxu0 0.0
        %1658 = vmatpush1.msra.mxu0 0.0
        %1659 = vmatprep.subr.mxu0 0.0
        %1660 = vmatpush1.msra.mxu0 0.0
        %1661 = vmatprep.subr.mxu0 0.0
        %1662 = vmatpush1.msra.mxu0 0.0
        %1663 = vmatprep.subr.mxu0 0.0
        %1664 = vmatpush1.msra.mxu0 0.0
        %1665 = vmatprep.subr.mxu0 0.0
        %1666 = vmatpush1.msra.mxu0 0.0
        %1667 = vmatprep.subr.mxu0 0.0
        %1668 = vmatpush1.msra.mxu0 0.0
        %1669 = vmatprep.subr.mxu0 0.0
        %1670 = vmatpush1.msra.mxu0 0.0
        %1671 = vmatprep.subr.mxu0 0.0
        %1672 = vmatpush1.msra.mxu0 0.0
        %1673 = vmatprep.subr.mxu0 0.0
        %1674 = vmatpush1.msra.mxu0 0.0
        %1675 = vmatprep.subr.mxu0 0.0
        %1676 = vmatpush1.msra.mxu0 0.0
        %1677 = vmatprep.subr.mxu0 0.0
        %1678 = vmatpush1.msra.mxu0 0.0
        %1679 = vmatprep.subr.mxu0 0.0
        %1680 = vmatpush1.msra.mxu0 0.0
        %1681 = vmatprep.subr.mxu0 0.0
        %1682 = vmatpush1.msra.mxu0 0.0
        %1683 = vmatprep.subr.mxu0 0.0
        %1684 = vmatpush1.msra.mxu0 0.0
        %1685 = vmatprep.subr.mxu0 0.0
        %1686 = vmatpush1.msra.mxu0 0.0
        %1687 = vmatprep.subr.mxu0 0.0
        %1688 = vmatpush1.msra.mxu0 0.0
        %1689 = vmatprep.subr.mxu0 0.0
        %1690 = vmatpush1.msra.mxu0 0.0
        %1691 = vmatprep.subr.mxu0 0.0
        %1692 = vmatpush1.msra.mxu0 0.0
        %1693 = vmatprep.subr.mxu0 0.0
        %1694 = vmatpush1.msra.mxu0 0.0
        %1695 = vmatprep.subr.mxu0 0.0
        %1696 = vmatpush1.msra.mxu0 0.0
        %1697 = vmatprep.mubr.f32.mxu0 0.0
        %1698 = vmatmul.mubr.f32.gmra.mrb[0].mxu0 %v784
        %v1699 = vpop.f32.mrb[0].mxu0
        %v1700 = vadd.f32 %v1420, %v1699
        %v1701 = vpop.f32.mrb[0].mxu0
        %1702 = vdwg.mxu0
        %1703 = vmatprep.subr.mxu0 0.0
        %1704 = vmatpush1.msra.mxu0 %v755
        %1705 = vmatprep.subr.mxu0 0.0
        %1706 = vmatpush1.msra.mxu0 %v760
        %1707 = vmatprep.subr.mxu0 0.0
        %1708 = vmatpush1.msra.mxu0 0.0
        %1709 = vmatprep.subr.mxu0 0.0
        %1710 = vmatpush1.msra.mxu0 0.0
        %1711 = vmatprep.subr.mxu0 0.0
        %1712 = vmatpush1.msra.mxu0 0.0
        %1713 = vmatprep.subr.mxu0 0.0
        %1714 = vmatpush1.msra.mxu0 0.0
        %1715 = vmatprep.subr.mxu0 0.0
        %1716 = vmatpush1.msra.mxu0 0.0
        %1717 = vmatprep.subr.mxu0 0.0
        %1718 = vmatpush1.msra.mxu0 0.0
        %1719 = vmatprep.subr.mxu0 0.0
        %1720 = vmatpush1.msra.mxu0 0.0
        %1721 = vmatprep.subr.mxu0 0.0
        %1722 = vmatpush1.msra.mxu0 0.0
        %1723 = vmatprep.subr.mxu0 0.0
        %1724 = vmatpush1.msra.mxu0 0.0
        %1725 = vmatprep.subr.mxu0 0.0
        %1726 = vmatpush1.msra.mxu0 0.0
        %1727 = vmatprep.subr.mxu0 0.0
        %1728 = vmatpush1.msra.mxu0 0.0
        %1729 = vmatprep.subr.mxu0 0.0
        %1730 = vmatpush1.msra.mxu0 0.0
        %1731 = vmatprep.subr.mxu0 0.0
        %1732 = vmatpush1.msra.mxu0 0.0
        %1733 = vmatprep.subr.mxu0 0.0
        %1734 = vmatpush1.msra.mxu0 0.0
        %1735 = vmatprep.subr.mxu0 0.0
        %1736 = vmatpush1.msra.mxu0 0.0
        %1737 = vmatprep.subr.mxu0 0.0
        %1738 = vmatpush1.msra.mxu0 0.0
        %1739 = vmatprep.subr.mxu0 0.0
        %1740 = vmatpush1.msra.mxu0 0.0
        %1741 = vmatprep.subr.mxu0 0.0
        %1742 = vmatpush1.msra.mxu0 0.0
        %1743 = vmatprep.subr.mxu0 0.0
        %1744 = vmatpush1.msra.mxu0 0.0
        %1745 = vmatprep.subr.mxu0 0.0
        %1746 = vmatpush1.msra.mxu0 0.0
        %1747 = vmatprep.subr.mxu0 0.0
        %1748 = vmatpush1.msra.mxu0 0.0
        %1749 = vmatprep.subr.mxu0 0.0
        %1750 = vmatpush1.msra.mxu0 0.0
        %1751 = vmatprep.subr.mxu0 0.0
        %1752 = vmatpush1.msra.mxu0 0.0
        %1753 = vmatprep.subr.mxu0 0.0
        %1754 = vmatpush1.msra.mxu0 0.0
        %1755 = vmatprep.subr.mxu0 0.0
        %1756 = vmatpush1.msra.mxu0 0.0
        %1757 = vmatprep.subr.mxu0 0.0
        %1758 = vmatpush1.msra.mxu0 0.0
        %1759 = vmatprep.subr.mxu0 0.0
        %1760 = vmatpush1.msra.mxu0 0.0
        %1761 = vmatprep.subr.mxu0 0.0
        %1762 = vmatpush1.msra.mxu0 0.0
        %1763 = vmatprep.subr.mxu0 0.0
        %1764 = vmatpush1.msra.mxu0 0.0
        %1765 = vmatprep.subr.mxu0 0.0
        %1766 = vmatpush1.msra.mxu0 0.0
        %1767 = vmatprep.mubr.f32.mxu0 0.0
        %1768 = vmatmul.mubr.f32.gmra.mrb[0].mxu0 %v784
        %v1769 = vpop.f32.mrb[0].mxu0
        %v1770 = vadd.f32 %v1490, %v1769
        %v1771 = vpop.f32.mrb[0].mxu0
        %1772 = vdwg.mxu0
        %1773 = vmatprep.subr.mxu0 0.0
        %1774 = vmatpush1.msra.mxu0 %v765
        %1775 = vmatprep.subr.mxu0 0.0
        %1776 = vmatpush1.msra.mxu0 %v770
        %1777 = vmatprep.subr.mxu0 0.0
        %1778 = vmatpush1.msra.mxu0 0.0
        %1779 = vmatprep.subr.mxu0 0.0
        %1780 = vmatpush1.msra.mxu0 0.0
        %1781 = vmatprep.subr.mxu0 0.0
        %1782 = vmatpush1.msra.mxu0 0.0
        %1783 = vmatprep.subr.mxu0 0.0
        %1784 = vmatpush1.msra.mxu0 0.0
        %1785 = vmatprep.subr.mxu0 0.0
        %1786 = vmatpush1.msra.mxu0 0.0
        %1787 = vmatprep.subr.mxu0 0.0
        %1788 = vmatpush1.msra.mxu0 0.0
        %1789 = vmatprep.subr.mxu0 0.0
        %1790 = vmatpush1.msra.mxu0 0.0
        %1791 = vmatprep.subr.mxu0 0.0
        %1792 = vmatpush1.msra.mxu0 0.0
        %1793 = vmatprep.subr.mxu0 0.0
        %1794 = vmatpush1.msra.mxu0 0.0
        %1795 = vmatprep.subr.mxu0 0.0
        %1796 = vmatpush1.msra.mxu0 0.0
        %1797 = vmatprep.subr.mxu0 0.0
        %1798 = vmatpush1.msra.mxu0 0.0
        %1799 = vmatprep.subr.mxu0 0.0
        %1800 = vmatpush1.msra.mxu0 0.0
        %1801 = vmatprep.subr.mxu0 0.0
        %1802 = vmatpush1.msra.mxu0 0.0
        %1803 = vmatprep.subr.mxu0 0.0
        %1804 = vmatpush1.msra.mxu0 0.0
        %1805 = vmatprep.subr.mxu0 0.0
        %1806 = vmatpush1.msra.mxu0 0.0
        %1807 = vmatprep.subr.mxu0 0.0
        %1808 = vmatpush1.msra.mxu0 0.0
        %1809 = vmatprep.subr.mxu0 0.0
        %1810 = vmatpush1.msra.mxu0 0.0
        %1811 = vmatprep.subr.mxu0 0.0
        %1812 = vmatpush1.msra.mxu0 0.0
        %1813 = vmatprep.subr.mxu0 0.0
        %1814 = vmatpush1.msra.mxu0 0.0
        %1815 = vmatprep.subr.mxu0 0.0
        %1816 = vmatpush1.msra.mxu0 0.0
        %1817 = vmatprep.subr.mxu0 0.0
        %1818 = vmatpush1.msra.mxu0 0.0
        %1819 = vmatprep.subr.mxu0 0.0
        %1820 = vmatpush1.msra.mxu0 0.0
        %1821 = vmatprep.subr.mxu0 0.0
        %1822 = vmatpush1.msra.mxu0 0.0
        %1823 = vmatprep.subr.mxu0 0.0
        %1824 = vmatpush1.msra.mxu0 0.0
        %1825 = vmatprep.subr.mxu0 0.0
        %1826 = vmatpush1.msra.mxu0 0.0
        %1827 = vmatprep.subr.mxu0 0.0
        %1828 = vmatpush1.msra.mxu0 0.0
        %1829 = vmatprep.subr.mxu0 0.0
        %1830 = vmatpush1.msra.mxu0 0.0
        %1831 = vmatprep.subr.mxu0 0.0
        %1832 = vmatpush1.msra.mxu0 0.0
        %1833 = vmatprep.subr.mxu0 0.0
        %1834 = vmatpush1.msra.mxu0 0.0
        %1835 = vmatprep.subr.mxu0 0.0
        %1836 = vmatpush1.msra.mxu0 0.0
        %1837 = vmatprep.mubr.f32.mxu0 0.0
        %1838 = vmatmul.mubr.f32.gmra.mrb[0].mxu0 %v784
        %v1839 = vpop.f32.mrb[0].mxu0
        %v1840 = vadd.f32 %v1560, %v1839
        %v1841 = vpop.f32.mrb[0].mxu0
        %1842 = vdwg.mxu0
        %1843 = vmatprep.subr.mxu0 0.0
        %1844 = vmatpush1.msra.mxu0 %v775
        %1845 = vmatprep.subr.mxu0 0.0
        %1846 = vmatpush1.msra.mxu0 %v780
        %1847 = vmatprep.subr.mxu0 0.0
        %1848 = vmatpush1.msra.mxu0 0.0
        %1849 = vmatprep.subr.mxu0 0.0
        %1850 = vmatpush1.msra.mxu0 0.0
        %1851 = vmatprep.subr.mxu0 0.0
        %1852 = vmatpush1.msra.mxu0 0.0
        %1853 = vmatprep.subr.mxu0 0.0
        %1854 = vmatpush1.msra.mxu0 0.0
        %1855 = vmatprep.subr.mxu0 0.0
        %1856 = vmatpush1.msra.mxu0 0.0
        %1857 = vmatprep.subr.mxu0 0.0
        %1858 = vmatpush1.msra.mxu0 0.0
        %1859 = vmatprep.subr.mxu0 0.0
        %1860 = vmatpush1.msra.mxu0 0.0
        %1861 = vmatprep.subr.mxu0 0.0
        %1862 = vmatpush1.msra.mxu0 0.0
        %1863 = vmatprep.subr.mxu0 0.0
        %1864 = vmatpush1.msra.mxu0 0.0
        %1865 = vmatprep.subr.mxu0 0.0
        %1866 = vmatpush1.msra.mxu0 0.0
        %1867 = vmatprep.subr.mxu0 0.0
        %1868 = vmatpush1.msra.mxu0 0.0
        %1869 = vmatprep.subr.mxu0 0.0
        %1870 = vmatpush1.msra.mxu0 0.0
        %1871 = vmatprep.subr.mxu0 0.0
        %1872 = vmatpush1.msra.mxu0 0.0
        %1873 = vmatprep.subr.mxu0 0.0
        %1874 = vmatpush1.msra.mxu0 0.0
        %1875 = vmatprep.subr.mxu0 0.0
        %1876 = vmatpush1.msra.mxu0 0.0
        %1877 = vmatprep.subr.mxu0 0.0
        %1878 = vmatpush1.msra.mxu0 0.0
        %1879 = vmatprep.subr.mxu0 0.0
        %1880 = vmatpush1.msra.mxu0 0.0
        %1881 = vmatprep.subr.mxu0 0.0
        %1882 = vmatpush1.msra.mxu0 0.0
        %1883 = vmatprep.subr.mxu0 0.0
        %1884 = vmatpush1.msra.mxu0 0.0
        %1885 = vmatprep.subr.mxu0 0.0
        %1886 = vmatpush1.msra.mxu0 0.0
        %1887 = vmatprep.subr.mxu0 0.0
        %1888 = vmatpush1.msra.mxu0 0.0
        %1889 = vmatprep.subr.mxu0 0.0
        %1890 = vmatpush1.msra.mxu0 0.0
        %1891 = vmatprep.subr.mxu0 0.0
        %1892 = vmatpush1.msra.mxu0 0.0
        %1893 = vmatprep.subr.mxu0 0.0
        %1894 = vmatpush1.msra.mxu0 0.0
        %1895 = vmatprep.subr.mxu0 0.0
        %1896 = vmatpush1.msra.mxu0 0.0
        %1897 = vmatprep.subr.mxu0 0.0
        %1898 = vmatpush1.msra.mxu0 0.0
        %1899 = vmatprep.subr.mxu0 0.0
        %1900 = vmatpush1.msra.mxu0 0.0
        %1901 = vmatprep.subr.mxu0 0.0
        %1902 = vmatpush1.msra.mxu0 0.0
        %1903 = vmatprep.subr.mxu0 0.0
        %1904 = vmatpush1.msra.mxu0 0.0
        %1905 = vmatprep.subr.mxu0 0.0
        %1906 = vmatpush1.msra.mxu0 0.0
        %1907 = vmatprep.mubr.f32.mxu0 0.0
        %1908 = vmatmul.mubr.f32.gmra.mrb[0].mxu0 %v784
        %v1909 = vpop.f32.mrb[0].mxu0
        %v1910 = vadd.f32 %v1630, %v1909
        %v1911 = vpop.f32.mrb[0].mxu0
        %1912 = vdwg.mxu0
        %v1913 = vmul.f32 %v534, %v1349
        %v1914 = vmul.f32 %v535, %v1350
        %v1915 = vmul.f32 %v534, %v1351
        %v1916 = vmul.f32 %v535, %v1352
        %v1917 = vmul.f32 %v534, %v1700
        %v1918 = vmul.f32 %v535, %v1770
        %v1919 = vmul.f32 %v534, %v1840
        %v1920 = vmul.f32 %v535, %v1910
        %vm1921 = vcmask 64512
        %v1923 = vsel %vm1921, %v1913, 0
        %v1926 = vsel %vm1921, %v1914, 0
        %v1929 = vsel %vm1921, %v1915, 0
        %v1932 = vsel %vm1921, %v1916, 0
        %1934 = vmatprep.subr.mxu0 0.0
        %1935 = vmatpush1.msra.mxu0 %v540
        %1936 = vmatprep.subr.mxu0 0.0
        %1937 = vmatpush1.msra.mxu0 0.0
        %1938 = vmatprep.subr.mxu0 0.0
        %1939 = vmatpush1.msra.mxu0 0.0
        %1940 = vmatprep.subr.mxu0 0.0
        %1941 = vmatpush1.msra.mxu0 0.0
        %1942 = vmatprep.subr.mxu0 0.0
        %1943 = vmatpush1.msra.mxu0 0.0
        %1944 = vmatprep.subr.mxu0 0.0
        %1945 = vmatpush1.msra.mxu0 0.0
        %1946 = vmatprep.subr.mxu0 0.0
        %1947 = vmatpush1.msra.mxu0 0.0
        %1948 = vmatprep.subr.mxu0 0.0
        %1949 = vmatpush1.msra.mxu0 0.0
        %1950 = vmatprep.subr.mxu0 0.0
        %1951 = vmatpush1.msra.mxu0 0.0
        %1952 = vmatprep.subr.mxu0 0.0
        %1953 = vmatpush1.msra.mxu0 0.0
        %1954 = vmatprep.subr.mxu0 0.0
        %1955 = vmatpush1.msra.mxu0 0.0
        %1956 = vmatprep.subr.mxu0 0.0
        %1957 = vmatpush1.msra.mxu0 0.0
        %1958 = vmatprep.subr.mxu0 0.0
        %1959 = vmatpush1.msra.mxu0 0.0
        %1960 = vmatprep.subr.mxu0 0.0
        %1961 = vmatpush1.msra.mxu0 0.0
        %1962 = vmatprep.subr.mxu0 0.0
        %1963 = vmatpush1.msra.mxu0 0.0
        %1964 = vmatprep.subr.mxu0 0.0
        %1965 = vmatpush1.msra.mxu0 0.0
        %1966 = vmatprep.subr.mxu0 0.0
        %1967 = vmatpush1.msra.mxu0 0.0
        %1968 = vmatprep.subr.mxu0 0.0
        %1969 = vmatpush1.msra.mxu0 0.0
        %1970 = vmatprep.subr.mxu0 0.0
        %1971 = vmatpush1.msra.mxu0 0.0
        %1972 = vmatprep.subr.mxu0 0.0
        %1973 = vmatpush1.msra.mxu0 0.0
        %1974 = vmatprep.subr.mxu0 0.0
        %1975 = vmatpush1.msra.mxu0 0.0
        %1976 = vmatprep.subr.mxu0 0.0
        %1977 = vmatpush1.msra.mxu0 0.0
        %1978 = vmatprep.subr.mxu0 0.0
        %1979 = vmatpush1.msra.mxu0 0.0
        %1980 = vmatprep.subr.mxu0 0.0
        %1981 = vmatpush1.msra.mxu0 0.0
        %1982 = vmatprep.subr.mxu0 0.0
        %1983 = vmatpush1.msra.mxu0 0.0
        %1984 = vmatprep.subr.mxu0 0.0
        %1985 = vmatpush1.msra.mxu0 0.0
        %1986 = vmatprep.subr.mxu0 0.0
        %1987 = vmatpush1.msra.mxu0 0.0
        %1988 = vmatprep.subr.mxu0 0.0
        %1989 = vmatpush1.msra.mxu0 0.0
        %1990 = vmatprep.subr.mxu0 0.0
        %1991 = vmatpush1.msra.mxu0 0.0
        %1992 = vmatprep.subr.mxu0 0.0
        %1993 = vmatpush1.msra.mxu0 0.0
        %1994 = vmatprep.subr.mxu0 0.0
        %1995 = vmatpush1.msra.mxu0 0.0
        %1996 = vmatprep.subr.mxu0 0.0
        %1997 = vmatpush1.msra.mxu0 0.0
        %1998 = vmatprep.mubr.f32.mxu0 0.0
        %1999 = vmatmul.mubr.f32.gmra.mrb[0].mxu0 %v1923
        %v2000 = vpop.f32.mrb[0].mxu0
        %v2001 = vadd.f32 0.0, %v2000
        %v2002 = vpop.f32.mrb[0].mxu0
        %2003 = vmatprep.mubr.f32.mxu0 0.0
        %2004 = vmatmul.mubr.f32.gmra.mrb[0].mxu0 %v1926
        %v2005 = vpop.f32.mrb[0].mxu0
        %v2006 = vadd.f32 0.0, %v2005
        %v2007 = vpop.f32.mrb[0].mxu0
        %2008 = vmatprep.mubr.f32.mxu0 0.0
        %2009 = vmatmul.mubr.f32.gmra.mrb[0].mxu0 %v1929
        %v2010 = vpop.f32.mrb[0].mxu0
        %v2011 = vadd.f32 0.0, %v2010
        %v2012 = vpop.f32.mrb[0].mxu0
        %2013 = vmatprep.mubr.f32.mxu0 0.0
        %2014 = vmatmul.mubr.f32.gmra.mrb[0].mxu0 %v1932
        %v2015 = vpop.f32.mrb[0].mxu0
        %v2016 = vadd.f32 0.0, %v2015
        %v2017 = vpop.f32.mrb[0].mxu0
        %2018 = vdwg.mxu0
        %v2020 = vsel %vm1921, %v1917, 0
        %v2023 = vsel %vm1921, %v1918, 0
        %v2026 = vsel %vm1921, %v1919, 0
        %v2029 = vsel %vm1921, %v1920, 0
        %2031 = vmatprep.subr.mxu0 0.0
        %2032 = vmatpush1.msra.mxu0 %v541
        %2033 = vmatprep.subr.mxu0 0.0
        %2034 = vmatpush1.msra.mxu0 0.0
        %2035 = vmatprep.subr.mxu0 0.0
        %2036 = vmatpush1.msra.mxu0 0.0
        %2037 = vmatprep.subr.mxu0 0.0
        %2038 = vmatpush1.msra.mxu0 0.0
        %2039 = vmatprep.subr.mxu0 0.0
        %2040 = vmatpush1.msra.mxu0 0.0
        %2041 = vmatprep.subr.mxu0 0.0
        %2042 = vmatpush1.msra.mxu0 0.0
        %2043 = vmatprep.subr.mxu0 0.0
        %2044 = vmatpush1.msra.mxu0 0.0
        %2045 = vmatprep.subr.mxu0 0.0
        %2046 = vmatpush1.msra.mxu0 0.0
        %2047 = vmatprep.subr.mxu0 0.0
        %2048 = vmatpush1.msra.mxu0 0.0
        %2049 = vmatprep.subr.mxu0 0.0
        %2050 = vmatpush1.msra.mxu0 0.0
        %2051 = vmatprep.subr.mxu0 0.0
        %2052 = vmatpush1.msra.mxu0 0.0
        %2053 = vmatprep.subr.mxu0 0.0
        %2054 = vmatpush1.msra.mxu0 0.0
        %2055 = vmatprep.subr.mxu0 0.0
        %2056 = vmatpush1.msra.mxu0 0.0
        %2057 = vmatprep.subr.mxu0 0.0
        %2058 = vmatpush1.msra.mxu0 0.0
        %2059 = vmatprep.subr.mxu0 0.0
        %2060 = vmatpush1.msra.mxu0 0.0
        %2061 = vmatprep.subr.mxu0 0.0
        %2062 = vmatpush1.msra.mxu0 0.0
        %2063 = vmatprep.subr.mxu0 0.0
        %2064 = vmatpush1.msra.mxu0 0.0
        %2065 = vmatprep.subr.mxu0 0.0
        %2066 = vmatpush1.msra.mxu0 0.0
        %2067 = vmatprep.subr.mxu0 0.0
        %2068 = vmatpush1.msra.mxu0 0.0
        %2069 = vmatprep.subr.mxu0 0.0
        %2070 = vmatpush1.msra.mxu0 0.0
        %2071 = vmatprep.subr.mxu0 0.0
        %2072 = vmatpush1.msra.mxu0 0.0
        %2073 = vmatprep.subr.mxu0 0.0
        %2074 = vmatpush1.msra.mxu0 0.0
        %2075 = vmatprep.subr.mxu0 0.0
        %2076 = vmatpush1.msra.mxu0 0.0
        %2077 = vmatprep.subr.mxu0 0.0
        %2078 = vmatpush1.msra.mxu0 0.0
        %2079 = vmatprep.subr.mxu0 0.0
        %2080 = vmatpush1.msra.mxu0 0.0
        %2081 = vmatprep.subr.mxu0 0.0
        %2082 = vmatpush1.msra.mxu0 0.0
        %2083 = vmatprep.subr.mxu0 0.0
        %2084 = vmatpush1.msra.mxu0 0.0
        %2085 = vmatprep.subr.mxu0 0.0
        %2086 = vmatpush1.msra.mxu0 0.0
        %2087 = vmatprep.subr.mxu0 0.0
        %2088 = vmatpush1.msra.mxu0 0.0
        %2089 = vmatprep.subr.mxu0 0.0
        %2090 = vmatpush1.msra.mxu0 0.0
        %2091 = vmatprep.subr.mxu0 0.0
        %2092 = vmatpush1.msra.mxu0 0.0
        %2093 = vmatprep.subr.mxu0 0.0
        %2094 = vmatpush1.msra.mxu0 0.0
        %2095 = vmatprep.mubr.f32.mxu0 0.0
        %2096 = vmatmul.mubr.f32.gmra.mrb[0].mxu0 %v2020
        %v2097 = vpop.f32.mrb[0].mxu0
        %v2098 = vadd.f32 0.0, %v2097
        %v2099 = vpop.f32.mrb[0].mxu0
        %2100 = vmatprep.mubr.f32.mxu0 0.0
        %2101 = vmatmul.mubr.f32.gmra.mrb[0].mxu0 %v2023
        %v2102 = vpop.f32.mrb[0].mxu0
        %v2103 = vadd.f32 0.0, %v2102
        %v2104 = vpop.f32.mrb[0].mxu0
        %2105 = vmatprep.mubr.f32.mxu0 0.0
        %2106 = vmatmul.mubr.f32.gmra.mrb[0].mxu0 %v2026
        %v2107 = vpop.f32.mrb[0].mxu0
        %v2108 = vadd.f32 0.0, %v2107
        %v2109 = vpop.f32.mrb[0].mxu0
        %2110 = vmatprep.mubr.f32.mxu0 0.0
        %2111 = vmatmul.mubr.f32.gmra.mrb[0].mxu0 %v2029
        %v2112 = vpop.f32.mrb[0].mxu0
        %v2113 = vadd.f32 0.0, %v2112
        %v2114 = vpop.f32.mrb[0].mxu0
        %2115 = vdwg.mxu0
        %v2116 = vsub.f32 %v2001, %v2098
        %v2117 = vsub.f32 %v2006, %v2103
        %v2118 = vsub.f32 %v2011, %v2108
        %v2119 = vsub.f32 %v2016, %v2113
        %2120 = vmatprep.subr.mxu0 0.0
        %2121 = vmatpush1.msra.mxu0 %v540
        %2122 = vmatprep.subr.mxu0 0.0
        %2123 = vmatpush1.msra.mxu0 0.0
        %2124 = vmatprep.subr.mxu0 0.0
        %2125 = vmatpush1.msra.mxu0 0.0
        %2126 = vmatprep.subr.mxu0 0.0
        %2127 = vmatpush1.msra.mxu0 0.0
        %2128 = vmatprep.subr.mxu0 0.0
        %2129 = vmatpush1.msra.mxu0 0.0
        %2130 = vmatprep.subr.mxu0 0.0
        %2131 = vmatpush1.msra.mxu0 0.0
        %2132 = vmatprep.subr.mxu0 0.0
        %2133 = vmatpush1.msra.mxu0 0.0
        %2134 = vmatprep.subr.mxu0 0.0
        %2135 = vmatpush1.msra.mxu0 0.0
        %2136 = vmatprep.subr.mxu0 0.0
        %2137 = vmatpush1.msra.mxu0 0.0
        %2138 = vmatprep.subr.mxu0 0.0
        %2139 = vmatpush1.msra.mxu0 0.0
        %2140 = vmatprep.subr.mxu0 0.0
        %2141 = vmatpush1.msra.mxu0 0.0
        %2142 = vmatprep.subr.mxu0 0.0
        %2143 = vmatpush1.msra.mxu0 0.0
        %2144 = vmatprep.subr.mxu0 0.0
        %2145 = vmatpush1.msra.mxu0 0.0
        %2146 = vmatprep.subr.mxu0 0.0
        %2147 = vmatpush1.msra.mxu0 0.0
        %2148 = vmatprep.subr.mxu0 0.0
        %2149 = vmatpush1.msra.mxu0 0.0
        %2150 = vmatprep.subr.mxu0 0.0
        %2151 = vmatpush1.msra.mxu0 0.0
        %2152 = vmatprep.subr.mxu0 0.0
        %2153 = vmatpush1.msra.mxu0 0.0
        %2154 = vmatprep.subr.mxu0 0.0
        %2155 = vmatpush1.msra.mxu0 0.0
        %2156 = vmatprep.subr.mxu0 0.0
        %2157 = vmatpush1.msra.mxu0 0.0
        %2158 = vmatprep.subr.mxu0 0.0
        %2159 = vmatpush1.msra.mxu0 0.0
        %2160 = vmatprep.subr.mxu0 0.0
        %2161 = vmatpush1.msra.mxu0 0.0
        %2162 = vmatprep.subr.mxu0 0.0
        %2163 = vmatpush1.msra.mxu0 0.0
        %2164 = vmatprep.subr.mxu0 0.0
        %2165 = vmatpush1.msra.mxu0 0.0
        %2166 = vmatprep.subr.mxu0 0.0
        %2167 = vmatpush1.msra.mxu0 0.0
        %2168 = vmatprep.subr.mxu0 0.0
        %2169 = vmatpush1.msra.mxu0 0.0
        %2170 = vmatprep.subr.mxu0 0.0
        %2171 = vmatpush1.msra.mxu0 0.0
        %2172 = vmatprep.subr.mxu0 0.0
        %2173 = vmatpush1.msra.mxu0 0.0
        %2174 = vmatprep.subr.mxu0 0.0
        %2175 = vmatpush1.msra.mxu0 0.0
        %2176 = vmatprep.subr.mxu0 0.0
        %2177 = vmatpush1.msra.mxu0 0.0
        %2178 = vmatprep.subr.mxu0 0.0
        %2179 = vmatpush1.msra.mxu0 0.0
        %2180 = vmatprep.subr.mxu0 0.0
        %2181 = vmatpush1.msra.mxu0 0.0
        %2182 = vmatprep.subr.mxu0 0.0
        %2183 = vmatpush1.msra.mxu0 0.0
        %2184 = vmatprep.mubr.f32.mxu0 0.0
        %2185 = vmatmul.mubr.f32.gmra.mrb[0].mxu0 %v2020
        %v2186 = vpop.f32.mrb[0].mxu0
        %v2187 = vadd.f32 0.0, %v2186
        %v2188 = vpop.f32.mrb[0].mxu0
        %2189 = vmatprep.mubr.f32.mxu0 0.0
        %2190 = vmatmul.mubr.f32.gmra.mrb[0].mxu0 %v2023
        %v2191 = vpop.f32.mrb[0].mxu0
        %v2192 = vadd.f32 0.0, %v2191
        %v2193 = vpop.f32.mrb[0].mxu0
        %2194 = vmatprep.mubr.f32.mxu0 0.0
        %2195 = vmatmul.mubr.f32.gmra.mrb[0].mxu0 %v2026
        %v2196 = vpop.f32.mrb[0].mxu0
        %v2197 = vadd.f32 0.0, %v2196
        %v2198 = vpop.f32.mrb[0].mxu0
        %2199 = vmatprep.mubr.f32.mxu0 0.0
        %2200 = vmatmul.mubr.f32.gmra.mrb[0].mxu0 %v2029
        %v2201 = vpop.f32.mrb[0].mxu0
        %v2202 = vadd.f32 0.0, %v2201
        %v2203 = vpop.f32.mrb[0].mxu0
        %2204 = vdwg.mxu0
        %2205 = vmatprep.subr.mxu0 0.0
        %2206 = vmatpush1.msra.mxu0 %v541
        %2207 = vmatprep.subr.mxu0 0.0
        %2208 = vmatpush1.msra.mxu0 0.0
        %2209 = vmatprep.subr.mxu0 0.0
        %2210 = vmatpush1.msra.mxu0 0.0
        %2211 = vmatprep.subr.mxu0 0.0
        %2212 = vmatpush1.msra.mxu0 0.0
        %2213 = vmatprep.subr.mxu0 0.0
        %2214 = vmatpush1.msra.mxu0 0.0
        %2215 = vmatprep.subr.mxu0 0.0
        %2216 = vmatpush1.msra.mxu0 0.0
        %2217 = vmatprep.subr.mxu0 0.0
        %2218 = vmatpush1.msra.mxu0 0.0
        %2219 = vmatprep.subr.mxu0 0.0
        %2220 = vmatpush1.msra.mxu0 0.0
        %2221 = vmatprep.subr.mxu0 0.0
        %2222 = vmatpush1.msra.mxu0 0.0
        %2223 = vmatprep.subr.mxu0 0.0
        %2224 = vmatpush1.msra.mxu0 0.0
        %2225 = vmatprep.subr.mxu0 0.0
        %2226 = vmatpush1.msra.mxu0 0.0
        %2227 = vmatprep.subr.mxu0 0.0
        %2228 = vmatpush1.msra.mxu0 0.0
        %2229 = vmatprep.subr.mxu0 0.0
        %2230 = vmatpush1.msra.mxu0 0.0
        %2231 = vmatprep.subr.mxu0 0.0
        %2232 = vmatpush1.msra.mxu0 0.0
        %2233 = vmatprep.subr.mxu0 0.0
        %2234 = vmatpush1.msra.mxu0 0.0
        %2235 = vmatprep.subr.mxu0 0.0
        %2236 = vmatpush1.msra.mxu0 0.0
        %2237 = vmatprep.subr.mxu0 0.0
        %2238 = vmatpush1.msra.mxu0 0.0
        %2239 = vmatprep.subr.mxu0 0.0
        %2240 = vmatpush1.msra.mxu0 0.0
        %2241 = vmatprep.subr.mxu0 0.0
        %2242 = vmatpush1.msra.mxu0 0.0
        %2243 = vmatprep.subr.mxu0 0.0
        %2244 = vmatpush1.msra.mxu0 0.0
        %2245 = vmatprep.subr.mxu0 0.0
        %2246 = vmatpush1.msra.mxu0 0.0
        %2247 = vmatprep.subr.mxu0 0.0
        %2248 = vmatpush1.msra.mxu0 0.0
        %2249 = vmatprep.subr.mxu0 0.0
        %2250 = vmatpush1.msra.mxu0 0.0
        %2251 = vmatprep.subr.mxu0 0.0
        %2252 = vmatpush1.msra.mxu0 0.0
        %2253 = vmatprep.subr.mxu0 0.0
        %2254 = vmatpush1.msra.mxu0 0.0
        %2255 = vmatprep.subr.mxu0 0.0
        %2256 = vmatpush1.msra.mxu0 0.0
        %2257 = vmatprep.subr.mxu0 0.0
        %2258 = vmatpush1.msra.mxu0 0.0
        %2259 = vmatprep.subr.mxu0 0.0
        %2260 = vmatpush1.msra.mxu0 0.0
        %2261 = vmatprep.subr.mxu0 0.0
        %2262 = vmatpush1.msra.mxu0 0.0
        %2263 = vmatprep.subr.mxu0 0.0
        %2264 = vmatpush1.msra.mxu0 0.0
        %2265 = vmatprep.subr.mxu0 0.0
        %2266 = vmatpush1.msra.mxu0 0.0
        %2267 = vmatprep.subr.mxu0 0.0
        %2268 = vmatpush1.msra.mxu0 0.0
        %2269 = vmatprep.mubr.f32.mxu0 0.0
        %2270 = vmatmul.mubr.f32.gmra.mrb[0].mxu0 %v1923
        %v2271 = vpop.f32.mrb[0].mxu0
        %v2272 = vadd.f32 %v2187, %v2271
        %v2273 = vpop.f32.mrb[0].mxu0
        %2274 = vmatprep.mubr.f32.mxu0 0.0
        %2275 = vmatmul.mubr.f32.gmra.mrb[0].mxu0 %v1926
        %v2276 = vpop.f32.mrb[0].mxu0
        %v2277 = vadd.f32 %v2192, %v2276
        %v2278 = vpop.f32.mrb[0].mxu0
        %2279 = vmatprep.mubr.f32.mxu0 0.0
        %2280 = vmatmul.mubr.f32.gmra.mrb[0].mxu0 %v1929
        %v2281 = vpop.f32.mrb[0].mxu0
        %v2282 = vadd.f32 %v2197, %v2281
        %v2283 = vpop.f32.mrb[0].mxu0
        %2284 = vmatprep.mubr.f32.mxu0 0.0
        %2285 = vmatmul.mubr.f32.gmra.mrb[0].mxu0 %v1932
        %v2286 = vpop.f32.mrb[0].mxu0
        %v2287 = vadd.f32 %v2202, %v2286
        %v2288 = vpop.f32.mrb[0].mxu0
        %2289 = vdwg.mxu0
        %v2291 = vsel %vm1921, %v544, 0
        %v2294 = vsel %vm1921, %v545, 0
        %2296 = vmatprep.subr.mxu0 0.0
        %2297 = vmatpush1.msra.mxu0 %v2116
        %2298 = vmatprep.subr.mxu0 0.0
        %2299 = vmatpush1.msra.mxu0 0.0
        %2300 = vmatprep.subr.mxu0 0.0
        %2301 = vmatpush1.msra.mxu0 0.0
        %2302 = vmatprep.subr.mxu0 0.0
        %2303 = vmatpush1.msra.mxu0 0.0
        %2304 = vmatprep.subr.mxu0 0.0
        %2305 = vmatpush1.msra.mxu0 0.0
        %2306 = vmatprep.subr.mxu0 0.0
        %2307 = vmatpush1.msra.mxu0 0.0
        %2308 = vmatprep.subr.mxu0 0.0
        %2309 = vmatpush1.msra.mxu0 0.0
        %2310 = vmatprep.subr.mxu0 0.0
        %2311 = vmatpush1.msra.mxu0 0.0
        %2312 = vmatprep.subr.mxu0 0.0
        %2313 = vmatpush1.msra.mxu0 0.0
        %2314 = vmatprep.subr.mxu0 0.0
        %2315 = vmatpush1.msra.mxu0 0.0
        %2316 = vmatprep.subr.mxu0 0.0
        %2317 = vmatpush1.msra.mxu0 0.0
        %2318 = vmatprep.subr.mxu0 0.0
        %2319 = vmatpush1.msra.mxu0 0.0
        %2320 = vmatprep.subr.mxu0 0.0
        %2321 = vmatpush1.msra.mxu0 0.0
        %2322 = vmatprep.subr.mxu0 0.0
        %2323 = vmatpush1.msra.mxu0 0.0
        %2324 = vmatprep.subr.mxu0 0.0
        %2325 = vmatpush1.msra.mxu0 0.0
        %2326 = vmatprep.subr.mxu0 0.0
        %2327 = vmatpush1.msra.mxu0 0.0
        %2328 = vmatprep.subr.mxu0 0.0
        %2329 = vmatpush1.msra.mxu0 0.0
        %2330 = vmatprep.subr.mxu0 0.0
        %2331 = vmatpush1.msra.mxu0 0.0
        %2332 = vmatprep.subr.mxu0 0.0
        %2333 = vmatpush1.msra.mxu0 0.0
        %2334 = vmatprep.subr.mxu0 0.0
        %2335 = vmatpush1.msra.mxu0 0.0
        %2336 = vmatprep.subr.mxu0 0.0
        %2337 = vmatpush1.msra.mxu0 0.0
        %2338 = vmatprep.subr.mxu0 0.0
        %2339 = vmatpush1.msra.mxu0 0.0
        %2340 = vmatprep.subr.mxu0 0.0
        %2341 = vmatpush1.msra.mxu0 0.0
        %2342 = vmatprep.subr.mxu0 0.0
        %2343 = vmatpush1.msra.mxu0 0.0
        %2344 = vmatprep.subr.mxu0 0.0
        %2345 = vmatpush1.msra.mxu0 0.0
        %2346 = vmatprep.subr.mxu0 0.0
        %2347 = vmatpush1.msra.mxu0 0.0
        %2348 = vmatprep.subr.mxu0 0.0
        %2349 = vmatpush1.msra.mxu0 0.0
        %2350 = vmatprep.subr.mxu0 0.0
        %2351 = vmatpush1.msra.mxu0 0.0
        %2352 = vmatprep.subr.mxu0 0.0
        %2353 = vmatpush1.msra.mxu0 0.0
        %2354 = vmatprep.subr.mxu0 0.0
        %2355 = vmatpush1.msra.mxu0 0.0
        %2356 = vmatprep.subr.mxu0 0.0
        %2357 = vmatpush1.msra.mxu0 0.0
        %2358 = vmatprep.subr.mxu0 0.0
        %2359 = vmatpush1.msra.mxu0 0.0
        %2360 = vmatprep.mubr.f32.mxu0 0.0
        %2361 = vmatmul.mubr.f32.gmra.mrb[0].mxu0 %v2291
        %v2362 = vpop.f32.mrb[0].mxu0
        %v2363 = vadd.f32 0.0, %v2362
        %v2364 = vpop.f32.mrb[0].mxu0
        %2365 = vmatprep.mubr.f32.mxu0 0.0
        %2366 = vmatmul.mubr.f32.gmra.mrb[0].mxu0 %v2294
        %v2367 = vpop.f32.mrb[0].mxu0
        %v2368 = vadd.f32 0.0, %v2367
        %v2369 = vpop.f32.mrb[0].mxu0
        %2370 = vdwg.mxu0
        %2371 = vmatprep.subr.mxu0 0.0
        %2372 = vmatpush1.msra.mxu0 %v2117
        %2373 = vmatprep.subr.mxu0 0.0
        %2374 = vmatpush1.msra.mxu0 0.0
        %2375 = vmatprep.subr.mxu0 0.0
        %2376 = vmatpush1.msra.mxu0 0.0
        %2377 = vmatprep.subr.mxu0 0.0
        %2378 = vmatpush1.msra.mxu0 0.0
        %2379 = vmatprep.subr.mxu0 0.0
        %2380 = vmatpush1.msra.mxu0 0.0
        %2381 = vmatprep.subr.mxu0 0.0
        %2382 = vmatpush1.msra.mxu0 0.0
        %2383 = vmatprep.subr.mxu0 0.0
        %2384 = vmatpush1.msra.mxu0 0.0
        %2385 = vmatprep.subr.mxu0 0.0
        %2386 = vmatpush1.msra.mxu0 0.0
        %2387 = vmatprep.subr.mxu0 0.0
        %2388 = vmatpush1.msra.mxu0 0.0
        %2389 = vmatprep.subr.mxu0 0.0
        %2390 = vmatpush1.msra.mxu0 0.0
        %2391 = vmatprep.subr.mxu0 0.0
        %2392 = vmatpush1.msra.mxu0 0.0
        %2393 = vmatprep.subr.mxu0 0.0
        %2394 = vmatpush1.msra.mxu0 0.0
        %2395 = vmatprep.subr.mxu0 0.0
        %2396 = vmatpush1.msra.mxu0 0.0
        %2397 = vmatprep.subr.mxu0 0.0
        %2398 = vmatpush1.msra.mxu0 0.0
        %2399 = vmatprep.subr.mxu0 0.0
        %2400 = vmatpush1.msra.mxu0 0.0
        %2401 = vmatprep.subr.mxu0 0.0
        %2402 = vmatpush1.msra.mxu0 0.0
        %2403 = vmatprep.subr.mxu0 0.0
        %2404 = vmatpush1.msra.mxu0 0.0
        %2405 = vmatprep.subr.mxu0 0.0
        %2406 = vmatpush1.msra.mxu0 0.0
        %2407 = vmatprep.subr.mxu0 0.0
        %2408 = vmatpush1.msra.mxu0 0.0
        %2409 = vmatprep.subr.mxu0 0.0
        %2410 = vmatpush1.msra.mxu0 0.0
        %2411 = vmatprep.subr.mxu0 0.0
        %2412 = vmatpush1.msra.mxu0 0.0
        %2413 = vmatprep.subr.mxu0 0.0
        %2414 = vmatpush1.msra.mxu0 0.0
        %2415 = vmatprep.subr.mxu0 0.0
        %2416 = vmatpush1.msra.mxu0 0.0
        %2417 = vmatprep.subr.mxu0 0.0
        %2418 = vmatpush1.msra.mxu0 0.0
        %2419 = vmatprep.subr.mxu0 0.0
        %2420 = vmatpush1.msra.mxu0 0.0
        %2421 = vmatprep.subr.mxu0 0.0
        %2422 = vmatpush1.msra.mxu0 0.0
        %2423 = vmatprep.subr.mxu0 0.0
        %2424 = vmatpush1.msra.mxu0 0.0
        %2425 = vmatprep.subr.mxu0 0.0
        %2426 = vmatpush1.msra.mxu0 0.0
        %2427 = vmatprep.subr.mxu0 0.0
        %2428 = vmatpush1.msra.mxu0 0.0
        %2429 = vmatprep.subr.mxu0 0.0
        %2430 = vmatpush1.msra.mxu0 0.0
        %2431 = vmatprep.subr.mxu0 0.0
        %2432 = vmatpush1.msra.mxu0 0.0
        %2433 = vmatprep.subr.mxu0 0.0
        %2434 = vmatpush1.msra.mxu0 0.0
        %2435 = vmatprep.mubr.f32.mxu0 0.0
        %2436 = vmatmul.mubr.f32.gmra.mrb[0].mxu0 %v2291
        %v2437 = vpop.f32.mrb[0].mxu0
        %v2438 = vadd.f32 0.0, %v2437
        %v2439 = vpop.f32.mrb[0].mxu0
        %2440 = vmatprep.mubr.f32.mxu0 0.0
        %2441 = vmatmul.mubr.f32.gmra.mrb[0].mxu0 %v2294
        %v2442 = vpop.f32.mrb[0].mxu0
        %v2443 = vadd.f32 0.0, %v2442
        %v2444 = vpop.f32.mrb[0].mxu0
        %2445 = vdwg.mxu0
        %2446 = vmatprep.subr.mxu0 0.0
        %2447 = vmatpush1.msra.mxu0 %v2118
        %2448 = vmatprep.subr.mxu0 0.0
        %2449 = vmatpush1.msra.mxu0 0.0
        %2450 = vmatprep.subr.mxu0 0.0
        %2451 = vmatpush1.msra.mxu0 0.0
        %2452 = vmatprep.subr.mxu0 0.0
        %2453 = vmatpush1.msra.mxu0 0.0
        %2454 = vmatprep.subr.mxu0 0.0
        %2455 = vmatpush1.msra.mxu0 0.0
        %2456 = vmatprep.subr.mxu0 0.0
        %2457 = vmatpush1.msra.mxu0 0.0
        %2458 = vmatprep.subr.mxu0 0.0
        %2459 = vmatpush1.msra.mxu0 0.0
        %2460 = vmatprep.subr.mxu0 0.0
        %2461 = vmatpush1.msra.mxu0 0.0
        %2462 = vmatprep.subr.mxu0 0.0
        %2463 = vmatpush1.msra.mxu0 0.0
        %2464 = vmatprep.subr.mxu0 0.0
        %2465 = vmatpush1.msra.mxu0 0.0
        %2466 = vmatprep.subr.mxu0 0.0
        %2467 = vmatpush1.msra.mxu0 0.0
        %2468 = vmatprep.subr.mxu0 0.0
        %2469 = vmatpush1.msra.mxu0 0.0
        %2470 = vmatprep.subr.mxu0 0.0
        %2471 = vmatpush1.msra.mxu0 0.0
        %2472 = vmatprep.subr.mxu0 0.0
        %2473 = vmatpush1.msra.mxu0 0.0
        %2474 = vmatprep.subr.mxu0 0.0
        %2475 = vmatpush1.msra.mxu0 0.0
        %2476 = vmatprep.subr.mxu0 0.0
        %2477 = vmatpush1.msra.mxu0 0.0
        %2478 = vmatprep.subr.mxu0 0.0
        %2479 = vmatpush1.msra.mxu0 0.0
        %2480 = vmatprep.subr.mxu0 0.0
        %2481 = vmatpush1.msra.mxu0 0.0
        %2482 = vmatprep.subr.mxu0 0.0
        %2483 = vmatpush1.msra.mxu0 0.0
        %2484 = vmatprep.subr.mxu0 0.0
        %2485 = vmatpush1.msra.mxu0 0.0
        %2486 = vmatprep.subr.mxu0 0.0
        %2487 = vmatpush1.msra.mxu0 0.0
        %2488 = vmatprep.subr.mxu0 0.0
        %2489 = vmatpush1.msra.mxu0 0.0
        %2490 = vmatprep.subr.mxu0 0.0
        %2491 = vmatpush1.msra.mxu0 0.0
        %2492 = vmatprep.subr.mxu0 0.0
        %2493 = vmatpush1.msra.mxu0 0.0
        %2494 = vmatprep.subr.mxu0 0.0
        %2495 = vmatpush1.msra.mxu0 0.0
        %2496 = vmatprep.subr.mxu0 0.0
        %2497 = vmatpush1.msra.mxu0 0.0
        %2498 = vmatprep.subr.mxu0 0.0
        %2499 = vmatpush1.msra.mxu0 0.0
        %2500 = vmatprep.subr.mxu0 0.0
        %2501 = vmatpush1.msra.mxu0 0.0
        %2502 = vmatprep.subr.mxu0 0.0
        %2503 = vmatpush1.msra.mxu0 0.0
        %2504 = vmatprep.subr.mxu0 0.0
        %2505 = vmatpush1.msra.mxu0 0.0
        %2506 = vmatprep.subr.mxu0 0.0
        %2507 = vmatpush1.msra.mxu0 0.0
        %2508 = vmatprep.subr.mxu0 0.0
        %2509 = vmatpush1.msra.mxu0 0.0
        %2510 = vmatprep.mubr.f32.mxu0 0.0
        %2511 = vmatmul.mubr.f32.gmra.mrb[0].mxu0 %v2291
        %v2512 = vpop.f32.mrb[0].mxu0
        %v2513 = vadd.f32 0.0, %v2512
        %v2514 = vpop.f32.mrb[0].mxu0
        %2515 = vmatprep.mubr.f32.mxu0 0.0
        %2516 = vmatmul.mubr.f32.gmra.mrb[0].mxu0 %v2294
        %v2517 = vpop.f32.mrb[0].mxu0
        %v2518 = vadd.f32 0.0, %v2517
        %v2519 = vpop.f32.mrb[0].mxu0
        %2520 = vdwg.mxu0
        %2521 = vmatprep.subr.mxu0 0.0
        %2522 = vmatpush1.msra.mxu0 %v2119
        %2523 = vmatprep.subr.mxu0 0.0
        %2524 = vmatpush1.msra.mxu0 0.0
        %2525 = vmatprep.subr.mxu0 0.0
        %2526 = vmatpush1.msra.mxu0 0.0
        %2527 = vmatprep.subr.mxu0 0.0
        %2528 = vmatpush1.msra.mxu0 0.0
        %2529 = vmatprep.subr.mxu0 0.0
        %2530 = vmatpush1.msra.mxu0 0.0
        %2531 = vmatprep.subr.mxu0 0.0
        %2532 = vmatpush1.msra.mxu0 0.0
        %2533 = vmatprep.subr.mxu0 0.0
        %2534 = vmatpush1.msra.mxu0 0.0
        %2535 = vmatprep.subr.mxu0 0.0
        %2536 = vmatpush1.msra.mxu0 0.0
        %2537 = vmatprep.subr.mxu0 0.0
        %2538 = vmatpush1.msra.mxu0 0.0
        %2539 = vmatprep.subr.mxu0 0.0
        %2540 = vmatpush1.msra.mxu0 0.0
        %2541 = vmatprep.subr.mxu0 0.0
        %2542 = vmatpush1.msra.mxu0 0.0
        %2543 = vmatprep.subr.mxu0 0.0
        %2544 = vmatpush1.msra.mxu0 0.0
        %2545 = vmatprep.subr.mxu0 0.0
        %2546 = vmatpush1.msra.mxu0 0.0
        %2547 = vmatprep.subr.mxu0 0.0
        %2548 = vmatpush1.msra.mxu0 0.0
        %2549 = vmatprep.subr.mxu0 0.0
        %2550 = vmatpush1.msra.mxu0 0.0
        %2551 = vmatprep.subr.mxu0 0.0
        %2552 = vmatpush1.msra.mxu0 0.0
        %2553 = vmatprep.subr.mxu0 0.0
        %2554 = vmatpush1.msra.mxu0 0.0
        %2555 = vmatprep.subr.mxu0 0.0
        %2556 = vmatpush1.msra.mxu0 0.0
        %2557 = vmatprep.subr.mxu0 0.0
        %2558 = vmatpush1.msra.mxu0 0.0
        %2559 = vmatprep.subr.mxu0 0.0
        %2560 = vmatpush1.msra.mxu0 0.0
        %2561 = vmatprep.subr.mxu0 0.0
        %2562 = vmatpush1.msra.mxu0 0.0
        %2563 = vmatprep.subr.mxu0 0.0
        %2564 = vmatpush1.msra.mxu0 0.0
        %2565 = vmatprep.subr.mxu0 0.0
        %2566 = vmatpush1.msra.mxu0 0.0
        %2567 = vmatprep.subr.mxu0 0.0
        %2568 = vmatpush1.msra.mxu0 0.0
        %2569 = vmatprep.subr.mxu0 0.0
        %2570 = vmatpush1.msra.mxu0 0.0
        %2571 = vmatprep.subr.mxu0 0.0
        %2572 = vmatpush1.msra.mxu0 0.0
        %2573 = vmatprep.subr.mxu0 0.0
        %2574 = vmatpush1.msra.mxu0 0.0
        %2575 = vmatprep.subr.mxu0 0.0
        %2576 = vmatpush1.msra.mxu0 0.0
        %2577 = vmatprep.subr.mxu0 0.0
        %2578 = vmatpush1.msra.mxu0 0.0
        %2579 = vmatprep.subr.mxu0 0.0
        %2580 = vmatpush1.msra.mxu0 0.0
        %2581 = vmatprep.subr.mxu0 0.0
        %2582 = vmatpush1.msra.mxu0 0.0
        %2583 = vmatprep.subr.mxu0 0.0
        %2584 = vmatpush1.msra.mxu0 0.0
        %2585 = vmatprep.mubr.f32.mxu0 0.0
        %2586 = vmatmul.mubr.f32.gmra.mrb[0].mxu0 %v2291
        %v2587 = vpop.f32.mrb[0].mxu0
        %v2588 = vadd.f32 0.0, %v2587
        %v2589 = vpop.f32.mrb[0].mxu0
        %2590 = vmatprep.mubr.f32.mxu0 0.0
        %2591 = vmatmul.mubr.f32.gmra.mrb[0].mxu0 %v2294
        %v2592 = vpop.f32.mrb[0].mxu0
        %v2593 = vadd.f32 0.0, %v2592
        %v2594 = vpop.f32.mrb[0].mxu0
        %2595 = vdwg.mxu0
        %v2597 = vsel %vm1921, %v546, 0
        %v2600 = vsel %vm1921, %v547, 0
        %2602 = vmatprep.subr.mxu0 0.0
        %2603 = vmatpush1.msra.mxu0 %v2272
        %2604 = vmatprep.subr.mxu0 0.0
        %2605 = vmatpush1.msra.mxu0 0.0
        %2606 = vmatprep.subr.mxu0 0.0
        %2607 = vmatpush1.msra.mxu0 0.0
        %2608 = vmatprep.subr.mxu0 0.0
        %2609 = vmatpush1.msra.mxu0 0.0
        %2610 = vmatprep.subr.mxu0 0.0
        %2611 = vmatpush1.msra.mxu0 0.0
        %2612 = vmatprep.subr.mxu0 0.0
        %2613 = vmatpush1.msra.mxu0 0.0
        %2614 = vmatprep.subr.mxu0 0.0
        %2615 = vmatpush1.msra.mxu0 0.0
        %2616 = vmatprep.subr.mxu0 0.0
        %2617 = vmatpush1.msra.mxu0 0.0
        %2618 = vmatprep.subr.mxu0 0.0
        %2619 = vmatpush1.msra.mxu0 0.0
        %2620 = vmatprep.subr.mxu0 0.0
        %2621 = vmatpush1.msra.mxu0 0.0
        %2622 = vmatprep.subr.mxu0 0.0
        %2623 = vmatpush1.msra.mxu0 0.0
        %2624 = vmatprep.subr.mxu0 0.0
        %2625 = vmatpush1.msra.mxu0 0.0
        %2626 = vmatprep.subr.mxu0 0.0
        %2627 = vmatpush1.msra.mxu0 0.0
        %2628 = vmatprep.subr.mxu0 0.0
        %2629 = vmatpush1.msra.mxu0 0.0
        %2630 = vmatprep.subr.mxu0 0.0
        %2631 = vmatpush1.msra.mxu0 0.0
        %2632 = vmatprep.subr.mxu0 0.0
        %2633 = vmatpush1.msra.mxu0 0.0
        %2634 = vmatprep.subr.mxu0 0.0
        %2635 = vmatpush1.msra.mxu0 0.0
        %2636 = vmatprep.subr.mxu0 0.0
        %2637 = vmatpush1.msra.mxu0 0.0
        %2638 = vmatprep.subr.mxu0 0.0
        %2639 = vmatpush1.msra.mxu0 0.0
        %2640 = vmatprep.subr.mxu0 0.0
        %2641 = vmatpush1.msra.mxu0 0.0
        %2642 = vmatprep.subr.mxu0 0.0
        %2643 = vmatpush1.msra.mxu0 0.0
        %2644 = vmatprep.subr.mxu0 0.0
        %2645 = vmatpush1.msra.mxu0 0.0
        %2646 = vmatprep.subr.mxu0 0.0
        %2647 = vmatpush1.msra.mxu0 0.0
        %2648 = vmatprep.subr.mxu0 0.0
        %2649 = vmatpush1.msra.mxu0 0.0
        %2650 = vmatprep.subr.mxu0 0.0
        %2651 = vmatpush1.msra.mxu0 0.0
        %2652 = vmatprep.subr.mxu0 0.0
        %2653 = vmatpush1.msra.mxu0 0.0
        %2654 = vmatprep.subr.mxu0 0.0
        %2655 = vmatpush1.msra.mxu0 0.0
        %2656 = vmatprep.subr.mxu0 0.0
        %2657 = vmatpush1.msra.mxu0 0.0
        %2658 = vmatprep.subr.mxu0 0.0
        %2659 = vmatpush1.msra.mxu0 0.0
        %2660 = vmatprep.subr.mxu0 0.0
        %2661 = vmatpush1.msra.mxu0 0.0
        %2662 = vmatprep.subr.mxu0 0.0
        %2663 = vmatpush1.msra.mxu0 0.0
        %2664 = vmatprep.subr.mxu0 0.0
        %2665 = vmatpush1.msra.mxu0 0.0
        %2666 = vmatprep.mubr.f32.mxu0 0.0
        %2667 = vmatmul.mubr.f32.gmra.mrb[0].mxu0 %v2597
        %v2668 = vpop.f32.mrb[0].mxu0
        %v2669 = vadd.f32 0.0, %v2668
        %v2670 = vpop.f32.mrb[0].mxu0
        %2671 = vmatprep.mubr.f32.mxu0 0.0
        %2672 = vmatmul.mubr.f32.gmra.mrb[0].mxu0 %v2600
        %v2673 = vpop.f32.mrb[0].mxu0
        %v2674 = vadd.f32 0.0, %v2673
        %v2675 = vpop.f32.mrb[0].mxu0
        %2676 = vdwg.mxu0
        %2677 = vmatprep.subr.mxu0 0.0
        %2678 = vmatpush1.msra.mxu0 %v2277
        %2679 = vmatprep.subr.mxu0 0.0
        %2680 = vmatpush1.msra.mxu0 0.0
        %2681 = vmatprep.subr.mxu0 0.0
        %2682 = vmatpush1.msra.mxu0 0.0
        %2683 = vmatprep.subr.mxu0 0.0
        %2684 = vmatpush1.msra.mxu0 0.0
        %2685 = vmatprep.subr.mxu0 0.0
        %2686 = vmatpush1.msra.mxu0 0.0
        %2687 = vmatprep.subr.mxu0 0.0
        %2688 = vmatpush1.msra.mxu0 0.0
        %2689 = vmatprep.subr.mxu0 0.0
        %2690 = vmatpush1.msra.mxu0 0.0
        %2691 = vmatprep.subr.mxu0 0.0
        %2692 = vmatpush1.msra.mxu0 0.0
        %2693 = vmatprep.subr.mxu0 0.0
        %2694 = vmatpush1.msra.mxu0 0.0
        %2695 = vmatprep.subr.mxu0 0.0
        %2696 = vmatpush1.msra.mxu0 0.0
        %2697 = vmatprep.subr.mxu0 0.0
        %2698 = vmatpush1.msra.mxu0 0.0
        %2699 = vmatprep.subr.mxu0 0.0
        %2700 = vmatpush1.msra.mxu0 0.0
        %2701 = vmatprep.subr.mxu0 0.0
        %2702 = vmatpush1.msra.mxu0 0.0
        %2703 = vmatprep.subr.mxu0 0.0
        %2704 = vmatpush1.msra.mxu0 0.0
        %2705 = vmatprep.subr.mxu0 0.0
        %2706 = vmatpush1.msra.mxu0 0.0
        %2707 = vmatprep.subr.mxu0 0.0
        %2708 = vmatpush1.msra.mxu0 0.0
        %2709 = vmatprep.subr.mxu0 0.0
        %2710 = vmatpush1.msra.mxu0 0.0
        %2711 = vmatprep.subr.mxu0 0.0
        %2712 = vmatpush1.msra.mxu0 0.0
        %2713 = vmatprep.subr.mxu0 0.0
        %2714 = vmatpush1.msra.mxu0 0.0
        %2715 = vmatprep.subr.mxu0 0.0
        %2716 = vmatpush1.msra.mxu0 0.0
        %2717 = vmatprep.subr.mxu0 0.0
        %2718 = vmatpush1.msra.mxu0 0.0
        %2719 = vmatprep.subr.mxu0 0.0
        %2720 = vmatpush1.msra.mxu0 0.0
        %2721 = vmatprep.subr.mxu0 0.0
        %2722 = vmatpush1.msra.mxu0 0.0
        %2723 = vmatprep.subr.mxu0 0.0
        %2724 = vmatpush1.msra.mxu0 0.0
        %2725 = vmatprep.subr.mxu0 0.0
        %2726 = vmatpush1.msra.mxu0 0.0
        %2727 = vmatprep.subr.mxu0 0.0
        %2728 = vmatpush1.msra.mxu0 0.0
        %2729 = vmatprep.subr.mxu0 0.0
        %2730 = vmatpush1.msra.mxu0 0.0
        %2731 = vmatprep.subr.mxu0 0.0
        %2732 = vmatpush1.msra.mxu0 0.0
        %2733 = vmatprep.subr.mxu0 0.0
        %2734 = vmatpush1.msra.mxu0 0.0
        %2735 = vmatprep.subr.mxu0 0.0
        %2736 = vmatpush1.msra.mxu0 0.0
        %2737 = vmatprep.subr.mxu0 0.0
        %2738 = vmatpush1.msra.mxu0 0.0
        %2739 = vmatprep.subr.mxu0 0.0
        %2740 = vmatpush1.msra.mxu0 0.0
        %2741 = vmatprep.mubr.f32.mxu0 0.0
        %2742 = vmatmul.mubr.f32.gmra.mrb[0].mxu0 %v2597
        %v2743 = vpop.f32.mrb[0].mxu0
        %v2744 = vadd.f32 0.0, %v2743
        %v2745 = vpop.f32.mrb[0].mxu0
        %2746 = vmatprep.mubr.f32.mxu0 0.0
        %2747 = vmatmul.mubr.f32.gmra.mrb[0].mxu0 %v2600
        %v2748 = vpop.f32.mrb[0].mxu0
        %v2749 = vadd.f32 0.0, %v2748
        %v2750 = vpop.f32.mrb[0].mxu0
        %2751 = vdwg.mxu0
        %2752 = vmatprep.subr.mxu0 0.0
        %2753 = vmatpush1.msra.mxu0 %v2282
        %2754 = vmatprep.subr.mxu0 0.0
        %2755 = vmatpush1.msra.mxu0 0.0
        %2756 = vmatprep.subr.mxu0 0.0
        %2757 = vmatpush1.msra.mxu0 0.0
        %2758 = vmatprep.subr.mxu0 0.0
        %2759 = vmatpush1.msra.mxu0 0.0
        %2760 = vmatprep.subr.mxu0 0.0
        %2761 = vmatpush1.msra.mxu0 0.0
        %2762 = vmatprep.subr.mxu0 0.0
        %2763 = vmatpush1.msra.mxu0 0.0
        %2764 = vmatprep.subr.mxu0 0.0
        %2765 = vmatpush1.msra.mxu0 0.0
        %2766 = vmatprep.subr.mxu0 0.0
        %2767 = vmatpush1.msra.mxu0 0.0
        %2768 = vmatprep.subr.mxu0 0.0
        %2769 = vmatpush1.msra.mxu0 0.0
        %2770 = vmatprep.subr.mxu0 0.0
        %2771 = vmatpush1.msra.mxu0 0.0
        %2772 = vmatprep.subr.mxu0 0.0
        %2773 = vmatpush1.msra.mxu0 0.0
        %2774 = vmatprep.subr.mxu0 0.0
        %2775 = vmatpush1.msra.mxu0 0.0
        %2776 = vmatprep.subr.mxu0 0.0
        %2777 = vmatpush1.msra.mxu0 0.0
        %2778 = vmatprep.subr.mxu0 0.0
        %2779 = vmatpush1.msra.mxu0 0.0
        %2780 = vmatprep.subr.mxu0 0.0
        %2781 = vmatpush1.msra.mxu0 0.0
        %2782 = vmatprep.subr.mxu0 0.0
        %2783 = vmatpush1.msra.mxu0 0.0
        %2784 = vmatprep.subr.mxu0 0.0
        %2785 = vmatpush1.msra.mxu0 0.0
        %2786 = vmatprep.subr.mxu0 0.0
        %2787 = vmatpush1.msra.mxu0 0.0
        %2788 = vmatprep.subr.mxu0 0.0
        %2789 = vmatpush1.msra.mxu0 0.0
        %2790 = vmatprep.subr.mxu0 0.0
        %2791 = vmatpush1.msra.mxu0 0.0
        %2792 = vmatprep.subr.mxu0 0.0
        %2793 = vmatpush1.msra.mxu0 0.0
        %2794 = vmatprep.subr.mxu0 0.0
        %2795 = vmatpush1.msra.mxu0 0.0
        %2796 = vmatprep.subr.mxu0 0.0
        %2797 = vmatpush1.msra.mxu0 0.0
        %2798 = vmatprep.subr.mxu0 0.0
        %2799 = vmatpush1.msra.mxu0 0.0
        %2800 = vmatprep.subr.mxu0 0.0
        %2801 = vmatpush1.msra.mxu0 0.0
        %2802 = vmatprep.subr.mxu0 0.0
        %2803 = vmatpush1.msra.mxu0 0.0
        %2804 = vmatprep.subr.mxu0 0.0
        %2805 = vmatpush1.msra.mxu0 0.0
        %2806 = vmatprep.subr.mxu0 0.0
        %2807 = vmatpush1.msra.mxu0 0.0
        %2808 = vmatprep.subr.mxu0 0.0
        %2809 = vmatpush1.msra.mxu0 0.0
        %2810 = vmatprep.subr.mxu0 0.0
        %2811 = vmatpush1.msra.mxu0 0.0
        %2812 = vmatprep.subr.mxu0 0.0
        %2813 = vmatpush1.msra.mxu0 0.0
        %2814 = vmatprep.subr.mxu0 0.0
        %2815 = vmatpush1.msra.mxu0 0.0
        %2816 = vmatprep.mubr.f32.mxu0 0.0
        %2817 = vmatmul.mubr.f32.gmra.mrb[0].mxu0 %v2597
        %v2818 = vpop.f32.mrb[0].mxu0
        %v2819 = vadd.f32 0.0, %v2818
        %v2820 = vpop.f32.mrb[0].mxu0
        %2821 = vmatprep.mubr.f32.mxu0 0.0
        %2822 = vmatmul.mubr.f32.gmra.mrb[0].mxu0 %v2600
        %v2823 = vpop.f32.mrb[0].mxu0
        %v2824 = vadd.f32 0.0, %v2823
        %v2825 = vpop.f32.mrb[0].mxu0
        %2826 = vdwg.mxu0
        %2827 = vmatprep.subr.mxu0 0.0
        %2828 = vmatpush1.msra.mxu0 %v2287
        %2829 = vmatprep.subr.mxu0 0.0
        %2830 = vmatpush1.msra.mxu0 0.0
        %2831 = vmatprep.subr.mxu0 0.0
        %2832 = vmatpush1.msra.mxu0 0.0
        %2833 = vmatprep.subr.mxu0 0.0
        %2834 = vmatpush1.msra.mxu0 0.0
        %2835 = vmatprep.subr.mxu0 0.0
        %2836 = vmatpush1.msra.mxu0 0.0
        %2837 = vmatprep.subr.mxu0 0.0
        %2838 = vmatpush1.msra.mxu0 0.0
        %2839 = vmatprep.subr.mxu0 0.0
        %2840 = vmatpush1.msra.mxu0 0.0
        %2841 = vmatprep.subr.mxu0 0.0
        %2842 = vmatpush1.msra.mxu0 0.0
        %2843 = vmatprep.subr.mxu0 0.0
        %2844 = vmatpush1.msra.mxu0 0.0
        %2845 = vmatprep.subr.mxu0 0.0
        %2846 = vmatpush1.msra.mxu0 0.0
        %2847 = vmatprep.subr.mxu0 0.0
        %2848 = vmatpush1.msra.mxu0 0.0
        %2849 = vmatprep.subr.mxu0 0.0
        %2850 = vmatpush1.msra.mxu0 0.0
        %2851 = vmatprep.subr.mxu0 0.0
        %2852 = vmatpush1.msra.mxu0 0.0
        %2853 = vmatprep.subr.mxu0 0.0
        %2854 = vmatpush1.msra.mxu0 0.0
        %2855 = vmatprep.subr.mxu0 0.0
        %2856 = vmatpush1.msra.mxu0 0.0
        %2857 = vmatprep.subr.mxu0 0.0
        %2858 = vmatpush1.msra.mxu0 0.0
        %2859 = vmatprep.subr.mxu0 0.0
        %2860 = vmatpush1.msra.mxu0 0.0
        %2861 = vmatprep.subr.mxu0 0.0
        %2862 = vmatpush1.msra.mxu0 0.0
        %2863 = vmatprep.subr.mxu0 0.0
        %2864 = vmatpush1.msra.mxu0 0.0
        %2865 = vmatprep.subr.mxu0 0.0
        %2866 = vmatpush1.msra.mxu0 0.0
        %2867 = vmatprep.subr.mxu0 0.0
        %2868 = vmatpush1.msra.mxu0 0.0
        %2869 = vmatprep.subr.mxu0 0.0
        %2870 = vmatpush1.msra.mxu0 0.0
        %2871 = vmatprep.subr.mxu0 0.0
        %2872 = vmatpush1.msra.mxu0 0.0
        %2873 = vmatprep.subr.mxu0 0.0
        %2874 = vmatpush1.msra.mxu0 0.0
        %2875 = vmatprep.subr.mxu0 0.0
        %2876 = vmatpush1.msra.mxu0 0.0
        %2877 = vmatprep.subr.mxu0 0.0
        %2878 = vmatpush1.msra.mxu0 0.0
        %2879 = vmatprep.subr.mxu0 0.0
        %2880 = vmatpush1.msra.mxu0 0.0
        %2881 = vmatprep.subr.mxu0 0.0
        %2882 = vmatpush1.msra.mxu0 0.0
        %2883 = vmatprep.subr.mxu0 0.0
        %2884 = vmatpush1.msra.mxu0 0.0
        %2885 = vmatprep.subr.mxu0 0.0
        %2886 = vmatpush1.msra.mxu0 0.0
        %2887 = vmatprep.subr.mxu0 0.0
        %2888 = vmatpush1.msra.mxu0 0.0
        %2889 = vmatprep.subr.mxu0 0.0
        %2890 = vmatpush1.msra.mxu0 0.0
        %2891 = vmatprep.mubr.f32.mxu0 0.0
        %2892 = vmatmul.mubr.f32.gmra.mrb[0].mxu0 %v2597
        %v2893 = vpop.f32.mrb[0].mxu0
        %v2894 = vadd.f32 0.0, %v2893
        %v2895 = vpop.f32.mrb[0].mxu0
        %2896 = vmatprep.mubr.f32.mxu0 0.0
        %2897 = vmatmul.mubr.f32.gmra.mrb[0].mxu0 %v2600
        %v2898 = vpop.f32.mrb[0].mxu0
        %v2899 = vadd.f32 0.0, %v2898
        %v2900 = vpop.f32.mrb[0].mxu0
        %2901 = vdwg.mxu0
        %v2902 = vsub.f32 %v2363, %v2669
        %v2903 = vsub.f32 %v2368, %v2674
        %v2904 = vsub.f32 %v2438, %v2744
        %v2905 = vsub.f32 %v2443, %v2749
        %v2906 = vsub.f32 %v2513, %v2819
        %v2907 = vsub.f32 %v2518, %v2824
        %v2908 = vsub.f32 %v2588, %v2894
        %v2909 = vsub.f32 %v2593, %v2899
        %2910 = vst.msk [vmem:[%s522] sm:$0xff] %vm548, %v2902
        %2911 = vst.msk [vmem:[%s522 + $0x8] sm:$0xff] %vm548, %v2903
        %2912 = vst.msk [vmem:[%s522 + $0x10] sm:$0xff] %vm548, %v2904
        %2913 = vst.msk [vmem:[%s522 + $0x18] sm:$0xff] %vm548, %v2905
        %2914 = vst.msk [vmem:[%s522 + $0x20] sm:$0xff] %vm548, %v2906
        %2915 = vst.msk [vmem:[%s522 + $0x28] sm:$0xff] %vm548, %v2907
        %2916 = vst.msk [vmem:[%s522 + $0x30] sm:$0xff] %vm548, %v2908
        %2917 = vst.msk [vmem:[%s522 + $0x38] sm:$0xff] %vm548, %v2909
        %s2918 = sand.u32 %s261, 1
        %s2919 = scalar_lea.sflag [#allocation4], %s2918
        %s2920 = sand.u32 %s261, 1
        %s2921 = smul.addr %s2920, 64
        %s2922 = scalar_lea.vmem [#allocation16], %s2921
        // Predicated region
        $region93: #{fourier_layer_2d.1} parent=59 // pred_check
          %p2923 = pneg %p271
        $region94: #{fourier_layer_2d.1} parent=59 // pred_check_branch
          %2925 = sbr.rel (%p2923) target = $region96
        $region95: #{fourier_layer_2d.1} parent=59 // pred_region
          #allocation20 [shape = 'u32[6]{0}', space=smem, size = 0x18, scoped, tag = 'DMA stride descriptor']
          %s2926 = smul.u32 2, %s33
          %s2928 = ssub.s32 1024, 1024
          %2929 = vsyncadd %s2919, %s2928
          %s2930 = smul.addr %s2926, 2
          %s2931 = smul.addr %s2930, 128
          %s2932 = scalar_lea.hbm %s10, %s2931
          %s2934 = sshll.u32 1, 14
          %s2935 = sxor.u32 4294967295, %s2934
          %s2938 = sshll.u32 7, 18
          %s2939 = sxor.u32 4294967295, %s2938
          %s2940 = sand.u32 0, %s2939
          %s2942 = sor.u32 %s2940, 0
          %s2944 = sshll.u32 3, 24
          %s2945 = sxor.u32 4294967295, %s2944
          %s2946 = sand.u32 %s2942, %s2945
          %s2948 = sor.u32 %s2946, 0
          %s2949 = sshll.u32 %s2922, 4
          %s2950 = int_to_ptr.vmem [resolvable:$true] %s2949
          %2956 = sst [smem:[#allocation20]] 512
          %s2957 = scalar_lea.smem [#allocation20], 1
          %2958 = sst [smem:[%s2957]] 1024
          %s2959 = scalar_lea.smem [#allocation20], 2
          %2960 = sst [smem:[%s2959]] 4
          %s2961 = scalar_lea.smem [#allocation20], 3
          %2962 = sst [smem:[%s2961]] 128
          %s2963 = scalar_lea.smem [#allocation20], 4
          %2964 = sst [smem:[%s2963]] 128
          %s2965 = scalar_lea.smem [#allocation20], 5
          %2966 = sst [smem:[%s2965]] 8
          %2968 = dma.general %s2950, 1024, %s2932, %s2919, [#allocation19], [#allocation20], %s2948, 0
        $region96: #{fourier_layer_2d.1} parent=59 // pred_fallthru
          _
      $region60: #{fourier_layer_2d.1} parent=5 // pred_fallthru
        _
      %p2969 = scmp.le.s32.totalorder 2, %s28
      // Predicated region
      $region97: #{fourier_layer_2d.1} parent=5 // pred_check
        %p2970 = pneg %p2969
      $region98: #{fourier_layer_2d.1} parent=5 // pred_check_branch
        %2972 = sbr.rel (%p2970) target = $region100
      $region99: #{fourier_layer_2d.1} parent=5 // pred_region
        %s2973 = ssub.s32 %s28, 2
        // Predicated region
        $region101: #{fourier_layer_2d.1} parent=99 // pred_check
          %p2974 = pneg %p277
        $region102: #{fourier_layer_2d.1} parent=99 // pred_check_branch
          %2976 = sbr.rel (%p2974) target = $region104
        $region103: #{fourier_layer_2d.1} parent=99 // pred_region
          %s2977 = sand.u32 %s262, 1
          %s2978 = scalar_lea.sflag [#allocation4], %s2977
          %s2979 = sand.u32 %s262, 1
          %s2980 = smul.addr %s2979, 64
          %s2981 = scalar_lea.vmem [#allocation16], %s2980
          %2982 = dma.done %s2978, 1024
        $region104: #{fourier_layer_2d.1} parent=99 // pred_fallthru
          _
      $region100: #{fourier_layer_2d.1} parent=5 // pred_fallthru
        _
    $region6: #{fourier_layer_2d.1} parent=1 // loop_footer
      %s32 = sadd.s32 1, %s28
    $region7: #{fourier_layer_2d.1} parent=1 // loop_footer_branch
      %27 = sbr.rel target = $region3
    $region8: #{fourier_layer_2d.1} parent=1 // loop_exit
      _
    %2983 = vsyncpa [#allocation3], 1
    %s2984 = scalar_lea.sflag [#allocation3], 1
    %2985 = vsyncpa %s2984, 1
    %2986 = vsyncpa [#allocation6], 1
    %s2987 = scalar_lea.sflag [#allocation6], 1
    %2988 = vsyncpa %s2987, 1
    %2989 = vsyncpa [#allocation9], 1
    %2990 = vsyncpa [#allocation12], 1
    %2991 = vsyncpa [#allocation15], 1
    %2992 = vsyncpa [#allocation4], 1
    %s2993 = scalar_lea.sflag [#allocation4], 1
    %2994 = vsyncpa %s2993, 1

</llo_original>
